<compile_context>
chip_gen: v6e
topology: v6e:2x2x1
jax: 0.10.0
libtpu: 0.0.40
codegen_flags: <defaults>
</compile_context>

<pallas_src>
import numpy as np
import jax
import jax.numpy as jnp
from jax.experimental import pallas as pl
from jax.experimental.pallas import tpu as pltpu

EPS = 1e-5
_VMEM = pl.BlockSpec(memory_space=pltpu.MemorySpace.VMEM)


# ---------------------------------------------------------------------------
# BatchNorm(+ReLU) epilogues (training mode, single reduction pass)
# ---------------------------------------------------------------------------
def _bn_relu(y, gamma, beta):
    """Rows = N*H*W, lanes = channels.  Conv bias omitted upstream (cancels in y - mean,
    and leaves the variance unchanged)."""
    m = jnp.mean(y, axis=0, keepdims=True)
    ms = jnp.mean(y * y, axis=0, keepdims=True)
    scale = gamma * jax.lax.rsqrt(ms - m * m + EPS)
    return jnp.maximum(y * scale + (beta - m * scale), 0.0)


def _bn_relu_t(y_t, gamma_col, beta_col):
    """Transposed variant: sublanes = channels, lanes = N*H*W (used for layer 1)."""
    m = jnp.mean(y_t, axis=1, keepdims=True)
    ms = jnp.mean(y_t * y_t, axis=1, keepdims=True)
    scale = gamma_col * jax.lax.rsqrt(ms - m * m + EPS)
    return jnp.maximum(y_t * scale + (beta_col - m * scale), 0.0)


# ---------------------------------------------------------------------------
# Fused Pallas kernel (whole encoder)
# ---------------------------------------------------------------------------
def _make_encoder_kernel(n_batch, c1, n_later, n_fc_pos=4):
    """Kernel refs (all whole-array VMEM):
      x (N, C_img, H*W), cond (N, cond_dim),
      w1_img (9*C1, C_img), w1_cond (9*C1, cond_dim), r3 (9, H*W, P1),
      g1 (C1, 1), b1 (C1, 1),
      per later layer l: s_big (9*M_out, M_in), w3 (9, C_in, C_out), g (1, C_out), b (1, C_out),
      w_head (4*C_last, HEADW), b_head (1, HEADW),  out (N, HEADW)."""

    def kernel(*refs):
        x_ref, cond_ref, w1i_ref, w1c_ref, r3_ref, g1_ref, b1_ref = refs[:7]
        idx = 7
        later = []
        for _ in range(n_later):
            later.append(refs[idx:idx + 4])
            idx += 4
        wh_ref, bh_ref = refs[idx], refs[idx + 1]
        o_ref = refs[idx + 2]

        # ----- layer 1: conv directly from the raw NCHW input (in-kernel im2col) -----
        x_all = x_ref[...]                                    # (N, C_img, H*W)
        r3 = r3_ref[...]                                      # (9, H*W, P1) 0/1 spatial gather
        # cond channels are spatially constant: per-tap contribution, contracted on minor
        # dims so no in-kernel transpose is needed.
        g_cond = jnp.einsum('rk,nk->rn', w1c_ref[...], cond_ref[...],
                            preferred_element_type=jnp.float32)      # (9*C1, N)
        blocks = []
        for n in range(n_batch):                              # static, tiny batch
            f = jnp.dot(w1i_ref[...], x_all[n],
                        preferred_element_type=jnp.float32)          # (9*C1, H*W)
            f = f + jnp.broadcast_to(g_cond[:, n:n + 1], f.shape)
            f3 = f.reshape(9, c1, f.shape[-1])                       # aligned leading split
            yt = jnp.einsum('tcq,tqp->tcp', f3, r3,
                            preferred_element_type=jnp.float32).sum(axis=0)   # (C1, P1)
            blocks.append(yt)
        y1t = jnp.concatenate(blocks, axis=1) if n_batch > 1 else blocks[0]   # (C1, N*P1)
        act_t = _bn_relu_t(y1t, g1_ref[...], b1_ref[...])     # transposed activation

        # ----- later conv layers: 1 deep gather matmul + 1 batched 9-tap matmul -----
        act = None
        for li, (s_ref, w3_ref, g_ref, b_ref) in enumerate(later):
            if li == 0:
                # consume the transposed layer-1 activation by contracting minor dims
                p = jnp.einsum('rm,cm->rc', s_ref[...], act_t,
                               preferred_element_type=jnp.float32)   # (9*M_out, C_in)
            else:
                p = jnp.dot(s_ref[...], act, preferred_element_type=jnp.float32)
            m_out = s_ref.shape[0] // 9
            p3 = p.reshape(9, m_out, p.shape[-1])                    # aligned leading split
            y = jnp.einsum('tmc,tcd->tmd', p3, w3_ref[...],
                           preferred_element_type=jnp.float32).sum(axis=0)    # (M_out, C_out)
            act = _bn_relu(y, g_ref[...], b_ref[...])

        # ----- fc + fused (mu|logvar) head, folded at init -> ONE K = 4*C_last matmul -----
        # last conv rows are ordered (spatial p, batch n); lane-concat regroups to (N, 4*C_last)
        h_in = jnp.concatenate(
            [act[p * n_batch:(p + 1) * n_batch, :] for p in range(n_fc_pos)], axis=1)
        o_ref[...] = jnp.dot(h_in, wh_ref[...],
                             preferred_element_type=jnp.float32) + bh_ref[...]

    return kernel


# ---------------------------------------------------------------------------
# Init-time constants (numpy; 0/1 gather / selection matrices, weight re-layouts)
# ---------------------------------------------------------------------------
def _spatial_gather_mats(h_in, w_in):
    """(9, H*W, Ho*Wo) 0/1 matrices: tap t=kh*3+kw column p selects input spatial index
    q = (2*ho+kh-1)*W + (2*wo+kw-1); all-zero columns implement zero padding."""
    h_out, w_out = h_in // 2, w_in // 2
    r = np.zeros((9, h_in * w_in, h_out * w_out), np.float32)
    for kh in range(3):
        for kw in range(3):
            t = kh * 3 + kw
            for ho in range(h_out):
                hs = 2 * ho + kh - 1
                if not 0 <= hs < h_in:
                    continue
                for wo in range(w_out):
                    ws = 2 * wo + kw - 1
                    if not 0 <= ws < w_in:
                        continue
                    r[t, hs * w_in + ws, ho * w_out + wo] = 1.0
    return jnp.asarray(r)


def _stacked_selection(n, h_in, w_in, out_spatial_major):
    """Tap-major stacked 0/1 selection matrix (9*M_out, M_in): row t*M_out + m_out gathers the
    input row feeding tap t of output position m_out (3x3 / stride-2 / pad-1; all-zero rows
    implement zero padding).  Input rows are (n, h, w) n-major; output rows are n-major, or
    (spatial p, batch n) if out_spatial_major (so the fc head can use contiguous static slices)."""
    h_out, w_out = h_in // 2, w_in // 2
    m_in, m_out = n * h_in * w_in, n * h_out * w_out
    s = np.zeros((9, m_out, m_in), np.float32)
    for kh in range(3):
        for kw in range(3):
            t = kh * 3 + kw
            for b in range(n):
                for ho in range(h_out):
                    hs = 2 * ho + kh - 1
                    if not 0 <= hs < h_in:
                        continue
                    for wo in range(w_out):
                        ws = 2 * wo + kw - 1
                        if not 0 <= ws < w_in:
                            continue
                        r_in = (b * h_in + hs) * w_in + ws
                        p = ho * w_out + wo
                        r_out = p * n + b if out_spatial_major else b * h_out * w_out + p
                        s[t, r_out, r_in] = 1.0
    return jnp.asarray(s.reshape(9 * m_out, m_in))


# ---------------------------------------------------------------------------
# Encoder
# ---------------------------------------------------------------------------
class EncoderPallas:
    def __init__(self, cond_dim, latent_dim, n_chan, key):
        self.cond_dim = cond_dim
        self.latent_dim = latent_dim
        self.n_chan = list(n_chan)
        self.c_img = self.n_chan[0]
        self.n_chan[0] = self.n_chan[0] + cond_dim
        self.n_layers = len(self.n_chan) - 1
        assert self.n_layers >= 2

        keys = jax.random.split(key, 3 * self.n_layers + 6)
        ki = iter(range(len(keys)))

        c0, c1 = self.n_chan[0], self.n_chan[1]

        # ---- layer 1: tap-stacked weights, image / cond channel split ----
        # torch layout (Cout, Cin, 3, 3) -> (kh, kw, Cout, Cin) -> (9, Cout, Cin).
        # Conv bias omitted: cancelled exactly by the training-mode BatchNorm mean subtraction.
        w1 = 0.05 * jax.random.normal(keys[next(ki)], (c1, c0, 3, 3), jnp.float32)
        taps1 = jnp.transpose(w1, (2, 3, 0, 1)).reshape(9, c1, c0)
        self.w1_img = taps1[:, :, :self.c_img].reshape(9 * c1, self.c_img)   # (9*C1, C_img)
        self.w1_cond = taps1[:, :, self.c_img:].reshape(9 * c1, cond_dim)    # (9*C1, cond_dim)
        # layer-1 BN params stored as columns (activation is channels-in-sublanes there)
        self.bn_gamma = [1.0 + 0.1 * jax.random.normal(keys[next(ki)], (c1, 1), jnp.float32)]
        self.bn_beta = [0.1 * jax.random.normal(keys[next(ki)], (c1, 1), jnp.float32)]

        # ---- later conv layers: per-tap weight blocks (9, Cin, Cout) ----
        self.conv_w3 = []
        for i in range(1, self.n_layers):
            cin, cout = self.n_chan[i], self.n_chan[i + 1]
            w = 0.05 * jax.random.normal(keys[next(ki)], (cout, cin, 3, 3), jnp.float32)
            self.conv_w3.append(jnp.transpose(w, (2, 3, 1, 0)).reshape(9, cin, cout))
            self.bn_gamma.append(1.0 + 0.1 * jax.random.normal(keys[next(ki)], (1, cout), jnp.float32))
            self.bn_beta.append(0.1 * jax.random.normal(keys[next(ki)], (1, cout), jnp.float32))
        # TODO(synk): nn.BatchNorm2d running_mean / running_var buffer updates (training-time
        # side effect) are not modeled; the forward output does not depend on them.

        # ---- fc + mu/logvar heads folded at init (no nonlinearity between them in torch) ----
        c_last = self.n_chan[-1]
        fc_in = c_last * 4
        wfc_t = 0.05 * jax.random.normal(keys[next(ki)], (fc_in, latent_dim), jnp.float32)  # (in, out)
        bfc = 0.05 * jax.random.normal(keys[next(ki)], (1, latent_dim), jnp.float32)
        wmu = 0.05 * jax.random.normal(keys[next(ki)], (latent_dim, latent_dim), jnp.float32)
        bmu = 0.05 * jax.random.normal(keys[next(ki)], (1, latent_dim), jnp.float32)
        wlv = 0.05 * jax.random.normal(keys[next(ki)], (latent_dim, latent_dim), jnp.float32)
        blv = 0.05 * jax.random.normal(keys[next(ki)], (1, latent_dim), jnp.float32)
        # kernel fc-input column order is (p*C_last + c); torch flatten order is (c*4 + p).
        perm = (np.arange(4)[:, None] + 4 * np.arange(c_last)[None, :]).reshape(-1)
        wfc_perm = wfc_t[jnp.asarray(perm), :]                                # (4*C_last, latent)
        wml = jnp.concatenate([wmu, wlv], axis=1)                             # (latent, 2*latent)
        bml = jnp.concatenate([bmu, blv], axis=1)                             # (1, 2*latent)
        w_head = wfc_perm @ wml                                               # (4*C_last, 2*latent)
        b_head = bfc @ wml + bml                                              # (1, 2*latent)
        # pad the head to a 128-lane-dense output (unmasked stores; sliced off in the wrapper)
        self.head_width = max(128, ((2 * latent_dim + 127) // 128) * 128)
        padw = self.head_width - 2 * latent_dim
        self.w_head = jnp.pad(w_head, ((0, 0), (0, padw)))
        self.b_head = jnp.pad(b_head, ((0, 0), (0, padw)))

        self._const_cache = {}
        self._fwd = jax.jit(self._forward_impl)

    # -- per-(batch, spatial) gather / selection constants (built once, cached) --
    def _consts(self, n, s):
        key = (n, s)
        if key not in self._const_cache:
            r3 = _spatial_gather_mats(s, s)
            sels = []
            s_in = s // 2
            for i in range(1, self.n_layers):
                sels.append(_stacked_selection(
                    n, s_in, s_in, out_spatial_major=(i == self.n_layers - 1)))
                s_in //= 2
            self._const_cache[key] = (r3, sels)
        return self._const_cache[key]

    def _forward_impl(self, x_nchw, cond):
        n, c, s, _ = x_nchw.shape
        assert c == self.c_img
        assert s // (2 ** self.n_layers) == 2, "module assumes final spatial 2x2 (fc_in = n_chan[-1]*4)"

        r3, sels = self._consts(n, s)
        x3 = x_nchw.reshape(n, self.c_img, s * s)   # contiguous bitcast; im2col is done in-kernel

        args = [x3, cond, self.w1_img, self.w1_cond, r3, self.bn_gamma[0], self.bn_beta[0]]
        for i in range(1, self.n_layers):
            args += [sels[i - 1], self.conv_w3[i - 1], self.bn_gamma[i], self.bn_beta[i]]
        args += [self.w_head, self.b_head]

        out = pl.pallas_call(
            _make_encoder_kernel(n, self.n_chan[1], self.n_layers - 1),
            out_shape=jax.ShapeDtypeStruct((n, self.head_width), jnp.float32),
            in_specs=[_VMEM] * len(args),
            out_specs=_VMEM,
        )(*args)

        return out[:, :self.latent_dim], out[:, self.latent_dim:2 * self.latent_dim]

    def __call__(self, x_nchw, cond):
        return self._fwd(x_nchw, cond)


# ---------------------------------------------------------------------------
if __name__ == "__main__":
    key = jax.random.PRNGKey(0)
    k_param, k_x, k_c = jax.random.split(key, 3)

    COND_DIM = 4
    LATENT_DIM = 32
    N_CHAN = [3, 8, 16, 32]   # 3 stride-2 convs: 16 -> 8 -> 4 -> 2  (fc_in = 32*4)
    BATCH = 2
    SPATIAL = 16

    enc = EncoderPallas(COND_DIM, LATENT_DIM, N_CHAN, k_param)

    x = jax.random.normal(k_x, (BATCH, 3, SPATIAL, SPATIAL), jnp.float32)   # NCHW
    cond = jax.random.normal(k_c, (BATCH, COND_DIM), jnp.float32)

    mu, logvar = enc(x, cond)
    jax.block_until_ready((mu, logvar))

    assert mu.shape == (BATCH, LATENT_DIM) and logvar.shape == (BATCH, LATENT_DIM)
    assert bool(jnp.all(jnp.isfinite(mu))) and bool(jnp.all(jnp.isfinite(logvar)))
    print("KERNEL_OK")
</pallas_src>

<mosaic_0001>
module attributes {stable_mosaic.version = 11 : i64} {
  func.func @kernel(%arg0: memref<2x3x256xf32, #tpu.memory_space<vmem>>, %arg1: memref<2x4xf32, #tpu.memory_space<vmem>>, %arg2: memref<72x3xf32, #tpu.memory_space<vmem>>, %arg3: memref<72x4xf32, #tpu.memory_space<vmem>>, %arg4: memref<9x256x64xf32, #tpu.memory_space<vmem>>, %arg5: memref<8x1xf32, #tpu.memory_space<vmem>>, %arg6: memref<8x1xf32, #tpu.memory_space<vmem>>, %arg7: memref<288x128xf32, #tpu.memory_space<vmem>>, %arg8: memref<9x8x16xf32, #tpu.memory_space<vmem>>, %arg9: memref<1x16xf32, #tpu.memory_space<vmem>>, %arg10: memref<1x16xf32, #tpu.memory_space<vmem>>, %arg11: memref<72x32xf32, #tpu.memory_space<vmem>>, %arg12: memref<9x16x32xf32, #tpu.memory_space<vmem>>, %arg13: memref<1x32xf32, #tpu.memory_space<vmem>>, %arg14: memref<1x32xf32, #tpu.memory_space<vmem>>, %arg15: memref<128x128xf32, #tpu.memory_space<vmem>>, %arg16: memref<1x128xf32, #tpu.memory_space<vmem>>, %arg17: memref<2x128xf32, #tpu.memory_space<vmem>>) attributes {dimension_semantics = [], scalar_prefetch = 0 : i64, scratch_operands = 0 : i64, tpu.core_type = #tpu.core_type<tc>} {
    %c0 = arith.constant 0 : index
    %c0_0 = arith.constant 0 : index
    %c0_1 = arith.constant 0 : index
    %0 = vector.load %arg0[%c0, %c0_0, %c0_1] : memref<2x3x256xf32, #tpu.memory_space<vmem>>, vector<2x3x256xf32>
    %c0_2 = arith.constant 0 : index
    %c0_3 = arith.constant 0 : index
    %c0_4 = arith.constant 0 : index
    %1 = vector.load %arg4[%c0_2, %c0_3, %c0_4] : memref<9x256x64xf32, #tpu.memory_space<vmem>>, vector<9x256x64xf32>
    %c0_5 = arith.constant 0 : index
    %c0_6 = arith.constant 0 : index
    %2 = vector.load %arg3[%c0_5, %c0_6] : memref<72x4xf32, #tpu.memory_space<vmem>>, vector<72x4xf32>
    %c0_7 = arith.constant 0 : index
    %c0_8 = arith.constant 0 : index
    %3 = vector.load %arg1[%c0_7, %c0_8] : memref<2x4xf32, #tpu.memory_space<vmem>>, vector<2x4xf32>
    "tpu.trace_start"() <{level = 10 : i32, message = "rk,nk->rn"}> : () -> ()
    %cst = arith.constant dense<0.000000e+00> : vector<72x2xf32>
    %4 = tpu.matmul %2, %3, %cst {dimension_numbers = #tpu.dot_dimension_numbers<[1], [1], [0], [0], [0, 0, 1, 0], [], []>} : vector<72x4xf32>, vector<2x4xf32>, vector<72x2xf32> -> vector<72x2xf32>
    "tpu.trace_stop"() : () -> ()
    %c0_9 = arith.constant 0 : index
    %c0_10 = arith.constant 0 : index
    %5 = vector.load %arg2[%c0_9, %c0_10] : memref<72x3xf32, #tpu.memory_space<vmem>>, vector<72x3xf32>
    %6 = vector.extract_strided_slice %0 {offsets = [0, 0, 0], sizes = [1, 3, 256], strides = [1, 1, 1]} : vector<2x3x256xf32> to vector<1x3x256xf32>
    %7 = vector.shape_cast %6 : vector<1x3x256xf32> to vector<3x256xf32>
    %cst_11 = arith.constant dense<0.000000e+00> : vector<72x256xf32>
    %8 = tpu.matmul %5, %7, %cst_11 {dimension_numbers = #tpu.dot_dimension_numbers<[1], [0], [0], [1], [0, 0, 1, 1], [], []>} : vector<72x3xf32>, vector<3x256xf32>, vector<72x256xf32> -> vector<72x256xf32>
    %9 = vector.extract_strided_slice %4 {offsets = [0, 0], sizes = [72, 1], strides = [1, 1]} : vector<72x2xf32> to vector<72x1xf32>
    %10 = vector.shape_cast %9 : vector<72x1xf32> to vector<72x1xf32>
    %11 = vector.broadcast %10 : vector<72x1xf32> to vector<72x256xf32>
    %12 = arith.addf %8, %11 : vector<72x256xf32>
    %13 = vector.shape_cast %12 : vector<72x256xf32> to vector<9x8x256xf32>
    "tpu.trace_start"() <{level = 10 : i32, message = "tcq,tqp->tcp"}> : () -> ()
    %cst_12 = arith.constant dense<0.000000e+00> : vector<9x8x64xf32>
    %14 = tpu.matmul %13, %1, %cst_12 {dimension_numbers = #tpu.dot_dimension_numbers<[2], [1], [1], [2], [0, 0, 0, 1, 1, 2], [0], [0]>} : vector<9x8x256xf32>, vector<9x256x64xf32>, vector<9x8x64xf32> -> vector<9x8x64xf32>
    "tpu.trace_stop"() : () -> ()
    %cst_13 = arith.constant dense<0.000000e+00> : vector<8x64xf32>
    %15 = vector.multi_reduction <add>, %14, %cst_13 [0] : vector<9x8x64xf32> to vector<8x64xf32>
    %c0_14 = arith.constant 0 : index
    %c0_15 = arith.constant 0 : index
    %16 = vector.load %arg2[%c0_14, %c0_15] : memref<72x3xf32, #tpu.memory_space<vmem>>, vector<72x3xf32>
    %17 = vector.extract_strided_slice %0 {offsets = [1, 0, 0], sizes = [1, 3, 256], strides = [1, 1, 1]} : vector<2x3x256xf32> to vector<1x3x256xf32>
    %18 = vector.shape_cast %17 : vector<1x3x256xf32> to vector<3x256xf32>
    %cst_16 = arith.constant dense<0.000000e+00> : vector<72x256xf32>
    %19 = tpu.matmul %16, %18, %cst_16 {dimension_numbers = #tpu.dot_dimension_numbers<[1], [0], [0], [1], [0, 0, 1, 1], [], []>} : vector<72x3xf32>, vector<3x256xf32>, vector<72x256xf32> -> vector<72x256xf32>
    %20 = vector.extract_strided_slice %4 {offsets = [0, 1], sizes = [72, 1], strides = [1, 1]} : vector<72x2xf32> to vector<72x1xf32>
    %21 = vector.shape_cast %20 : vector<72x1xf32> to vector<72x1xf32>
    %22 = vector.broadcast %21 : vector<72x1xf32> to vector<72x256xf32>
    %23 = arith.addf %19, %22 : vector<72x256xf32>
    %24 = vector.shape_cast %23 : vector<72x256xf32> to vector<9x8x256xf32>
    "tpu.trace_start"() <{level = 10 : i32, message = "tcq,tqp->tcp"}> : () -> ()
    %cst_17 = arith.constant dense<0.000000e+00> : vector<9x8x64xf32>
    %25 = tpu.matmul %24, %1, %cst_17 {dimension_numbers = #tpu.dot_dimension_numbers<[2], [1], [1], [2], [0, 0, 0, 1, 1, 2], [0], [0]>} : vector<9x8x256xf32>, vector<9x256x64xf32>, vector<9x8x64xf32> -> vector<9x8x64xf32>
    "tpu.trace_stop"() : () -> ()
    %cst_18 = arith.constant dense<0.000000e+00> : vector<8x64xf32>
    %26 = vector.multi_reduction <add>, %25, %cst_18 [0] : vector<9x8x64xf32> to vector<8x64xf32>
    %27 = tpu.concatenate %15, %26 in 1 : vector<8x64xf32>, vector<8x64xf32> -> vector<8x128xf32>
    %c0_19 = arith.constant 0 : index
    %c0_20 = arith.constant 0 : index
    %28 = vector.load %arg5[%c0_19, %c0_20] : memref<8x1xf32, #tpu.memory_space<vmem>>, vector<8x1xf32>
    %c0_21 = arith.constant 0 : index
    %c0_22 = arith.constant 0 : index
    %29 = vector.load %arg6[%c0_21, %c0_22] : memref<8x1xf32, #tpu.memory_space<vmem>>, vector<8x1xf32>
    %cst_23 = arith.constant dense<0.000000e+00> : vector<8xf32>
    %30 = vector.multi_reduction <add>, %27, %cst_23 [1] : vector<8x128xf32> to vector<8xf32>
    %31 = vector.shape_cast %30 : vector<8xf32> to vector<8x1xf32>
    %cst_24 = arith.constant 1.280000e+02 : f32
    %32 = vector.broadcast %cst_24 : f32 to vector<8x1xf32>
    %33 = arith.divf %31, %32 : vector<8x1xf32>
    %34 = arith.mulf %27, %27 : vector<8x128xf32>
    %cst_25 = arith.constant dense<0.000000e+00> : vector<8xf32>
    %35 = vector.multi_reduction <add>, %34, %cst_25 [1] : vector<8x128xf32> to vector<8xf32>
    %36 = vector.shape_cast %35 : vector<8xf32> to vector<8x1xf32>
    %cst_26 = arith.constant 1.280000e+02 : f32
    %37 = vector.broadcast %cst_26 : f32 to vector<8x1xf32>
    %38 = arith.divf %36, %37 : vector<8x1xf32>
    %39 = arith.mulf %33, %33 : vector<8x1xf32>
    %40 = arith.subf %38, %39 : vector<8x1xf32>
    %cst_27 = arith.constant 9.99999974E-6 : f32
    %41 = vector.broadcast %cst_27 : f32 to vector<8x1xf32>
    %42 = arith.addf %40, %41 : vector<8x1xf32>
    %43 = math.rsqrt %42 : vector<8x1xf32>
    %44 = arith.mulf %28, %43 : vector<8x1xf32>
    %45 = vector.broadcast %44 : vector<8x1xf32> to vector<8x128xf32>
    %46 = arith.mulf %27, %45 : vector<8x128xf32>
    %47 = arith.mulf %33, %44 : vector<8x1xf32>
    %48 = arith.subf %29, %47 : vector<8x1xf32>
    %49 = vector.broadcast %48 : vector<8x1xf32> to vector<8x128xf32>
    %50 = arith.addf %46, %49 : vector<8x128xf32>
    %cst_28 = arith.constant 0.000000e+00 : f32
    %51 = vector.broadcast %cst_28 : f32 to vector<8x128xf32>
    %52 = arith.maximumf %50, %51 : vector<8x128xf32>
    %c0_29 = arith.constant 0 : index
    %c0_30 = arith.constant 0 : index
    %53 = vector.load %arg7[%c0_29, %c0_30] : memref<288x128xf32, #tpu.memory_space<vmem>>, vector<288x128xf32>
    "tpu.trace_start"() <{level = 10 : i32, message = "rm,cm->rc"}> : () -> ()
    %cst_31 = arith.constant dense<0.000000e+00> : vector<288x8xf32>
    %54 = tpu.matmul %53, %52, %cst_31 {dimension_numbers = #tpu.dot_dimension_numbers<[1], [1], [0], [0], [0, 0, 1, 0], [], []>} : vector<288x128xf32>, vector<8x128xf32>, vector<288x8xf32> -> vector<288x8xf32>
    "tpu.trace_stop"() : () -> ()
    %55 = vector.shape_cast %54 : vector<288x8xf32> to vector<9x32x8xf32>
    %c0_32 = arith.constant 0 : index
    %c0_33 = arith.constant 0 : index
    %c0_34 = arith.constant 0 : index
    %56 = vector.load %arg8[%c0_32, %c0_33, %c0_34] : memref<9x8x16xf32, #tpu.memory_space<vmem>>, vector<9x8x16xf32>
    "tpu.trace_start"() <{level = 10 : i32, message = "tmc,tcd->tmd"}> : () -> ()
    %cst_35 = arith.constant dense<0.000000e+00> : vector<9x32x16xf32>
    %57 = tpu.matmul %55, %56, %cst_35 {dimension_numbers = #tpu.dot_dimension_numbers<[2], [1], [1], [2], [0, 0, 0, 1, 1, 2], [0], [0]>} : vector<9x32x8xf32>, vector<9x8x16xf32>, vector<9x32x16xf32> -> vector<9x32x16xf32>
    "tpu.trace_stop"() : () -> ()
    %cst_36 = arith.constant dense<0.000000e+00> : vector<32x16xf32>
    %58 = vector.multi_reduction <add>, %57, %cst_36 [0] : vector<9x32x16xf32> to vector<32x16xf32>
    %c0_37 = arith.constant 0 : index
    %c0_38 = arith.constant 0 : index
    %59 = vector.load %arg9[%c0_37, %c0_38] : memref<1x16xf32, #tpu.memory_space<vmem>>, vector<1x16xf32>
    %c0_39 = arith.constant 0 : index
    %c0_40 = arith.constant 0 : index
    %60 = vector.load %arg10[%c0_39, %c0_40] : memref<1x16xf32, #tpu.memory_space<vmem>>, vector<1x16xf32>
    %cst_41 = arith.constant dense<0.000000e+00> : vector<16xf32>
    %61 = vector.multi_reduction <add>, %58, %cst_41 [0] : vector<32x16xf32> to vector<16xf32>
    %62 = vector.shape_cast %61 : vector<16xf32> to vector<1x16xf32>
    %cst_42 = arith.constant 3.200000e+01 : f32
    %63 = vector.broadcast %cst_42 : f32 to vector<1x16xf32>
    %64 = arith.divf %62, %63 : vector<1x16xf32>
    %65 = arith.mulf %58, %58 : vector<32x16xf32>
    %cst_43 = arith.constant dense<0.000000e+00> : vector<16xf32>
    %66 = vector.multi_reduction <add>, %65, %cst_43 [0] : vector<32x16xf32> to vector<16xf32>
    %67 = vector.shape_cast %66 : vector<16xf32> to vector<1x16xf32>
    %cst_44 = arith.constant 3.200000e+01 : f32
    %68 = vector.broadcast %cst_44 : f32 to vector<1x16xf32>
    %69 = arith.divf %67, %68 : vector<1x16xf32>
    %70 = arith.mulf %64, %64 : vector<1x16xf32>
    %71 = arith.subf %69, %70 : vector<1x16xf32>
    %cst_45 = arith.constant 9.99999974E-6 : f32
    %72 = vector.broadcast %cst_45 : f32 to vector<1x16xf32>
    %73 = arith.addf %71, %72 : vector<1x16xf32>
    %74 = math.rsqrt %73 : vector<1x16xf32>
    %75 = arith.mulf %59, %74 : vector<1x16xf32>
    %76 = vector.broadcast %75 : vector<1x16xf32> to vector<32x16xf32>
    %77 = arith.mulf %58, %76 : vector<32x16xf32>
    %78 = arith.mulf %64, %75 : vector<1x16xf32>
    %79 = arith.subf %60, %78 : vector<1x16xf32>
    %80 = vector.broadcast %79 : vector<1x16xf32> to vector<32x16xf32>
    %81 = arith.addf %77, %80 : vector<32x16xf32>
    %cst_46 = arith.constant 0.000000e+00 : f32
    %82 = vector.broadcast %cst_46 : f32 to vector<32x16xf32>
    %83 = arith.maximumf %81, %82 : vector<32x16xf32>
    %c0_47 = arith.constant 0 : index
    %c0_48 = arith.constant 0 : index
    %84 = vector.load %arg11[%c0_47, %c0_48] : memref<72x32xf32, #tpu.memory_space<vmem>>, vector<72x32xf32>
    %cst_49 = arith.constant dense<0.000000e+00> : vector<72x16xf32>
    %85 = tpu.matmul %84, %83, %cst_49 {dimension_numbers = #tpu.dot_dimension_numbers<[1], [0], [0], [1], [0, 0, 1, 1], [], []>} : vector<72x32xf32>, vector<32x16xf32>, vector<72x16xf32> -> vector<72x16xf32>
    %86 = vector.shape_cast %85 : vector<72x16xf32> to vector<9x8x16xf32>
    %c0_50 = arith.constant 0 : index
    %c0_51 = arith.constant 0 : index
    %c0_52 = arith.constant 0 : index
    %87 = vector.load %arg12[%c0_50, %c0_51, %c0_52] : memref<9x16x32xf32, #tpu.memory_space<vmem>>, vector<9x16x32xf32>
    "tpu.trace_start"() <{level = 10 : i32, message = "tmc,tcd->tmd"}> : () -> ()
    %cst_53 = arith.constant dense<0.000000e+00> : vector<9x8x32xf32>
    %88 = tpu.matmul %86, %87, %cst_53 {dimension_numbers = #tpu.dot_dimension_numbers<[2], [1], [1], [2], [0, 0, 0, 1, 1, 2], [0], [0]>} : vector<9x8x16xf32>, vector<9x16x32xf32>, vector<9x8x32xf32> -> vector<9x8x32xf32>
    "tpu.trace_stop"() : () -> ()
    %cst_54 = arith.constant dense<0.000000e+00> : vector<8x32xf32>
    %89 = vector.multi_reduction <add>, %88, %cst_54 [0] : vector<9x8x32xf32> to vector<8x32xf32>
    %c0_55 = arith.constant 0 : index
    %c0_56 = arith.constant 0 : index
    %90 = vector.load %arg13[%c0_55, %c0_56] : memref<1x32xf32, #tpu.memory_space<vmem>>, vector<1x32xf32>
    %c0_57 = arith.constant 0 : index
    %c0_58 = arith.constant 0 : index
    %91 = vector.load %arg14[%c0_57, %c0_58] : memref<1x32xf32, #tpu.memory_space<vmem>>, vector<1x32xf32>
    %cst_59 = arith.constant dense<0.000000e+00> : vector<32xf32>
    %92 = vector.multi_reduction <add>, %89, %cst_59 [0] : vector<8x32xf32> to vector<32xf32>
    %93 = vector.shape_cast %92 : vector<32xf32> to vector<1x32xf32>
    %cst_60 = arith.constant 8.000000e+00 : f32
    %94 = vector.broadcast %cst_60 : f32 to vector<1x32xf32>
    %95 = arith.divf %93, %94 : vector<1x32xf32>
    %96 = arith.mulf %89, %89 : vector<8x32xf32>
    %cst_61 = arith.constant dense<0.000000e+00> : vector<32xf32>
    %97 = vector.multi_reduction <add>, %96, %cst_61 [0] : vector<8x32xf32> to vector<32xf32>
    %98 = vector.shape_cast %97 : vector<32xf32> to vector<1x32xf32>
    %cst_62 = arith.constant 8.000000e+00 : f32
    %99 = vector.broadcast %cst_62 : f32 to vector<1x32xf32>
    %100 = arith.divf %98, %99 : vector<1x32xf32>
    %101 = arith.mulf %95, %95 : vector<1x32xf32>
    %102 = arith.subf %100, %101 : vector<1x32xf32>
    %cst_63 = arith.constant 9.99999974E-6 : f32
    %103 = vector.broadcast %cst_63 : f32 to vector<1x32xf32>
    %104 = arith.addf %102, %103 : vector<1x32xf32>
    %105 = math.rsqrt %104 : vector<1x32xf32>
    %106 = arith.mulf %90, %105 : vector<1x32xf32>
    %107 = vector.broadcast %106 : vector<1x32xf32> to vector<8x32xf32>
    %108 = arith.mulf %89, %107 : vector<8x32xf32>
    %109 = arith.mulf %95, %106 : vector<1x32xf32>
    %110 = arith.subf %91, %109 : vector<1x32xf32>
    %111 = vector.broadcast %110 : vector<1x32xf32> to vector<8x32xf32>
    %112 = arith.addf %108, %111 : vector<8x32xf32>
    %cst_64 = arith.constant 0.000000e+00 : f32
    %113 = vector.broadcast %cst_64 : f32 to vector<8x32xf32>
    %114 = arith.maximumf %112, %113 : vector<8x32xf32>
    %115 = vector.extract_strided_slice %114 {offsets = [0, 0], sizes = [2, 32], strides = [1, 1]} : vector<8x32xf32> to vector<2x32xf32>
    %116 = vector.extract_strided_slice %114 {offsets = [2, 0], sizes = [2, 32], strides = [1, 1]} : vector<8x32xf32> to vector<2x32xf32>
    %117 = vector.extract_strided_slice %114 {offsets = [4, 0], sizes = [2, 32], strides = [1, 1]} : vector<8x32xf32> to vector<2x32xf32>
    %118 = vector.extract_strided_slice %114 {offsets = [6, 0], sizes = [2, 32], strides = [1, 1]} : vector<8x32xf32> to vector<2x32xf32>
    %119 = tpu.concatenate %115, %116, %117, %118 in 1 : vector<2x32xf32>, vector<2x32xf32>, vector<2x32xf32>, vector<2x32xf32> -> vector<2x128xf32>
    %c0_65 = arith.constant 0 : index
    %c0_66 = arith.constant 0 : index
    %120 = vector.load %arg15[%c0_65, %c0_66] : memref<128x128xf32, #tpu.memory_space<vmem>>, vector<128x128xf32>
    %cst_67 = arith.constant dense<0.000000e+00> : vector<2x128xf32>
    %121 = tpu.matmul %119, %120, %cst_67 {dimension_numbers = #tpu.dot_dimension_numbers<[1], [0], [0], [1], [0, 0, 1, 1], [], []>} : vector<2x128xf32>, vector<128x128xf32>, vector<2x128xf32> -> vector<2x128xf32>
    %c0_68 = arith.constant 0 : index
    %c0_69 = arith.constant 0 : index
    %122 = vector.load %arg16[%c0_68, %c0_69] : memref<1x128xf32, #tpu.memory_space<vmem>>, vector<1x128xf32>
    %123 = vector.broadcast %122 : vector<1x128xf32> to vector<2x128xf32>
    %124 = arith.addf %121, %123 : vector<2x128xf32>
    %c0_70 = arith.constant 0 : index
    %c0_71 = arith.constant 0 : index
    %125 = vector.load %arg17[%c0_70, %c0_71] : memref<2x128xf32, #tpu.memory_space<vmem>>, vector<2x128xf32>
    tpu.vector_store %arg17[%c0_70, %c0_71], %124 {strides = array<i32>} : memref<2x128xf32, #tpu.memory_space<vmem>>, vector<2x128xf32>,
    return
  }
}

</mosaic_0001>

<llo_original>
// kernel: _forward_impl.1
$region0: #{_forward_impl.1}
  #allocation0 [shape = 'u32[]', space=smem, size = 0x4, offset = 0x4, fixed_abs, tag = 'smem constant byte address 0x4 - core index']
  #allocation1 [shape = 'u32[144,128]{1,0:T(1,128)}', space=vmem, size = 0x12000, scoped, tag = 'internal scratch']
  %s0 = inlined_call_operand.vmem [shape: f32[2,3,256], index: 0, kind: input, shape index: {}]
  %s1 = inlined_call_operand.hbm [shape: f32[2,4], index: 1, kind: input, shape index: {}]
  %s2 = inlined_call_operand.hbm [shape: f32[72,3], index: 2, kind: input, shape index: {}]
  %s3 = inlined_call_operand.hbm [shape: f32[72,4], index: 3, kind: input, shape index: {}]
  %s4 = inlined_call_operand.hbm [shape: f32[9,256,64], index: 4, kind: input, shape index: {}]
  %s5 = inlined_call_operand.hbm [shape: f32[8,1], index: 5, kind: input, shape index: {}]
  %s6 = inlined_call_operand.hbm [shape: f32[8,1], index: 6, kind: input, shape index: {}]
  %s7 = inlined_call_operand.hbm [shape: f32[288,128], index: 7, kind: input, shape index: {}]
  %s8 = inlined_call_operand.hbm [shape: f32[9,8,16], index: 8, kind: input, shape index: {}]
  %s9 = inlined_call_operand.hbm [shape: f32[1,16], index: 9, kind: input, shape index: {}]
  %s10 = inlined_call_operand.hbm [shape: f32[1,16], index: 10, kind: input, shape index: {}]
  %s11 = inlined_call_operand.hbm [shape: f32[72,32], index: 11, kind: input, shape index: {}]
  %s12 = inlined_call_operand.hbm [shape: f32[9,16,32], index: 12, kind: input, shape index: {}]
  %s13 = inlined_call_operand.hbm [shape: f32[1,32], index: 13, kind: input, shape index: {}]
  %s14 = inlined_call_operand.hbm [shape: f32[1,32], index: 14, kind: input, shape index: {}]
  %s15 = inlined_call_operand.hbm [shape: f32[128,128], index: 15, kind: input, shape index: {}]
  %s16 = inlined_call_operand.hbm [shape: f32[1,128], index: 16, kind: input, shape index: {}]
  %s17 = inlined_call_operand.vmem [shape: f32[2,128], index: 17, kind: output, shape index: {}]
  %s18 = sld [smem:[#allocation0]]
  $region142: #{_forward_impl.1} parent=0
    _
  %s20 = ssub.s32 1, %s18
  %s21 = scalar_select 0, %s20, %s18
  $region1: #{_forward_impl.1} parent=0
    #allocation2 [shape = 'u8[1024]{0}', space=vmem, size = 0x400, scoped, tag = 'input window, operand 1, single buffered']
    #allocation3 [shape = 's32[1]{0}', space=sflag, size = 0x4, scoped, tag = 'scoped memory for _forward_impl.1']
    #allocation4 [shape = 'u8[36864]{0}', space=vmem, size = 0x9000, scoped, tag = 'input window, operand 2, single buffered']
    #allocation5 [shape = 's32[1]{0}', space=sflag, size = 0x4, scoped, tag = 'scoped memory for _forward_impl.1']
    #allocation6 [shape = 'u8[36864]{0}', space=vmem, size = 0x9000, scoped, tag = 'input window, operand 3, single buffered']
    #allocation7 [shape = 'u8[1179648]{0}', space=vmem, size = 0x120000, scoped, tag = 'input window, operand 4, single buffered']
    #allocation8 [shape = 's32[1]{0}', space=sflag, size = 0x4, scoped, tag = 'scoped memory for _forward_impl.1']
    #allocation9 [shape = 'u8[4096]{0}', space=vmem, size = 0x1000, scoped, tag = 'input window, operand 5, single buffered']
    #allocation10 [shape = 'u8[4096]{0}', space=vmem, size = 0x1000, scoped, tag = 'input window, operand 6, single buffered']
    #allocation11 [shape = 's32[1]{0}', space=sflag, size = 0x4, scoped, tag = 'scoped memory for _forward_impl.1']
    #allocation12 [shape = 'u8[147456]{0}', space=vmem, size = 0x24000, scoped, tag = 'input window, operand 7, single buffered']
    #allocation13 [shape = 'u8[36864]{0}', space=vmem, size = 0x9000, scoped, tag = 'input window, operand 8, single buffered']
    #allocation14 [shape = 's32[1]{0}', space=sflag, size = 0x4, scoped, tag = 'scoped memory for _forward_impl.1']
    #allocation15 [shape = 'u8[512]{0}', space=vmem, size = 0x400, scoped, tag = 'input window, operand 9, single buffered']
    #allocation16 [shape = 'u8[512]{0}', space=vmem, size = 0x400, scoped, tag = 'input window, operand 10, single buffered']
    #allocation17 [shape = 's32[1]{0}', space=sflag, size = 0x4, scoped, tag = 'scoped memory for _forward_impl.1']
    #allocation18 [shape = 'u8[36864]{0}', space=vmem, size = 0x9000, scoped, tag = 'input window, operand 11, single buffered']
    #allocation19 [shape = 'u8[73728]{0}', space=vmem, size = 0x12000, scoped, tag = 'input window, operand 12, single buffered']
    #allocation20 [shape = 's32[1]{0}', space=sflag, size = 0x4, scoped, tag = 'scoped memory for _forward_impl.1']
    #allocation21 [shape = 'u8[512]{0}', space=vmem, size = 0x400, scoped, tag = 'input window, operand 13, single buffered']
    #allocation22 [shape = 'u8[512]{0}', space=vmem, size = 0x400, scoped, tag = 'input window, operand 14, single buffered']
    #allocation23 [shape = 's32[1]{0}', space=sflag, size = 0x4, scoped, tag = 'scoped memory for _forward_impl.1']
    #allocation24 [shape = 'u8[65536]{0}', space=vmem, size = 0x10000, scoped, tag = 'input window, operand 15, single buffered']
    #allocation25 [shape = 'u8[512]{0}', space=vmem, size = 0x400, scoped, tag = 'input window, operand 16, single buffered']
    #allocation26 [shape = 's32[1]{0}', space=sflag, size = 0x4, scoped, tag = 'scoped memory for _forward_impl.1']
    %22 = vsyncpa [#allocation3], 0
    %23 = vsyncpa [#allocation5], 0
    %24 = vsyncpa [#allocation8], 0
    %25 = vsyncpa [#allocation11], 0
    %26 = vsyncpa [#allocation14], 0
    %27 = vsyncpa [#allocation17], 0
    %28 = vsyncpa [#allocation20], 0
    %29 = vsyncpa [#allocation23], 0
    %30 = vsyncpa [#allocation26], 0
    // Predicated region
    $region2: #{_forward_impl.1} parent=1 // pred_check
      _
    $region3: #{_forward_impl.1} parent=1 // pred_check_branch
      %32 = sbr.rel (0) target = $region5
    $region4: #{_forward_impl.1} parent=1 // pred_region
      _
    $region5: #{_forward_impl.1} parent=1 // pred_fallthru
      _
    // Predicated region
    $region6: #{_forward_impl.1} parent=1 // pred_check
      _
    $region7: #{_forward_impl.1} parent=1 // pred_check_branch
      %34 = sbr.rel (0) target = $region9
    $region8: #{_forward_impl.1} parent=1 // pred_region
      %s36 = ssub.s32 32, 32
      %37 = vsyncadd [#allocation3], %s36
      %s39 = sshll.u32 [#allocation2], 4
      %s40 = int_to_ptr.vmem [resolvable:$true] %s39
      %42 = dma.hbm_to_vmem [thread:$0]  %s1, 32, %s40, [#allocation3]
    $region9: #{_forward_impl.1} parent=1 // pred_fallthru
      _
    // Predicated region
    $region10: #{_forward_impl.1} parent=1 // pred_check
      _
    $region11: #{_forward_impl.1} parent=1 // pred_check_branch
      %44 = sbr.rel (0) target = $region13
    $region12: #{_forward_impl.1} parent=1 // pred_region
      %s46 = ssub.s32 1152, 1152
      %47 = vsyncadd [#allocation5], %s46
      %s48 = sshll.u32 [#allocation4], 4
      %s49 = int_to_ptr.vmem [resolvable:$true] %s48
      %54 = dma.hbm_to_vmem [thread:$0]  %s2, 1152, %s49, [#allocation5], 128, 128, 8
    $region13: #{_forward_impl.1} parent=1 // pred_fallthru
      _
    // Predicated region
    $region14: #{_forward_impl.1} parent=1 // pred_check
      _
    $region15: #{_forward_impl.1} parent=1 // pred_check_branch
      %56 = sbr.rel (0) target = $region17
    $region16: #{_forward_impl.1} parent=1 // pred_region
      %s58 = ssub.s32 1152, 1152
      %59 = vsyncadd [#allocation5], %s58
      %s60 = sshll.u32 [#allocation6], 4
      %s61 = int_to_ptr.vmem [resolvable:$true] %s60
      %66 = dma.hbm_to_vmem [thread:$0]  %s3, 1152, %s61, [#allocation5], 128, 128, 8
    $region17: #{_forward_impl.1} parent=1 // pred_fallthru
      _
    // Predicated region
    $region18: #{_forward_impl.1} parent=1 // pred_check
      _
    $region19: #{_forward_impl.1} parent=1 // pred_check_branch
      %68 = sbr.rel (0) target = $region21
    $region20: #{_forward_impl.1} parent=1 // pred_region
      %s70 = ssub.s32 36864, 36864
      %71 = vsyncadd [#allocation8], %s70
      %s72 = sshll.u32 [#allocation7], 4
      %s73 = int_to_ptr.vmem [resolvable:$true] %s72
      %78 = dma.hbm_to_vmem [thread:$0]  %s4, 36864, %s73, [#allocation8], 128, 128, 8
    $region21: #{_forward_impl.1} parent=1 // pred_fallthru
      _
    // Predicated region
    $region22: #{_forward_impl.1} parent=1 // pred_check
      _
    $region23: #{_forward_impl.1} parent=1 // pred_check_branch
      %80 = sbr.rel (0) target = $region25
    $region24: #{_forward_impl.1} parent=1 // pred_region
      %s82 = ssub.s32 128, 128
      %83 = vsyncadd [#allocation8], %s82
      %s85 = sshll.u32 [#allocation9], 4
      %s86 = int_to_ptr.vmem [resolvable:$true] %s85
      %88 = dma.hbm_to_vmem [thread:$0]  %s5, 128, %s86, [#allocation8]
    $region25: #{_forward_impl.1} parent=1 // pred_fallthru
      _
    // Predicated region
    $region26: #{_forward_impl.1} parent=1 // pred_check
      _
    $region27: #{_forward_impl.1} parent=1 // pred_check_branch
      %90 = sbr.rel (0) target = $region29
    $region28: #{_forward_impl.1} parent=1 // pred_region
      %s92 = ssub.s32 128, 128
      %93 = vsyncadd [#allocation11], %s92
      %s95 = sshll.u32 [#allocation10], 4
      %s96 = int_to_ptr.vmem [resolvable:$true] %s95
      %98 = dma.hbm_to_vmem [thread:$0]  %s6, 128, %s96, [#allocation11]
    $region29: #{_forward_impl.1} parent=1 // pred_fallthru
      _
    // Predicated region
    $region30: #{_forward_impl.1} parent=1 // pred_check
      _
    $region31: #{_forward_impl.1} parent=1 // pred_check_branch
      %100 = sbr.rel (0) target = $region33
    $region32: #{_forward_impl.1} parent=1 // pred_region
      %s102 = ssub.s32 4608, 4608
      %103 = vsyncadd [#allocation11], %s102
      %s104 = sshll.u32 [#allocation12], 4
      %s105 = int_to_ptr.vmem [resolvable:$true] %s104
      %110 = dma.hbm_to_vmem [thread:$0]  %s7, 4608, %s105, [#allocation11], 128, 128, 8
    $region33: #{_forward_impl.1} parent=1 // pred_fallthru
      _
    // Predicated region
    $region34: #{_forward_impl.1} parent=1 // pred_check
      _
    $region35: #{_forward_impl.1} parent=1 // pred_check_branch
      %112 = sbr.rel (0) target = $region37
    $region36: #{_forward_impl.1} parent=1 // pred_region
      %s114 = ssub.s32 1152, 1152
      %115 = vsyncadd [#allocation14], %s114
      %s116 = sshll.u32 [#allocation13], 4
      %s117 = int_to_ptr.vmem [resolvable:$true] %s116
      %122 = dma.hbm_to_vmem [thread:$0]  %s8, 1152, %s117, [#allocation14], 128, 128, 8
    $region37: #{_forward_impl.1} parent=1 // pred_fallthru
      _
    // Predicated region
    $region38: #{_forward_impl.1} parent=1 // pred_check
      _
    $region39: #{_forward_impl.1} parent=1 // pred_check_branch
      %124 = sbr.rel (0) target = $region41
    $region40: #{_forward_impl.1} parent=1 // pred_region
      %s126 = ssub.s32 16, 16
      %127 = vsyncadd [#allocation14], %s126
      %s129 = sshll.u32 [#allocation15], 4
      %s130 = int_to_ptr.vmem [resolvable:$true] %s129
      %132 = dma.hbm_to_vmem [thread:$0]  %s9, 16, %s130, [#allocation14]
    $region41: #{_forward_impl.1} parent=1 // pred_fallthru
      _
    // Predicated region
    $region42: #{_forward_impl.1} parent=1 // pred_check
      _
    $region43: #{_forward_impl.1} parent=1 // pred_check_branch
      %134 = sbr.rel (0) target = $region45
    $region44: #{_forward_impl.1} parent=1 // pred_region
      %s136 = ssub.s32 16, 16
      %137 = vsyncadd [#allocation17], %s136
      %s139 = sshll.u32 [#allocation16], 4
      %s140 = int_to_ptr.vmem [resolvable:$true] %s139
      %142 = dma.hbm_to_vmem [thread:$0]  %s10, 16, %s140, [#allocation17]
    $region45: #{_forward_impl.1} parent=1 // pred_fallthru
      _
    // Predicated region
    $region46: #{_forward_impl.1} parent=1 // pred_check
      _
    $region47: #{_forward_impl.1} parent=1 // pred_check_branch
      %144 = sbr.rel (0) target = $region49
    $region48: #{_forward_impl.1} parent=1 // pred_region
      %s146 = ssub.s32 1152, 1152
      %147 = vsyncadd [#allocation17], %s146
      %s148 = sshll.u32 [#allocation18], 4
      %s149 = int_to_ptr.vmem [resolvable:$true] %s148
      %154 = dma.hbm_to_vmem [thread:$0]  %s11, 1152, %s149, [#allocation17], 128, 128, 8
    $region49: #{_forward_impl.1} parent=1 // pred_fallthru
      _
    // Predicated region
    $region50: #{_forward_impl.1} parent=1 // pred_check
      _
    $region51: #{_forward_impl.1} parent=1 // pred_check_branch
      %156 = sbr.rel (0) target = $region53
    $region52: #{_forward_impl.1} parent=1 // pred_region
      %s158 = ssub.s32 2304, 2304
      %159 = vsyncadd [#allocation20], %s158
      %s160 = sshll.u32 [#allocation19], 4
      %s161 = int_to_ptr.vmem [resolvable:$true] %s160
      %166 = dma.hbm_to_vmem [thread:$0]  %s12, 2304, %s161, [#allocation20], 128, 128, 8
    $region53: #{_forward_impl.1} parent=1 // pred_fallthru
      _
    // Predicated region
    $region54: #{_forward_impl.1} parent=1 // pred_check
      _
    $region55: #{_forward_impl.1} parent=1 // pred_check_branch
      %168 = sbr.rel (0) target = $region57
    $region56: #{_forward_impl.1} parent=1 // pred_region
      %s170 = ssub.s32 16, 16
      %171 = vsyncadd [#allocation20], %s170
      %s173 = sshll.u32 [#allocation21], 4
      %s174 = int_to_ptr.vmem [resolvable:$true] %s173
      %176 = dma.hbm_to_vmem [thread:$0]  %s13, 16, %s174, [#allocation20]
    $region57: #{_forward_impl.1} parent=1 // pred_fallthru
      _
    // Predicated region
    $region58: #{_forward_impl.1} parent=1 // pred_check
      _
    $region59: #{_forward_impl.1} parent=1 // pred_check_branch
      %178 = sbr.rel (0) target = $region61
    $region60: #{_forward_impl.1} parent=1 // pred_region
      %s180 = ssub.s32 16, 16
      %181 = vsyncadd [#allocation23], %s180
      %s183 = sshll.u32 [#allocation22], 4
      %s184 = int_to_ptr.vmem [resolvable:$true] %s183
      %186 = dma.hbm_to_vmem [thread:$0]  %s14, 16, %s184, [#allocation23]
    $region61: #{_forward_impl.1} parent=1 // pred_fallthru
      _
    // Predicated region
    $region62: #{_forward_impl.1} parent=1 // pred_check
      _
    $region63: #{_forward_impl.1} parent=1 // pred_check_branch
      %188 = sbr.rel (0) target = $region65
    $region64: #{_forward_impl.1} parent=1 // pred_region
      %s190 = ssub.s32 2048, 2048
      %191 = vsyncadd [#allocation23], %s190
      %s192 = sshll.u32 [#allocation24], 4
      %s193 = int_to_ptr.vmem [resolvable:$true] %s192
      %198 = dma.hbm_to_vmem [thread:$0]  %s15, 2048, %s193, [#allocation23], 128, 128, 8
    $region65: #{_forward_impl.1} parent=1 // pred_fallthru
      _
    // Predicated region
    $region66: #{_forward_impl.1} parent=1 // pred_check
      _
    $region67: #{_forward_impl.1} parent=1 // pred_check_branch
      %200 = sbr.rel (0) target = $region69
    $region68: #{_forward_impl.1} parent=1 // pred_region
      %s202 = ssub.s32 16, 16
      %203 = vsyncadd [#allocation26], %s202
      %s205 = sshll.u32 [#allocation25], 4
      %s206 = int_to_ptr.vmem [resolvable:$true] %s205
      %208 = dma.hbm_to_vmem [thread:$0]  %s16, 16, %s206, [#allocation26]
    $region69: #{_forward_impl.1} parent=1 // pred_fallthru
      _
    // Predicated region
    $region70: #{_forward_impl.1} parent=1 // pred_check
      _
    $region71: #{_forward_impl.1} parent=1 // pred_check_branch
      %210 = sbr.rel (0) target = $region73
    $region72: #{_forward_impl.1} parent=1 // pred_region
      %211 = dma.done [#allocation3], 32
    $region73: #{_forward_impl.1} parent=1 // pred_fallthru
      _
    // Predicated region
    $region74: #{_forward_impl.1} parent=1 // pred_check
      _
    $region75: #{_forward_impl.1} parent=1 // pred_check_branch
      %213 = sbr.rel (0) target = $region77
    $region76: #{_forward_impl.1} parent=1 // pred_region
      %214 = dma.done [#allocation5], 1152
    $region77: #{_forward_impl.1} parent=1 // pred_fallthru
      _
    // Predicated region
    $region78: #{_forward_impl.1} parent=1 // pred_check
      _
    $region79: #{_forward_impl.1} parent=1 // pred_check_branch
      %216 = sbr.rel (0) target = $region81
    $region80: #{_forward_impl.1} parent=1 // pred_region
      %217 = dma.done [#allocation5], 1152
    $region81: #{_forward_impl.1} parent=1 // pred_fallthru
      _
    // Predicated region
    $region82: #{_forward_impl.1} parent=1 // pred_check
      _
    $region83: #{_forward_impl.1} parent=1 // pred_check_branch
      %219 = sbr.rel (0) target = $region85
    $region84: #{_forward_impl.1} parent=1 // pred_region
      %220 = dma.done [#allocation8], 36864
    $region85: #{_forward_impl.1} parent=1 // pred_fallthru
      _
    // Predicated region
    $region86: #{_forward_impl.1} parent=1 // pred_check
      _
    $region87: #{_forward_impl.1} parent=1 // pred_check_branch
      %222 = sbr.rel (0) target = $region89
    $region88: #{_forward_impl.1} parent=1 // pred_region
      %223 = dma.done [#allocation8], 128
    $region89: #{_forward_impl.1} parent=1 // pred_fallthru
      _
    // Predicated region
    $region90: #{_forward_impl.1} parent=1 // pred_check
      _
    $region91: #{_forward_impl.1} parent=1 // pred_check_branch
      %225 = sbr.rel (0) target = $region93
    $region92: #{_forward_impl.1} parent=1 // pred_region
      %226 = dma.done [#allocation11], 128
    $region93: #{_forward_impl.1} parent=1 // pred_fallthru
      _
    // Predicated region
    $region94: #{_forward_impl.1} parent=1 // pred_check
      _
    $region95: #{_forward_impl.1} parent=1 // pred_check_branch
      %228 = sbr.rel (0) target = $region97
    $region96: #{_forward_impl.1} parent=1 // pred_region
      %229 = dma.done [#allocation11], 4608
    $region97: #{_forward_impl.1} parent=1 // pred_fallthru
      _
    // Predicated region
    $region98: #{_forward_impl.1} parent=1 // pred_check
      _
    $region99: #{_forward_impl.1} parent=1 // pred_check_branch
      %231 = sbr.rel (0) target = $region101
    $region100: #{_forward_impl.1} parent=1 // pred_region
      %232 = dma.done [#allocation14], 1152
    $region101: #{_forward_impl.1} parent=1 // pred_fallthru
      _
    // Predicated region
    $region102: #{_forward_impl.1} parent=1 // pred_check
      _
    $region103: #{_forward_impl.1} parent=1 // pred_check_branch
      %234 = sbr.rel (0) target = $region105
    $region104: #{_forward_impl.1} parent=1 // pred_region
      %235 = dma.done [#allocation14], 16
    $region105: #{_forward_impl.1} parent=1 // pred_fallthru
      _
    // Predicated region
    $region106: #{_forward_impl.1} parent=1 // pred_check
      _
    $region107: #{_forward_impl.1} parent=1 // pred_check_branch
      %237 = sbr.rel (0) target = $region109
    $region108: #{_forward_impl.1} parent=1 // pred_region
      %238 = dma.done [#allocation17], 16
    $region109: #{_forward_impl.1} parent=1 // pred_fallthru
      _
    // Predicated region
    $region110: #{_forward_impl.1} parent=1 // pred_check
      _
    $region111: #{_forward_impl.1} parent=1 // pred_check_branch
      %240 = sbr.rel (0) target = $region113
    $region112: #{_forward_impl.1} parent=1 // pred_region
      %241 = dma.done [#allocation17], 1152
    $region113: #{_forward_impl.1} parent=1 // pred_fallthru
      _
    // Predicated region
    $region114: #{_forward_impl.1} parent=1 // pred_check
      _
    $region115: #{_forward_impl.1} parent=1 // pred_check_branch
      %243 = sbr.rel (0) target = $region117
    $region116: #{_forward_impl.1} parent=1 // pred_region
      %244 = dma.done [#allocation20], 2304
    $region117: #{_forward_impl.1} parent=1 // pred_fallthru
      _
    // Predicated region
    $region118: #{_forward_impl.1} parent=1 // pred_check
      _
    $region119: #{_forward_impl.1} parent=1 // pred_check_branch
      %246 = sbr.rel (0) target = $region121
    $region120: #{_forward_impl.1} parent=1 // pred_region
      %247 = dma.done [#allocation20], 16
    $region121: #{_forward_impl.1} parent=1 // pred_fallthru
      _
    // Predicated region
    $region122: #{_forward_impl.1} parent=1 // pred_check
      _
    $region123: #{_forward_impl.1} parent=1 // pred_check_branch
      %249 = sbr.rel (0) target = $region125
    $region124: #{_forward_impl.1} parent=1 // pred_region
      %250 = dma.done [#allocation23], 16
    $region125: #{_forward_impl.1} parent=1 // pred_fallthru
      _
    // Predicated region
    $region126: #{_forward_impl.1} parent=1 // pred_check
      _
    $region127: #{_forward_impl.1} parent=1 // pred_check_branch
      %252 = sbr.rel (0) target = $region129
    $region128: #{_forward_impl.1} parent=1 // pred_region
      %253 = dma.done [#allocation23], 2048
    $region129: #{_forward_impl.1} parent=1 // pred_fallthru
      _
    // Predicated region
    $region130: #{_forward_impl.1} parent=1 // pred_check
      _
    $region131: #{_forward_impl.1} parent=1 // pred_check_branch
      %255 = sbr.rel (0) target = $region133
    $region132: #{_forward_impl.1} parent=1 // pred_region
      %256 = dma.done [#allocation26], 16
    $region133: #{_forward_impl.1} parent=1 // pred_fallthru
      _
    %v257 = vld [vmem:[%s0] sm:$0x77]
    %v258 = vld [vmem:[%s0 + $0x8] sm:$0x77]
    %v259 = vld [vmem:[#allocation7] sm:$0xff]
    %v260 = vld [vmem:[#allocation7 + $0x8] sm:$0xff]
    %v261 = vld [vmem:[#allocation7 + $0x10] sm:$0xff]
    %v262 = vld [vmem:[#allocation7 + $0x18] sm:$0xff]
    %v263 = vld [vmem:[#allocation7 + $0x20] sm:$0xff]
    %v264 = vld [vmem:[#allocation7 + $0x28] sm:$0xff]
    %v265 = vld [vmem:[#allocation7 + $0x30] sm:$0xff]
    %v266 = vld [vmem:[#allocation7 + $0x38] sm:$0xff]
    %v267 = vld [vmem:[#allocation7 + $0x40] sm:$0xff]
    %v268 = vld [vmem:[#allocation7 + $0x48] sm:$0xff]
    %v269 = vld [vmem:[#allocation7 + $0x50] sm:$0xff]
    %v270 = vld [vmem:[#allocation7 + $0x58] sm:$0xff]
    %v271 = vld [vmem:[#allocation7 + $0x60] sm:$0xff]
    %v272 = vld [vmem:[#allocation7 + $0x68] sm:$0xff]
    %v273 = vld [vmem:[#allocation7 + $0x70] sm:$0xff]
    %v274 = vld [vmem:[#allocation7 + $0x78] sm:$0xff]
    %v275 = vld [vmem:[#allocation7 + $0x80] sm:$0xff]
    %v276 = vld [vmem:[#allocation7 + $0x88] sm:$0xff]
    %v277 = vld [vmem:[#allocation7 + $0x90] sm:$0xff]
    %v278 = vld [vmem:[#allocation7 + $0x98] sm:$0xff]
    %v279 = vld [vmem:[#allocation7 + $0xa0] sm:$0xff]
    %v280 = vld [vmem:[#allocation7 + $0xa8] sm:$0xff]
    %v281 = vld [vmem:[#allocation7 + $0xb0] sm:$0xff]
    %v282 = vld [vmem:[#allocation7 + $0xb8] sm:$0xff]
    %v283 = vld [vmem:[#allocation7 + $0xc0] sm:$0xff]
    %v284 = vld [vmem:[#allocation7 + $0xc8] sm:$0xff]
    %v285 = vld [vmem:[#allocation7 + $0xd0] sm:$0xff]
    %v286 = vld [vmem:[#allocation7 + $0xd8] sm:$0xff]
    %v287 = vld [vmem:[#allocation7 + $0xe0] sm:$0xff]
    %v288 = vld [vmem:[#allocation7 + $0xe8] sm:$0xff]
    %v289 = vld [vmem:[#allocation7 + $0xf0] sm:$0xff]
    %v290 = vld [vmem:[#allocation7 + $0xf8] sm:$0xff]
    %v291 = vld [vmem:[#allocation7 + $0x100] sm:$0xff]
    %v292 = vld [vmem:[#allocation7 + $0x108] sm:$0xff]
    %v293 = vld [vmem:[#allocation7 + $0x110] sm:$0xff]
    %v294 = vld [vmem:[#allocation7 + $0x118] sm:$0xff]
    %v295 = vld [vmem:[#allocation7 + $0x120] sm:$0xff]
    %v296 = vld [vmem:[#allocation7 + $0x128] sm:$0xff]
    %v297 = vld [vmem:[#allocation7 + $0x130] sm:$0xff]
    %v298 = vld [vmem:[#allocation7 + $0x138] sm:$0xff]
    %v299 = vld [vmem:[#allocation7 + $0x140] sm:$0xff]
    %v300 = vld [vmem:[#allocation7 + $0x148] sm:$0xff]
    %v301 = vld [vmem:[#allocation7 + $0x150] sm:$0xff]
    %v302 = vld [vmem:[#allocation7 + $0x158] sm:$0xff]
    %v303 = vld [vmem:[#allocation7 + $0x160] sm:$0xff]
    %v304 = vld [vmem:[#allocation7 + $0x168] sm:$0xff]
    %v305 = vld [vmem:[#allocation7 + $0x170] sm:$0xff]
    %v306 = vld [vmem:[#allocation7 + $0x178] sm:$0xff]
    %v307 = vld [vmem:[#allocation7 + $0x180] sm:$0xff]
    %v308 = vld [vmem:[#allocation7 + $0x188] sm:$0xff]
    %v309 = vld [vmem:[#allocation7 + $0x190] sm:$0xff]
    %v310 = vld [vmem:[#allocation7 + $0x198] sm:$0xff]
    %v311 = vld [vmem:[#allocation7 + $0x1a0] sm:$0xff]
    %v312 = vld [vmem:[#allocation7 + $0x1a8] sm:$0xff]
    %v313 = vld [vmem:[#allocation7 + $0x1b0] sm:$0xff]
    %v314 = vld [vmem:[#allocation7 + $0x1b8] sm:$0xff]
    %v315 = vld [vmem:[#allocation7 + $0x1c0] sm:$0xff]
    %v316 = vld [vmem:[#allocation7 + $0x1c8] sm:$0xff]
    %v317 = vld [vmem:[#allocation7 + $0x1d0] sm:$0xff]
    %v318 = vld [vmem:[#allocation7 + $0x1d8] sm:$0xff]
    %v319 = vld [vmem:[#allocation7 + $0x1e0] sm:$0xff]
    %v320 = vld [vmem:[#allocation7 + $0x1e8] sm:$0xff]
    %v321 = vld [vmem:[#allocation7 + $0x1f0] sm:$0xff]
    %v322 = vld [vmem:[#allocation7 + $0x1f8] sm:$0xff]
    %v323 = vld [vmem:[#allocation7 + $0x200] sm:$0xff]
    %v324 = vld [vmem:[#allocation7 + $0x208] sm:$0xff]
    %v325 = vld [vmem:[#allocation7 + $0x210] sm:$0xff]
    %v326 = vld [vmem:[#allocation7 + $0x218] sm:$0xff]
    %v327 = vld [vmem:[#allocation7 + $0x220] sm:$0xff]
    %v328 = vld [vmem:[#allocation7 + $0x228] sm:$0xff]
    %v329 = vld [vmem:[#allocation7 + $0x230] sm:$0xff]
    %v330 = vld [vmem:[#allocation7 + $0x238] sm:$0xff]
    %v331 = vld [vmem:[#allocation7 + $0x240] sm:$0xff]
    %v332 = vld [vmem:[#allocation7 + $0x248] sm:$0xff]
    %v333 = vld [vmem:[#allocation7 + $0x250] sm:$0xff]
    %v334 = vld [vmem:[#allocation7 + $0x258] sm:$0xff]
    %v335 = vld [vmem:[#allocation7 + $0x260] sm:$0xff]
    %v336 = vld [vmem:[#allocation7 + $0x268] sm:$0xff]
    %v337 = vld [vmem:[#allocation7 + $0x270] sm:$0xff]
    %v338 = vld [vmem:[#allocation7 + $0x278] sm:$0xff]
    %v339 = vld [vmem:[#allocation7 + $0x280] sm:$0xff]
    %v340 = vld [vmem:[#allocation7 + $0x288] sm:$0xff]
    %v341 = vld [vmem:[#allocation7 + $0x290] sm:$0xff]
    %v342 = vld [vmem:[#allocation7 + $0x298] sm:$0xff]
    %v343 = vld [vmem:[#allocation7 + $0x2a0] sm:$0xff]
    %v344 = vld [vmem:[#allocation7 + $0x2a8] sm:$0xff]
    %v345 = vld [vmem:[#allocation7 + $0x2b0] sm:$0xff]
    %v346 = vld [vmem:[#allocation7 + $0x2b8] sm:$0xff]
    %v347 = vld [vmem:[#allocation7 + $0x2c0] sm:$0xff]
    %v348 = vld [vmem:[#allocation7 + $0x2c8] sm:$0xff]
    %v349 = vld [vmem:[#allocation7 + $0x2d0] sm:$0xff]
    %v350 = vld [vmem:[#allocation7 + $0x2d8] sm:$0xff]
    %v351 = vld [vmem:[#allocation7 + $0x2e0] sm:$0xff]
    %v352 = vld [vmem:[#allocation7 + $0x2e8] sm:$0xff]
    %v353 = vld [vmem:[#allocation7 + $0x2f0] sm:$0xff]
    %v354 = vld [vmem:[#allocation7 + $0x2f8] sm:$0xff]
    %v355 = vld [vmem:[#allocation7 + $0x300] sm:$0xff]
    %v356 = vld [vmem:[#allocation7 + $0x308] sm:$0xff]
    %v357 = vld [vmem:[#allocation7 + $0x310] sm:$0xff]
    %v358 = vld [vmem:[#allocation7 + $0x318] sm:$0xff]
    %v359 = vld [vmem:[#allocation7 + $0x320] sm:$0xff]
    %v360 = vld [vmem:[#allocation7 + $0x328] sm:$0xff]
    %v361 = vld [vmem:[#allocation7 + $0x330] sm:$0xff]
    %v362 = vld [vmem:[#allocation7 + $0x338] sm:$0xff]
    %v363 = vld [vmem:[#allocation7 + $0x340] sm:$0xff]
    %v364 = vld [vmem:[#allocation7 + $0x348] sm:$0xff]
    %v365 = vld [vmem:[#allocation7 + $0x350] sm:$0xff]
    %v366 = vld [vmem:[#allocation7 + $0x358] sm:$0xff]
    %v367 = vld [vmem:[#allocation7 + $0x360] sm:$0xff]
    %v368 = vld [vmem:[#allocation7 + $0x368] sm:$0xff]
    %v369 = vld [vmem:[#allocation7 + $0x370] sm:$0xff]
    %v370 = vld [vmem:[#allocation7 + $0x378] sm:$0xff]
    %v371 = vld [vmem:[#allocation7 + $0x380] sm:$0xff]
    %v372 = vld [vmem:[#allocation7 + $0x388] sm:$0xff]
    %v373 = vld [vmem:[#allocation7 + $0x390] sm:$0xff]
    %v374 = vld [vmem:[#allocation7 + $0x398] sm:$0xff]
    %v375 = vld [vmem:[#allocation7 + $0x3a0] sm:$0xff]
    %v376 = vld [vmem:[#allocation7 + $0x3a8] sm:$0xff]
    %v377 = vld [vmem:[#allocation7 + $0x3b0] sm:$0xff]
    %v378 = vld [vmem:[#allocation7 + $0x3b8] sm:$0xff]
    %v379 = vld [vmem:[#allocation7 + $0x3c0] sm:$0xff]
    %v380 = vld [vmem:[#allocation7 + $0x3c8] sm:$0xff]
    %v381 = vld [vmem:[#allocation7 + $0x3d0] sm:$0xff]
    %v382 = vld [vmem:[#allocation7 + $0x3d8] sm:$0xff]
    %v383 = vld [vmem:[#allocation7 + $0x3e0] sm:$0xff]
    %v384 = vld [vmem:[#allocation7 + $0x3e8] sm:$0xff]
    %v385 = vld [vmem:[#allocation7 + $0x3f0] sm:$0xff]
    %v386 = vld [vmem:[#allocation7 + $0x3f8] sm:$0xff]
    %v387 = vld [vmem:[#allocation7 + $0x400] sm:$0xff]
    %v388 = vld [vmem:[#allocation7 + $0x408] sm:$0xff]
    %v389 = vld [vmem:[#allocation7 + $0x410] sm:$0xff]
    %v390 = vld [vmem:[#allocation7 + $0x418] sm:$0xff]
    %v391 = vld [vmem:[#allocation7 + $0x420] sm:$0xff]
    %v392 = vld [vmem:[#allocation7 + $0x428] sm:$0xff]
    %v393 = vld [vmem:[#allocation7 + $0x430] sm:$0xff]
    %v394 = vld [vmem:[#allocation7 + $0x438] sm:$0xff]
    %v395 = vld [vmem:[#allocation7 + $0x440] sm:$0xff]
    %v396 = vld [vmem:[#allocation7 + $0x448] sm:$0xff]
    %v397 = vld [vmem:[#allocation7 + $0x450] sm:$0xff]
    %v398 = vld [vmem:[#allocation7 + $0x458] sm:$0xff]
    %v399 = vld [vmem:[#allocation7 + $0x460] sm:$0xff]
    %v400 = vld [vmem:[#allocation7 + $0x468] sm:$0xff]
    %v401 = vld [vmem:[#allocation7 + $0x470] sm:$0xff]
    %v402 = vld [vmem:[#allocation7 + $0x478] sm:$0xff]
    %v403 = vld [vmem:[#allocation7 + $0x480] sm:$0xff]
    %v404 = vld [vmem:[#allocation7 + $0x488] sm:$0xff]
    %v405 = vld [vmem:[#allocation7 + $0x490] sm:$0xff]
    %v406 = vld [vmem:[#allocation7 + $0x498] sm:$0xff]
    %v407 = vld [vmem:[#allocation7 + $0x4a0] sm:$0xff]
    %v408 = vld [vmem:[#allocation7 + $0x4a8] sm:$0xff]
    %v409 = vld [vmem:[#allocation7 + $0x4b0] sm:$0xff]
    %v410 = vld [vmem:[#allocation7 + $0x4b8] sm:$0xff]
    %v411 = vld [vmem:[#allocation7 + $0x4c0] sm:$0xff]
    %v412 = vld [vmem:[#allocation7 + $0x4c8] sm:$0xff]
    %v413 = vld [vmem:[#allocation7 + $0x4d0] sm:$0xff]
    %v414 = vld [vmem:[#allocation7 + $0x4d8] sm:$0xff]
    %v415 = vld [vmem:[#allocation7 + $0x4e0] sm:$0xff]
    %v416 = vld [vmem:[#allocation7 + $0x4e8] sm:$0xff]
    %v417 = vld [vmem:[#allocation7 + $0x4f0] sm:$0xff]
    %v418 = vld [vmem:[#allocation7 + $0x4f8] sm:$0xff]
    %v419 = vld [vmem:[#allocation7 + $0x500] sm:$0xff]
    %v420 = vld [vmem:[#allocation7 + $0x508] sm:$0xff]
    %v421 = vld [vmem:[#allocation7 + $0x510] sm:$0xff]
    %v422 = vld [vmem:[#allocation7 + $0x518] sm:$0xff]
    %v423 = vld [vmem:[#allocation7 + $0x520] sm:$0xff]
    %v424 = vld [vmem:[#allocation7 + $0x528] sm:$0xff]
    %v425 = vld [vmem:[#allocation7 + $0x530] sm:$0xff]
    %v426 = vld [vmem:[#allocation7 + $0x538] sm:$0xff]
    %v427 = vld [vmem:[#allocation7 + $0x540] sm:$0xff]
    %v428 = vld [vmem:[#allocation7 + $0x548] sm:$0xff]
    %v429 = vld [vmem:[#allocation7 + $0x550] sm:$0xff]
    %v430 = vld [vmem:[#allocation7 + $0x558] sm:$0xff]
    %v431 = vld [vmem:[#allocation7 + $0x560] sm:$0xff]
    %v432 = vld [vmem:[#allocation7 + $0x568] sm:$0xff]
    %v433 = vld [vmem:[#allocation7 + $0x570] sm:$0xff]
    %v434 = vld [vmem:[#allocation7 + $0x578] sm:$0xff]
    %v435 = vld [vmem:[#allocation7 + $0x580] sm:$0xff]
    %v436 = vld [vmem:[#allocation7 + $0x588] sm:$0xff]
    %v437 = vld [vmem:[#allocation7 + $0x590] sm:$0xff]
    %v438 = vld [vmem:[#allocation7 + $0x598] sm:$0xff]
    %v439 = vld [vmem:[#allocation7 + $0x5a0] sm:$0xff]
    %v440 = vld [vmem:[#allocation7 + $0x5a8] sm:$0xff]
    %v441 = vld [vmem:[#allocation7 + $0x5b0] sm:$0xff]
    %v442 = vld [vmem:[#allocation7 + $0x5b8] sm:$0xff]
    %v443 = vld [vmem:[#allocation7 + $0x5c0] sm:$0xff]
    %v444 = vld [vmem:[#allocation7 + $0x5c8] sm:$0xff]
    %v445 = vld [vmem:[#allocation7 + $0x5d0] sm:$0xff]
    %v446 = vld [vmem:[#allocation7 + $0x5d8] sm:$0xff]
    %v447 = vld [vmem:[#allocation7 + $0x5e0] sm:$0xff]
    %v448 = vld [vmem:[#allocation7 + $0x5e8] sm:$0xff]
    %v449 = vld [vmem:[#allocation7 + $0x5f0] sm:$0xff]
    %v450 = vld [vmem:[#allocation7 + $0x5f8] sm:$0xff]
    %v451 = vld [vmem:[#allocation7 + $0x600] sm:$0xff]
    %v452 = vld [vmem:[#allocation7 + $0x608] sm:$0xff]
    %v453 = vld [vmem:[#allocation7 + $0x610] sm:$0xff]
    %v454 = vld [vmem:[#allocation7 + $0x618] sm:$0xff]
    %v455 = vld [vmem:[#allocation7 + $0x620] sm:$0xff]
    %v456 = vld [vmem:[#allocation7 + $0x628] sm:$0xff]
    %v457 = vld [vmem:[#allocation7 + $0x630] sm:$0xff]
    %v458 = vld [vmem:[#allocation7 + $0x638] sm:$0xff]
    %v459 = vld [vmem:[#allocation7 + $0x640] sm:$0xff]
    %v460 = vld [vmem:[#allocation7 + $0x648] sm:$0xff]
    %v461 = vld [vmem:[#allocation7 + $0x650] sm:$0xff]
    %v462 = vld [vmem:[#allocation7 + $0x658] sm:$0xff]
    %v463 = vld [vmem:[#allocation7 + $0x660] sm:$0xff]
    %v464 = vld [vmem:[#allocation7 + $0x668] sm:$0xff]
    %v465 = vld [vmem:[#allocation7 + $0x670] sm:$0xff]
    %v466 = vld [vmem:[#allocation7 + $0x678] sm:$0xff]
    %v467 = vld [vmem:[#allocation7 + $0x680] sm:$0xff]
    %v468 = vld [vmem:[#allocation7 + $0x688] sm:$0xff]
    %v469 = vld [vmem:[#allocation7 + $0x690] sm:$0xff]
    %v470 = vld [vmem:[#allocation7 + $0x698] sm:$0xff]
    %v471 = vld [vmem:[#allocation7 + $0x6a0] sm:$0xff]
    %v472 = vld [vmem:[#allocation7 + $0x6a8] sm:$0xff]
    %v473 = vld [vmem:[#allocation7 + $0x6b0] sm:$0xff]
    %v474 = vld [vmem:[#allocation7 + $0x6b8] sm:$0xff]
    %v475 = vld [vmem:[#allocation7 + $0x6c0] sm:$0xff]
    %v476 = vld [vmem:[#allocation7 + $0x6c8] sm:$0xff]
    %v477 = vld [vmem:[#allocation7 + $0x6d0] sm:$0xff]
    %v478 = vld [vmem:[#allocation7 + $0x6d8] sm:$0xff]
    %v479 = vld [vmem:[#allocation7 + $0x6e0] sm:$0xff]
    %v480 = vld [vmem:[#allocation7 + $0x6e8] sm:$0xff]
    %v481 = vld [vmem:[#allocation7 + $0x6f0] sm:$0xff]
    %v482 = vld [vmem:[#allocation7 + $0x6f8] sm:$0xff]
    %v483 = vld [vmem:[#allocation7 + $0x700] sm:$0xff]
    %v484 = vld [vmem:[#allocation7 + $0x708] sm:$0xff]
    %v485 = vld [vmem:[#allocation7 + $0x710] sm:$0xff]
    %v486 = vld [vmem:[#allocation7 + $0x718] sm:$0xff]
    %v487 = vld [vmem:[#allocation7 + $0x720] sm:$0xff]
    %v488 = vld [vmem:[#allocation7 + $0x728] sm:$0xff]
    %v489 = vld [vmem:[#allocation7 + $0x730] sm:$0xff]
    %v490 = vld [vmem:[#allocation7 + $0x738] sm:$0xff]
    %v491 = vld [vmem:[#allocation7 + $0x740] sm:$0xff]
    %v492 = vld [vmem:[#allocation7 + $0x748] sm:$0xff]
    %v493 = vld [vmem:[#allocation7 + $0x750] sm:$0xff]
    %v494 = vld [vmem:[#allocation7 + $0x758] sm:$0xff]
    %v495 = vld [vmem:[#allocation7 + $0x760] sm:$0xff]
    %v496 = vld [vmem:[#allocation7 + $0x768] sm:$0xff]
    %v497 = vld [vmem:[#allocation7 + $0x770] sm:$0xff]
    %v498 = vld [vmem:[#allocation7 + $0x778] sm:$0xff]
    %v499 = vld [vmem:[#allocation7 + $0x780] sm:$0xff]
    %v500 = vld [vmem:[#allocation7 + $0x788] sm:$0xff]
    %v501 = vld [vmem:[#allocation7 + $0x790] sm:$0xff]
    %v502 = vld [vmem:[#allocation7 + $0x798] sm:$0xff]
    %v503 = vld [vmem:[#allocation7 + $0x7a0] sm:$0xff]
    %v504 = vld [vmem:[#allocation7 + $0x7a8] sm:$0xff]
    %v505 = vld [vmem:[#allocation7 + $0x7b0] sm:$0xff]
    %v506 = vld [vmem:[#allocation7 + $0x7b8] sm:$0xff]
    %v507 = vld [vmem:[#allocation7 + $0x7c0] sm:$0xff]
    %v508 = vld [vmem:[#allocation7 + $0x7c8] sm:$0xff]
    %v509 = vld [vmem:[#allocation7 + $0x7d0] sm:$0xff]
    %v510 = vld [vmem:[#allocation7 + $0x7d8] sm:$0xff]
    %v511 = vld [vmem:[#allocation7 + $0x7e0] sm:$0xff]
    %v512 = vld [vmem:[#allocation7 + $0x7e8] sm:$0xff]
    %v513 = vld [vmem:[#allocation7 + $0x7f0] sm:$0xff]
    %v514 = vld [vmem:[#allocation7 + $0x7f8] sm:$0xff]
    %v515 = vld [vmem:[#allocation7 + $0x800] sm:$0xff]
    %v516 = vld [vmem:[#allocation7 + $0x808] sm:$0xff]
    %v517 = vld [vmem:[#allocation7 + $0x810] sm:$0xff]
    %v518 = vld [vmem:[#allocation7 + $0x818] sm:$0xff]
    %v519 = vld [vmem:[#allocation7 + $0x820] sm:$0xff]
    %v520 = vld [vmem:[#allocation7 + $0x828] sm:$0xff]
    %v521 = vld [vmem:[#allocation7 + $0x830] sm:$0xff]
    %v522 = vld [vmem:[#allocation7 + $0x838] sm:$0xff]
    %v523 = vld [vmem:[#allocation7 + $0x840] sm:$0xff]
    %v524 = vld [vmem:[#allocation7 + $0x848] sm:$0xff]
    %v525 = vld [vmem:[#allocation7 + $0x850] sm:$0xff]
    %v526 = vld [vmem:[#allocation7 + $0x858] sm:$0xff]
    %v527 = vld [vmem:[#allocation7 + $0x860] sm:$0xff]
    %v528 = vld [vmem:[#allocation7 + $0x868] sm:$0xff]
    %v529 = vld [vmem:[#allocation7 + $0x870] sm:$0xff]
    %v530 = vld [vmem:[#allocation7 + $0x878] sm:$0xff]
    %v531 = vld [vmem:[#allocation7 + $0x880] sm:$0xff]
    %v532 = vld [vmem:[#allocation7 + $0x888] sm:$0xff]
    %v533 = vld [vmem:[#allocation7 + $0x890] sm:$0xff]
    %v534 = vld [vmem:[#allocation7 + $0x898] sm:$0xff]
    %v535 = vld [vmem:[#allocation7 + $0x8a0] sm:$0xff]
    %v536 = vld [vmem:[#allocation7 + $0x8a8] sm:$0xff]
    %v537 = vld [vmem:[#allocation7 + $0x8b0] sm:$0xff]
    %v538 = vld [vmem:[#allocation7 + $0x8b8] sm:$0xff]
    %v539 = vld [vmem:[#allocation7 + $0x8c0] sm:$0xff]
    %v540 = vld [vmem:[#allocation7 + $0x8c8] sm:$0xff]
    %v541 = vld [vmem:[#allocation7 + $0x8d0] sm:$0xff]
    %v542 = vld [vmem:[#allocation7 + $0x8d8] sm:$0xff]
    %v543 = vld [vmem:[#allocation7 + $0x8e0] sm:$0xff]
    %v544 = vld [vmem:[#allocation7 + $0x8e8] sm:$0xff]
    %v545 = vld [vmem:[#allocation7 + $0x8f0] sm:$0xff]
    %v546 = vld [vmem:[#allocation7 + $0x8f8] sm:$0xff]
    %v547 = vld [vmem:[#allocation6] sm:$0xff]
    %v548 = vld [vmem:[#allocation6 + $0x8] sm:$0xff]
    %v549 = vld [vmem:[#allocation6 + $0x10] sm:$0xff]
    %v550 = vld [vmem:[#allocation6 + $0x18] sm:$0xff]
    %v551 = vld [vmem:[#allocation6 + $0x20] sm:$0xff]
    %v552 = vld [vmem:[#allocation6 + $0x28] sm:$0xff]
    %v553 = vld [vmem:[#allocation6 + $0x30] sm:$0xff]
    %v554 = vld [vmem:[#allocation6 + $0x38] sm:$0xff]
    %v555 = vld [vmem:[#allocation6 + $0x40] sm:$0xff]
    %v556 = vld [vmem:[#allocation2] sm:$0x3]
    %vm557 = vcmask 31744
    %v559 = vsel %vm557, %v547, 0
    %v562 = vsel %vm557, %v548, 0
    %v565 = vsel %vm557, %v549, 0
    %v568 = vsel %vm557, %v550, 0
    %v571 = vsel %vm557, %v551, 0
    %v574 = vsel %vm557, %v552, 0
    %v577 = vsel %vm557, %v553, 0
    %v580 = vsel %vm557, %v554, 0
    %v583 = vsel %vm557, %v555, 0
    %v586 = vsel %vm557, %v556, 0
    %588 = vmatprep.subr.mxu0 0.0
    %589 = vmatpush1.xpose.msra.mxu0 0.0
    %590 = vmatprep.subr.mxu0 0.0
    %591 = vmatpush1.xpose.msra.mxu0 0.0
    %592 = vmatprep.subr.mxu0 0.0
    %593 = vmatpush1.xpose.msra.mxu0 0.0
    %594 = vmatprep.subr.mxu0 0.0
    %595 = vmatpush1.xpose.msra.mxu0 0.0
    %596 = vmatprep.subr.mxu0 0.0
    %597 = vmatpush1.xpose.msra.mxu0 0.0
    %598 = vmatprep.subr.mxu0 0.0
    %599 = vmatpush1.xpose.msra.mxu0 0.0
    %600 = vmatprep.subr.mxu0 0.0
    %601 = vmatpush1.xpose.msra.mxu0 0.0
    %602 = vmatprep.subr.mxu0 0.0
    %603 = vmatpush1.xpose.msra.mxu0 0.0
    %604 = vmatprep.subr.mxu0 0.0
    %605 = vmatpush1.xpose.msra.mxu0 0.0
    %606 = vmatprep.subr.mxu0 0.0
    %607 = vmatpush1.xpose.msra.mxu0 0.0
    %608 = vmatprep.subr.mxu0 0.0
    %609 = vmatpush1.xpose.msra.mxu0 0.0
    %610 = vmatprep.subr.mxu0 0.0
    %611 = vmatpush1.xpose.msra.mxu0 0.0
    %612 = vmatprep.subr.mxu0 0.0
    %613 = vmatpush1.xpose.msra.mxu0 0.0
    %614 = vmatprep.subr.mxu0 0.0
    %615 = vmatpush1.xpose.msra.mxu0 0.0
    %616 = vmatprep.subr.mxu0 0.0
    %617 = vmatpush1.xpose.msra.mxu0 0.0
    %618 = vmatprep.subr.mxu0 0.0
    %619 = vmatpush1.xpose.msra.mxu0 %v586
    %620 = vmatprep.subr.mxu0 0.0
    %621 = vmatpush2.xpose.msra.mxu0 0.0
    %622 = vmatprep.subr.mxu0 0.0
    %623 = vmatpush2.xpose.msra.mxu0 0.0
    %624 = vmatprep.subr.mxu0 0.0
    %625 = vmatpush2.xpose.msra.mxu0 0.0
    %626 = vmatprep.subr.mxu0 0.0
    %627 = vmatpush2.xpose.msra.mxu0 0.0
    %628 = vmatprep.subr.mxu0 0.0
    %629 = vmatpush2.xpose.msra.mxu0 0.0
    %630 = vmatprep.subr.mxu0 0.0
    %631 = vmatpush2.xpose.msra.mxu0 0.0
    %632 = vmatprep.subr.mxu0 0.0
    %633 = vmatpush2.xpose.msra.mxu0 0.0
    %634 = vmatprep.subr.mxu0 0.0
    %635 = vmatpush2.xpose.msra.mxu0 0.0
    %636 = vmatprep.subr.mxu0 0.0
    %637 = vmatpush2.xpose.msra.mxu0 0.0
    %638 = vmatprep.subr.mxu0 0.0
    %639 = vmatpush2.xpose.msra.mxu0 0.0
    %640 = vmatprep.subr.mxu0 0.0
    %641 = vmatpush2.xpose.msra.mxu0 0.0
    %642 = vmatprep.subr.mxu0 0.0
    %643 = vmatpush2.xpose.msra.mxu0 0.0
    %644 = vmatprep.subr.mxu0 0.0
    %645 = vmatpush2.xpose.msra.mxu0 0.0
    %646 = vmatprep.subr.mxu0 0.0
    %647 = vmatpush2.xpose.msra.mxu0 0.0
    %648 = vmatprep.subr.mxu0 0.0
    %649 = vmatpush2.xpose.msra.mxu0 0.0
    %650 = vmatprep.subr.mxu0 0.0
    %651 = vmatpush2.xpose.msra.mxu0 0.0
    %652 = vmatprep.mubr.f32.mxu0 0.0
    %653 = vmatmul.mubr.f32.gmra.mxu0 %v559
    %v654 = vpop.f32.mrf.mxu0
    %v655 = vadd.f32 0.0, %v654
    %v656 = vpop.f32.mrf.mxu0
    %657 = vmatprep.mubr.f32.mxu0 0.0
    %658 = vmatmul.mubr.f32.gmra.mxu0 %v562
    %v659 = vpop.f32.mrf.mxu0
    %v660 = vadd.f32 0.0, %v659
    %v661 = vpop.f32.mrf.mxu0
    %662 = vmatprep.mubr.f32.mxu0 0.0
    %663 = vmatmul.mubr.f32.gmra.mxu0 %v565
    %v664 = vpop.f32.mrf.mxu0
    %v665 = vadd.f32 0.0, %v664
    %v666 = vpop.f32.mrf.mxu0
    %667 = vmatprep.mubr.f32.mxu0 0.0
    %668 = vmatmul.mubr.f32.gmra.mxu0 %v568
    %v669 = vpop.f32.mrf.mxu0
    %v670 = vadd.f32 0.0, %v669
    %v671 = vpop.f32.mrf.mxu0
    %672 = vmatprep.mubr.f32.mxu0 0.0
    %673 = vmatmul.mubr.f32.gmra.mxu0 %v571
    %v674 = vpop.f32.mrf.mxu0
    %v675 = vadd.f32 0.0, %v674
    %v676 = vpop.f32.mrf.mxu0
    %677 = vmatprep.mubr.f32.mxu0 0.0
    %678 = vmatmul.mubr.f32.gmra.mxu0 %v574
    %v679 = vpop.f32.mrf.mxu0
    %v680 = vadd.f32 0.0, %v679
    %v681 = vpop.f32.mrf.mxu0
    %682 = vmatprep.mubr.f32.mxu0 0.0
    %683 = vmatmul.mubr.f32.gmra.mxu0 %v577
    %v684 = vpop.f32.mrf.mxu0
    %v685 = vadd.f32 0.0, %v684
    %v686 = vpop.f32.mrf.mxu0
    %687 = vmatprep.mubr.f32.mxu0 0.0
    %688 = vmatmul.mubr.f32.gmra.mxu0 %v580
    %v689 = vpop.f32.mrf.mxu0
    %v690 = vadd.f32 0.0, %v689
    %v691 = vpop.f32.mrf.mxu0
    %692 = vmatprep.mubr.f32.mxu0 0.0
    %693 = vmatmul.mubr.f32.gmra.mxu0 %v583
    %v694 = vpop.f32.mrf.mxu0
    %v695 = vadd.f32 0.0, %v694
    %v696 = vpop.f32.mrf.mxu0
    %697 = vdwg.mxu0
    %v698 = vld [vmem:[#allocation4] sm:$0xff]
    %v699 = vld [vmem:[#allocation4 + $0x8] sm:$0xff]
    %v700 = vld [vmem:[#allocation4 + $0x10] sm:$0xff]
    %v701 = vld [vmem:[#allocation4 + $0x18] sm:$0xff]
    %v702 = vld [vmem:[#allocation4 + $0x20] sm:$0xff]
    %v703 = vld [vmem:[#allocation4 + $0x28] sm:$0xff]
    %v704 = vld [vmem:[#allocation4 + $0x30] sm:$0xff]
    %v705 = vld [vmem:[#allocation4 + $0x38] sm:$0xff]
    %v706 = vld [vmem:[#allocation4 + $0x40] sm:$0xff]
    %708 = vset.pattern.permute.xlu0 0
    %709 = vperm.xlu0 %708, %v655
    %v710 = vpop.permute.xlu0 %709
    %713 = vset.pattern.permute.xlu0 0
    %714 = vperm.xlu0 %713, %v660
    %v715 = vpop.permute.xlu0 %714
    %718 = vset.pattern.permute.xlu0 0
    %719 = vperm.xlu0 %718, %v665
    %v720 = vpop.permute.xlu0 %719
    %723 = vset.pattern.permute.xlu0 0
    %724 = vperm.xlu0 %723, %v670
    %v725 = vpop.permute.xlu0 %724
    %728 = vset.pattern.permute.xlu0 0
    %729 = vperm.xlu0 %728, %v675
    %v730 = vpop.permute.xlu0 %729
    %733 = vset.pattern.permute.xlu0 0
    %734 = vperm.xlu0 %733, %v680
    %v735 = vpop.permute.xlu0 %734
    %738 = vset.pattern.permute.xlu0 0
    %739 = vperm.xlu0 %738, %v685
    %v740 = vpop.permute.xlu0 %739
    %743 = vset.pattern.permute.xlu0 0
    %744 = vperm.xlu0 %743, %v690
    %v745 = vpop.permute.xlu0 %744
    %748 = vset.pattern.permute.xlu0 0
    %749 = vperm.xlu0 %748, %v695
    %v750 = vpop.permute.xlu0 %749
    %v753 = vcombine.high %v257, %v257
    %vm754 = vcmask 23552
    %v756 = vsel %vm754, %v698, 0
    %v759 = vsel %vm754, %v699, 0
    %v762 = vsel %vm754, %v700, 0
    %v765 = vsel %vm754, %v701, 0
    %v768 = vsel %vm754, %v702, 0
    %v771 = vsel %vm754, %v703, 0
    %v774 = vsel %vm754, %v704, 0
    %v777 = vsel %vm754, %v705, 0
    %v780 = vsel %vm754, %v706, 0
    %vm782 = vcmask 1042432
    %v783 = vsel %vm782, %v257, 0
    %v785 = vsel %vm782, %v753, 0
    %787 = vmatprep.subr.mxu0 0.0
    %788 = vmatpush1.msra.mxu0 0.0
    %789 = vmatprep.subr.mxu0 0.0
    %790 = vmatpush1.msra.mxu0 0.0
    %791 = vmatprep.subr.mxu0 0.0
    %792 = vmatpush1.msra.mxu0 0.0
    %793 = vmatprep.subr.mxu0 0.0
    %794 = vmatpush1.msra.mxu0 0.0
    %795 = vmatprep.subr.mxu0 0.0
    %796 = vmatpush1.msra.mxu0 0.0
    %797 = vmatprep.subr.mxu0 0.0
    %798 = vmatpush1.msra.mxu0 0.0
    %799 = vmatprep.subr.mxu0 0.0
    %800 = vmatpush1.msra.mxu0 0.0
    %801 = vmatprep.subr.mxu0 0.0
    %802 = vmatpush1.msra.mxu0 0.0
    %803 = vmatprep.subr.mxu0 0.0
    %804 = vmatpush1.msra.mxu0 0.0
    %805 = vmatprep.subr.mxu0 0.0
    %806 = vmatpush1.msra.mxu0 0.0
    %807 = vmatprep.subr.mxu0 0.0
    %808 = vmatpush1.msra.mxu0 0.0
    %809 = vmatprep.subr.mxu0 0.0
    %810 = vmatpush1.msra.mxu0 0.0
    %811 = vmatprep.subr.mxu0 0.0
    %812 = vmatpush1.msra.mxu0 0.0
    %813 = vmatprep.subr.mxu0 0.0
    %814 = vmatpush1.msra.mxu0 0.0
    %815 = vmatprep.subr.mxu0 0.0
    %816 = vmatpush1.msra.mxu0 0.0
    %817 = vmatprep.subr.mxu0 %v785
    %818 = vmatpush1.msra.mxu0 %v783
    %819 = vmatprep.subr.mxu0 0.0
    %820 = vmatpush2.msra.mxu0 0.0
    %821 = vmatprep.subr.mxu0 0.0
    %822 = vmatpush2.msra.mxu0 0.0
    %823 = vmatprep.subr.mxu0 0.0
    %824 = vmatpush2.msra.mxu0 0.0
    %825 = vmatprep.subr.mxu0 0.0
    %826 = vmatpush2.msra.mxu0 0.0
    %827 = vmatprep.subr.mxu0 0.0
    %828 = vmatpush2.msra.mxu0 0.0
    %829 = vmatprep.subr.mxu0 0.0
    %830 = vmatpush2.msra.mxu0 0.0
    %831 = vmatprep.subr.mxu0 0.0
    %832 = vmatpush2.msra.mxu0 0.0
    %833 = vmatprep.subr.mxu0 0.0
    %834 = vmatpush2.msra.mxu0 0.0
    %835 = vmatprep.subr.mxu0 0.0
    %836 = vmatpush2.msra.mxu0 0.0
    %837 = vmatprep.subr.mxu0 0.0
    %838 = vmatpush2.msra.mxu0 0.0
    %839 = vmatprep.subr.mxu0 0.0
    %840 = vmatpush2.msra.mxu0 0.0
    %841 = vmatprep.subr.mxu0 0.0
    %842 = vmatpush2.msra.mxu0 0.0
    %843 = vmatprep.subr.mxu0 0.0
    %844 = vmatpush2.msra.mxu0 0.0
    %845 = vmatprep.subr.mxu0 0.0
    %846 = vmatpush2.msra.mxu0 0.0
    %847 = vmatprep.subr.mxu0 0.0
    %848 = vmatpush2.msra.mxu0 0.0
    %849 = vmatprep.subr.mxu0 0.0
    %850 = vmatpush2.msra.mxu0 0.0
    %851 = vmatprep.mubr.f32.mxu0 0.0
    %852 = vmatmul.mubr.f32.gmra.mxu0 %v756
    %v853 = vpop.f32.mrf.mxu0
    %v854 = vadd.f32 %v710, %v853
    %v855 = vpop.f32.mrf.mxu0
    %v856 = vadd.f32 %v710, %v855
    %857 = vmatprep.mubr.f32.mxu0 0.0
    %858 = vmatmul.mubr.f32.gmra.mxu0 %v759
    %v859 = vpop.f32.mrf.mxu0
    %v860 = vadd.f32 %v715, %v859
    %v861 = vpop.f32.mrf.mxu0
    %v862 = vadd.f32 %v715, %v861
    %863 = vmatprep.mubr.f32.mxu0 0.0
    %864 = vmatmul.mubr.f32.gmra.mxu0 %v762
    %v865 = vpop.f32.mrf.mxu0
    %v866 = vadd.f32 %v720, %v865
    %v867 = vpop.f32.mrf.mxu0
    %v868 = vadd.f32 %v720, %v867
    %869 = vmatprep.mubr.f32.mxu0 0.0
    %870 = vmatmul.mubr.f32.gmra.mxu0 %v765
    %v871 = vpop.f32.mrf.mxu0
    %v872 = vadd.f32 %v725, %v871
    %v873 = vpop.f32.mrf.mxu0
    %v874 = vadd.f32 %v725, %v873
    %875 = vmatprep.mubr.f32.mxu0 0.0
    %876 = vmatmul.mubr.f32.gmra.mxu0 %v768
    %v877 = vpop.f32.mrf.mxu0
    %v878 = vadd.f32 %v730, %v877
    %v879 = vpop.f32.mrf.mxu0
    %v880 = vadd.f32 %v730, %v879
    %881 = vmatprep.mubr.f32.mxu0 0.0
    %882 = vmatmul.mubr.f32.gmra.mxu0 %v771
    %v883 = vpop.f32.mrf.mxu0
    %v884 = vadd.f32 %v735, %v883
    %v885 = vpop.f32.mrf.mxu0
    %v886 = vadd.f32 %v735, %v885
    %887 = vmatprep.mubr.f32.mxu0 0.0
    %888 = vmatmul.mubr.f32.gmra.mxu0 %v774
    %v889 = vpop.f32.mrf.mxu0
    %v890 = vadd.f32 %v740, %v889
    %v891 = vpop.f32.mrf.mxu0
    %v892 = vadd.f32 %v740, %v891
    %893 = vmatprep.mubr.f32.mxu0 0.0
    %894 = vmatmul.mubr.f32.gmra.mxu0 %v777
    %v895 = vpop.f32.mrf.mxu0
    %v896 = vadd.f32 %v745, %v895
    %v897 = vpop.f32.mrf.mxu0
    %v898 = vadd.f32 %v745, %v897
    %899 = vmatprep.mubr.f32.mxu0 0.0
    %900 = vmatmul.mubr.f32.gmra.mxu0 %v780
    %v901 = vpop.f32.mrf.mxu0
    %v902 = vadd.f32 %v750, %v901
    %v903 = vpop.f32.mrf.mxu0
    %v904 = vadd.f32 %v750, %v903
    %905 = vdwg.mxu0
    %906 = vmatprep.subr.mxu0 0.0
    %907 = vmatpush1.msra.mxu0 %v274
    %908 = vmatprep.subr.mxu0 0.0
    %909 = vmatpush1.msra.mxu0 %v273
    %910 = vmatprep.subr.mxu0 0.0
    %911 = vmatpush1.msra.mxu0 %v272
    %912 = vmatprep.subr.mxu0 0.0
    %913 = vmatpush1.msra.mxu0 %v271
    %914 = vmatprep.subr.mxu0 0.0
    %915 = vmatpush1.msra.mxu0 %v270
    %916 = vmatprep.subr.mxu0 0.0
    %917 = vmatpush1.msra.mxu0 %v269
    %918 = vmatprep.subr.mxu0 0.0
    %919 = vmatpush1.msra.mxu0 %v268
    %920 = vmatprep.subr.mxu0 0.0
    %921 = vmatpush1.msra.mxu0 %v267
    %922 = vmatprep.subr.mxu0 0.0
    %923 = vmatpush1.msra.mxu0 %v266
    %924 = vmatprep.subr.mxu0 0.0
    %925 = vmatpush1.msra.mxu0 %v265
    %926 = vmatprep.subr.mxu0 0.0
    %927 = vmatpush1.msra.mxu0 %v264
    %928 = vmatprep.subr.mxu0 0.0
    %929 = vmatpush1.msra.mxu0 %v263
    %930 = vmatprep.subr.mxu0 0.0
    %931 = vmatpush1.msra.mxu0 %v262
    %932 = vmatprep.subr.mxu0 0.0
    %933 = vmatpush1.msra.mxu0 %v261
    %934 = vmatprep.subr.mxu0 0.0
    %935 = vmatpush1.msra.mxu0 %v260
    %936 = vmatprep.subr.mxu0 0.0
    %937 = vmatpush1.msra.mxu0 %v259
    %938 = vmatprep.subr.mxu0 0.0
    %939 = vmatpush2.msra.mxu0 %v290
    %940 = vmatprep.subr.mxu0 0.0
    %941 = vmatpush2.msra.mxu0 %v289
    %942 = vmatprep.subr.mxu0 0.0
    %943 = vmatpush2.msra.mxu0 %v288
    %944 = vmatprep.subr.mxu0 0.0
    %945 = vmatpush2.msra.mxu0 %v287
    %946 = vmatprep.subr.mxu0 0.0
    %947 = vmatpush2.msra.mxu0 %v286
    %948 = vmatprep.subr.mxu0 0.0
    %949 = vmatpush2.msra.mxu0 %v285
    %950 = vmatprep.subr.mxu0 0.0
    %951 = vmatpush2.msra.mxu0 %v284
    %952 = vmatprep.subr.mxu0 0.0
    %953 = vmatpush2.msra.mxu0 %v283
    %954 = vmatprep.subr.mxu0 0.0
    %955 = vmatpush2.msra.mxu0 %v282
    %956 = vmatprep.subr.mxu0 0.0
    %957 = vmatpush2.msra.mxu0 %v281
    %958 = vmatprep.subr.mxu0 0.0
    %959 = vmatpush2.msra.mxu0 %v280
    %960 = vmatprep.subr.mxu0 0.0
    %961 = vmatpush2.msra.mxu0 %v279
    %962 = vmatprep.subr.mxu0 0.0
    %963 = vmatpush2.msra.mxu0 %v278
    %964 = vmatprep.subr.mxu0 0.0
    %965 = vmatpush2.msra.mxu0 %v277
    %966 = vmatprep.subr.mxu0 0.0
    %967 = vmatpush2.msra.mxu0 %v276
    %968 = vmatprep.subr.mxu0 0.0
    %969 = vmatpush2.msra.mxu0 %v275
    %970 = vmatprep.mubr.f32.mxu0 %v856
    %971 = vmatmul.mubr.f32.gmra.mxu0 %v854
    %v972 = vpop.f32.mrf.mxu0
    %v973 = vadd.f32 0.0, %v972
    %v974 = vpop.f32.mrf.mxu0
    %975 = vdwg.mxu0
    %976 = vmatprep.subr.mxu0 0.0
    %977 = vmatpush1.msra.mxu0 %v306
    %978 = vmatprep.subr.mxu0 0.0
    %979 = vmatpush1.msra.mxu0 %v305
    %980 = vmatprep.subr.mxu0 0.0
    %981 = vmatpush1.msra.mxu0 %v304
    %982 = vmatprep.subr.mxu0 0.0
    %983 = vmatpush1.msra.mxu0 %v303
    %984 = vmatprep.subr.mxu0 0.0
    %985 = vmatpush1.msra.mxu0 %v302
    %986 = vmatprep.subr.mxu0 0.0
    %987 = vmatpush1.msra.mxu0 %v301
    %988 = vmatprep.subr.mxu0 0.0
    %989 = vmatpush1.msra.mxu0 %v300
    %990 = vmatprep.subr.mxu0 0.0
    %991 = vmatpush1.msra.mxu0 %v299
    %992 = vmatprep.subr.mxu0 0.0
    %993 = vmatpush1.msra.mxu0 %v298
    %994 = vmatprep.subr.mxu0 0.0
    %995 = vmatpush1.msra.mxu0 %v297
    %996 = vmatprep.subr.mxu0 0.0
    %997 = vmatpush1.msra.mxu0 %v296
    %998 = vmatprep.subr.mxu0 0.0
    %999 = vmatpush1.msra.mxu0 %v295
    %1000 = vmatprep.subr.mxu0 0.0
    %1001 = vmatpush1.msra.mxu0 %v294
    %1002 = vmatprep.subr.mxu0 0.0
    %1003 = vmatpush1.msra.mxu0 %v293
    %1004 = vmatprep.subr.mxu0 0.0
    %1005 = vmatpush1.msra.mxu0 %v292
    %1006 = vmatprep.subr.mxu0 0.0
    %1007 = vmatpush1.msra.mxu0 %v291
    %1008 = vmatprep.subr.mxu0 0.0
    %1009 = vmatpush2.msra.mxu0 %v322
    %1010 = vmatprep.subr.mxu0 0.0
    %1011 = vmatpush2.msra.mxu0 %v321
    %1012 = vmatprep.subr.mxu0 0.0
    %1013 = vmatpush2.msra.mxu0 %v320
    %1014 = vmatprep.subr.mxu0 0.0
    %1015 = vmatpush2.msra.mxu0 %v319
    %1016 = vmatprep.subr.mxu0 0.0
    %1017 = vmatpush2.msra.mxu0 %v318
    %1018 = vmatprep.subr.mxu0 0.0
    %1019 = vmatpush2.msra.mxu0 %v317
    %1020 = vmatprep.subr.mxu0 0.0
    %1021 = vmatpush2.msra.mxu0 %v316
    %1022 = vmatprep.subr.mxu0 0.0
    %1023 = vmatpush2.msra.mxu0 %v315
    %1024 = vmatprep.subr.mxu0 0.0
    %1025 = vmatpush2.msra.mxu0 %v314
    %1026 = vmatprep.subr.mxu0 0.0
    %1027 = vmatpush2.msra.mxu0 %v313
    %1028 = vmatprep.subr.mxu0 0.0
    %1029 = vmatpush2.msra.mxu0 %v312
    %1030 = vmatprep.subr.mxu0 0.0
    %1031 = vmatpush2.msra.mxu0 %v311
    %1032 = vmatprep.subr.mxu0 0.0
    %1033 = vmatpush2.msra.mxu0 %v310
    %1034 = vmatprep.subr.mxu0 0.0
    %1035 = vmatpush2.msra.mxu0 %v309
    %1036 = vmatprep.subr.mxu0 0.0
    %1037 = vmatpush2.msra.mxu0 %v308
    %1038 = vmatprep.subr.mxu0 0.0
    %1039 = vmatpush2.msra.mxu0 %v307
    %1040 = vmatprep.mubr.f32.mxu0 %v862
    %1041 = vmatmul.mubr.f32.gmra.mxu0 %v860
    %v1042 = vpop.f32.mrf.mxu0
    %v1043 = vadd.f32 0.0, %v1042
    %v1044 = vpop.f32.mrf.mxu0
    %1045 = vdwg.mxu0
    %1046 = vmatprep.subr.mxu0 0.0
    %1047 = vmatpush1.msra.mxu0 %v338
    %1048 = vmatprep.subr.mxu0 0.0
    %1049 = vmatpush1.msra.mxu0 %v337
    %1050 = vmatprep.subr.mxu0 0.0
    %1051 = vmatpush1.msra.mxu0 %v336
    %1052 = vmatprep.subr.mxu0 0.0
    %1053 = vmatpush1.msra.mxu0 %v335
    %1054 = vmatprep.subr.mxu0 0.0
    %1055 = vmatpush1.msra.mxu0 %v334
    %1056 = vmatprep.subr.mxu0 0.0
    %1057 = vmatpush1.msra.mxu0 %v333
    %1058 = vmatprep.subr.mxu0 0.0
    %1059 = vmatpush1.msra.mxu0 %v332
    %1060 = vmatprep.subr.mxu0 0.0
    %1061 = vmatpush1.msra.mxu0 %v331
    %1062 = vmatprep.subr.mxu0 0.0
    %1063 = vmatpush1.msra.mxu0 %v330
    %1064 = vmatprep.subr.mxu0 0.0
    %1065 = vmatpush1.msra.mxu0 %v329
    %1066 = vmatprep.subr.mxu0 0.0
    %1067 = vmatpush1.msra.mxu0 %v328
    %1068 = vmatprep.subr.mxu0 0.0
    %1069 = vmatpush1.msra.mxu0 %v327
    %1070 = vmatprep.subr.mxu0 0.0
    %1071 = vmatpush1.msra.mxu0 %v326
    %1072 = vmatprep.subr.mxu0 0.0
    %1073 = vmatpush1.msra.mxu0 %v325
    %1074 = vmatprep.subr.mxu0 0.0
    %1075 = vmatpush1.msra.mxu0 %v324
    %1076 = vmatprep.subr.mxu0 0.0
    %1077 = vmatpush1.msra.mxu0 %v323
    %1078 = vmatprep.subr.mxu0 0.0
    %1079 = vmatpush2.msra.mxu0 %v354
    %1080 = vmatprep.subr.mxu0 0.0
    %1081 = vmatpush2.msra.mxu0 %v353
    %1082 = vmatprep.subr.mxu0 0.0
    %1083 = vmatpush2.msra.mxu0 %v352
    %1084 = vmatprep.subr.mxu0 0.0
    %1085 = vmatpush2.msra.mxu0 %v351
    %1086 = vmatprep.subr.mxu0 0.0
    %1087 = vmatpush2.msra.mxu0 %v350
    %1088 = vmatprep.subr.mxu0 0.0
    %1089 = vmatpush2.msra.mxu0 %v349
    %1090 = vmatprep.subr.mxu0 0.0
    %1091 = vmatpush2.msra.mxu0 %v348
    %1092 = vmatprep.subr.mxu0 0.0
    %1093 = vmatpush2.msra.mxu0 %v347
    %1094 = vmatprep.subr.mxu0 0.0
    %1095 = vmatpush2.msra.mxu0 %v346
    %1096 = vmatprep.subr.mxu0 0.0
    %1097 = vmatpush2.msra.mxu0 %v345
    %1098 = vmatprep.subr.mxu0 0.0
    %1099 = vmatpush2.msra.mxu0 %v344
    %1100 = vmatprep.subr.mxu0 0.0
    %1101 = vmatpush2.msra.mxu0 %v343
    %1102 = vmatprep.subr.mxu0 0.0
    %1103 = vmatpush2.msra.mxu0 %v342
    %1104 = vmatprep.subr.mxu0 0.0
    %1105 = vmatpush2.msra.mxu0 %v341
    %1106 = vmatprep.subr.mxu0 0.0
    %1107 = vmatpush2.msra.mxu0 %v340
    %1108 = vmatprep.subr.mxu0 0.0
    %1109 = vmatpush2.msra.mxu0 %v339
    %1110 = vmatprep.mubr.f32.mxu0 %v868
    %1111 = vmatmul.mubr.f32.gmra.mxu0 %v866
    %v1112 = vpop.f32.mrf.mxu0
    %v1113 = vadd.f32 0.0, %v1112
    %v1114 = vpop.f32.mrf.mxu0
    %1115 = vdwg.mxu0
    %1116 = vmatprep.subr.mxu0 0.0
    %1117 = vmatpush1.msra.mxu0 %v370
    %1118 = vmatprep.subr.mxu0 0.0
    %1119 = vmatpush1.msra.mxu0 %v369
    %1120 = vmatprep.subr.mxu0 0.0
    %1121 = vmatpush1.msra.mxu0 %v368
    %1122 = vmatprep.subr.mxu0 0.0
    %1123 = vmatpush1.msra.mxu0 %v367
    %1124 = vmatprep.subr.mxu0 0.0
    %1125 = vmatpush1.msra.mxu0 %v366
    %1126 = vmatprep.subr.mxu0 0.0
    %1127 = vmatpush1.msra.mxu0 %v365
    %1128 = vmatprep.subr.mxu0 0.0
    %1129 = vmatpush1.msra.mxu0 %v364
    %1130 = vmatprep.subr.mxu0 0.0
    %1131 = vmatpush1.msra.mxu0 %v363
    %1132 = vmatprep.subr.mxu0 0.0
    %1133 = vmatpush1.msra.mxu0 %v362
    %1134 = vmatprep.subr.mxu0 0.0
    %1135 = vmatpush1.msra.mxu0 %v361
    %1136 = vmatprep.subr.mxu0 0.0
    %1137 = vmatpush1.msra.mxu0 %v360
    %1138 = vmatprep.subr.mxu0 0.0
    %1139 = vmatpush1.msra.mxu0 %v359
    %1140 = vmatprep.subr.mxu0 0.0
    %1141 = vmatpush1.msra.mxu0 %v358
    %1142 = vmatprep.subr.mxu0 0.0
    %1143 = vmatpush1.msra.mxu0 %v357
    %1144 = vmatprep.subr.mxu0 0.0
    %1145 = vmatpush1.msra.mxu0 %v356
    %1146 = vmatprep.subr.mxu0 0.0
    %1147 = vmatpush1.msra.mxu0 %v355
    %1148 = vmatprep.subr.mxu0 0.0
    %1149 = vmatpush2.msra.mxu0 %v386
    %1150 = vmatprep.subr.mxu0 0.0
    %1151 = vmatpush2.msra.mxu0 %v385
    %1152 = vmatprep.subr.mxu0 0.0
    %1153 = vmatpush2.msra.mxu0 %v384
    %1154 = vmatprep.subr.mxu0 0.0
    %1155 = vmatpush2.msra.mxu0 %v383
    %1156 = vmatprep.subr.mxu0 0.0
    %1157 = vmatpush2.msra.mxu0 %v382
    %1158 = vmatprep.subr.mxu0 0.0
    %1159 = vmatpush2.msra.mxu0 %v381
    %1160 = vmatprep.subr.mxu0 0.0
    %1161 = vmatpush2.msra.mxu0 %v380
    %1162 = vmatprep.subr.mxu0 0.0
    %1163 = vmatpush2.msra.mxu0 %v379
    %1164 = vmatprep.subr.mxu0 0.0
    %1165 = vmatpush2.msra.mxu0 %v378
    %1166 = vmatprep.subr.mxu0 0.0
    %1167 = vmatpush2.msra.mxu0 %v377
    %1168 = vmatprep.subr.mxu0 0.0
    %1169 = vmatpush2.msra.mxu0 %v376
    %1170 = vmatprep.subr.mxu0 0.0
    %1171 = vmatpush2.msra.mxu0 %v375
    %1172 = vmatprep.subr.mxu0 0.0
    %1173 = vmatpush2.msra.mxu0 %v374
    %1174 = vmatprep.subr.mxu0 0.0
    %1175 = vmatpush2.msra.mxu0 %v373
    %1176 = vmatprep.subr.mxu0 0.0
    %1177 = vmatpush2.msra.mxu0 %v372
    %1178 = vmatprep.subr.mxu0 0.0
    %1179 = vmatpush2.msra.mxu0 %v371
    %1180 = vmatprep.mubr.f32.mxu0 %v874
    %1181 = vmatmul.mubr.f32.gmra.mxu0 %v872
    %v1182 = vpop.f32.mrf.mxu0
    %v1183 = vadd.f32 0.0, %v1182
    %v1184 = vpop.f32.mrf.mxu0
    %1185 = vdwg.mxu0
    %1186 = vmatprep.subr.mxu0 0.0
    %1187 = vmatpush1.msra.mxu0 %v402
    %1188 = vmatprep.subr.mxu0 0.0
    %1189 = vmatpush1.msra.mxu0 %v401
    %1190 = vmatprep.subr.mxu0 0.0
    %1191 = vmatpush1.msra.mxu0 %v400
    %1192 = vmatprep.subr.mxu0 0.0
    %1193 = vmatpush1.msra.mxu0 %v399
    %1194 = vmatprep.subr.mxu0 0.0
    %1195 = vmatpush1.msra.mxu0 %v398
    %1196 = vmatprep.subr.mxu0 0.0
    %1197 = vmatpush1.msra.mxu0 %v397
    %1198 = vmatprep.subr.mxu0 0.0
    %1199 = vmatpush1.msra.mxu0 %v396
    %1200 = vmatprep.subr.mxu0 0.0
    %1201 = vmatpush1.msra.mxu0 %v395
    %1202 = vmatprep.subr.mxu0 0.0
    %1203 = vmatpush1.msra.mxu0 %v394
    %1204 = vmatprep.subr.mxu0 0.0
    %1205 = vmatpush1.msra.mxu0 %v393
    %1206 = vmatprep.subr.mxu0 0.0
    %1207 = vmatpush1.msra.mxu0 %v392
    %1208 = vmatprep.subr.mxu0 0.0
    %1209 = vmatpush1.msra.mxu0 %v391
    %1210 = vmatprep.subr.mxu0 0.0
    %1211 = vmatpush1.msra.mxu0 %v390
    %1212 = vmatprep.subr.mxu0 0.0
    %1213 = vmatpush1.msra.mxu0 %v389
    %1214 = vmatprep.subr.mxu0 0.0
    %1215 = vmatpush1.msra.mxu0 %v388
    %1216 = vmatprep.subr.mxu0 0.0
    %1217 = vmatpush1.msra.mxu0 %v387
    %1218 = vmatprep.subr.mxu0 0.0
    %1219 = vmatpush2.msra.mxu0 %v418
    %1220 = vmatprep.subr.mxu0 0.0
    %1221 = vmatpush2.msra.mxu0 %v417
    %1222 = vmatprep.subr.mxu0 0.0
    %1223 = vmatpush2.msra.mxu0 %v416
    %1224 = vmatprep.subr.mxu0 0.0
    %1225 = vmatpush2.msra.mxu0 %v415
    %1226 = vmatprep.subr.mxu0 0.0
    %1227 = vmatpush2.msra.mxu0 %v414
    %1228 = vmatprep.subr.mxu0 0.0
    %1229 = vmatpush2.msra.mxu0 %v413
    %1230 = vmatprep.subr.mxu0 0.0
    %1231 = vmatpush2.msra.mxu0 %v412
    %1232 = vmatprep.subr.mxu0 0.0
    %1233 = vmatpush2.msra.mxu0 %v411
    %1234 = vmatprep.subr.mxu0 0.0
    %1235 = vmatpush2.msra.mxu0 %v410
    %1236 = vmatprep.subr.mxu0 0.0
    %1237 = vmatpush2.msra.mxu0 %v409
    %1238 = vmatprep.subr.mxu0 0.0
    %1239 = vmatpush2.msra.mxu0 %v408
    %1240 = vmatprep.subr.mxu0 0.0
    %1241 = vmatpush2.msra.mxu0 %v407
    %1242 = vmatprep.subr.mxu0 0.0
    %1243 = vmatpush2.msra.mxu0 %v406
    %1244 = vmatprep.subr.mxu0 0.0
    %1245 = vmatpush2.msra.mxu0 %v405
    %1246 = vmatprep.subr.mxu0 0.0
    %1247 = vmatpush2.msra.mxu0 %v404
    %1248 = vmatprep.subr.mxu0 0.0
    %1249 = vmatpush2.msra.mxu0 %v403
    %1250 = vmatprep.mubr.f32.mxu0 %v880
    %1251 = vmatmul.mubr.f32.gmra.mxu0 %v878
    %v1252 = vpop.f32.mrf.mxu0
    %v1253 = vadd.f32 0.0, %v1252
    %v1254 = vpop.f32.mrf.mxu0
    %1255 = vdwg.mxu0
    %1256 = vmatprep.subr.mxu0 0.0
    %1257 = vmatpush1.msra.mxu0 %v434
    %1258 = vmatprep.subr.mxu0 0.0
    %1259 = vmatpush1.msra.mxu0 %v433
    %1260 = vmatprep.subr.mxu0 0.0
    %1261 = vmatpush1.msra.mxu0 %v432
    %1262 = vmatprep.subr.mxu0 0.0
    %1263 = vmatpush1.msra.mxu0 %v431
    %1264 = vmatprep.subr.mxu0 0.0
    %1265 = vmatpush1.msra.mxu0 %v430
    %1266 = vmatprep.subr.mxu0 0.0
    %1267 = vmatpush1.msra.mxu0 %v429
    %1268 = vmatprep.subr.mxu0 0.0
    %1269 = vmatpush1.msra.mxu0 %v428
    %1270 = vmatprep.subr.mxu0 0.0
    %1271 = vmatpush1.msra.mxu0 %v427
    %1272 = vmatprep.subr.mxu0 0.0
    %1273 = vmatpush1.msra.mxu0 %v426
    %1274 = vmatprep.subr.mxu0 0.0
    %1275 = vmatpush1.msra.mxu0 %v425
    %1276 = vmatprep.subr.mxu0 0.0
    %1277 = vmatpush1.msra.mxu0 %v424
    %1278 = vmatprep.subr.mxu0 0.0
    %1279 = vmatpush1.msra.mxu0 %v423
    %1280 = vmatprep.subr.mxu0 0.0
    %1281 = vmatpush1.msra.mxu0 %v422
    %1282 = vmatprep.subr.mxu0 0.0
    %1283 = vmatpush1.msra.mxu0 %v421
    %1284 = vmatprep.subr.mxu0 0.0
    %1285 = vmatpush1.msra.mxu0 %v420
    %1286 = vmatprep.subr.mxu0 0.0
    %1287 = vmatpush1.msra.mxu0 %v419
    %1288 = vmatprep.subr.mxu0 0.0
    %1289 = vmatpush2.msra.mxu0 %v450
    %1290 = vmatprep.subr.mxu0 0.0
    %1291 = vmatpush2.msra.mxu0 %v449
    %1292 = vmatprep.subr.mxu0 0.0
    %1293 = vmatpush2.msra.mxu0 %v448
    %1294 = vmatprep.subr.mxu0 0.0
    %1295 = vmatpush2.msra.mxu0 %v447
    %1296 = vmatprep.subr.mxu0 0.0
    %1297 = vmatpush2.msra.mxu0 %v446
    %1298 = vmatprep.subr.mxu0 0.0
    %1299 = vmatpush2.msra.mxu0 %v445
    %1300 = vmatprep.subr.mxu0 0.0
    %1301 = vmatpush2.msra.mxu0 %v444
    %1302 = vmatprep.subr.mxu0 0.0
    %1303 = vmatpush2.msra.mxu0 %v443
    %1304 = vmatprep.subr.mxu0 0.0
    %1305 = vmatpush2.msra.mxu0 %v442
    %1306 = vmatprep.subr.mxu0 0.0
    %1307 = vmatpush2.msra.mxu0 %v441
    %1308 = vmatprep.subr.mxu0 0.0
    %1309 = vmatpush2.msra.mxu0 %v440
    %1310 = vmatprep.subr.mxu0 0.0
    %1311 = vmatpush2.msra.mxu0 %v439
    %1312 = vmatprep.subr.mxu0 0.0
    %1313 = vmatpush2.msra.mxu0 %v438
    %1314 = vmatprep.subr.mxu0 0.0
    %1315 = vmatpush2.msra.mxu0 %v437
    %1316 = vmatprep.subr.mxu0 0.0
    %1317 = vmatpush2.msra.mxu0 %v436
    %1318 = vmatprep.subr.mxu0 0.0
    %1319 = vmatpush2.msra.mxu0 %v435
    %1320 = vmatprep.mubr.f32.mxu0 %v886
    %1321 = vmatmul.mubr.f32.gmra.mxu0 %v884
    %v1322 = vpop.f32.mrf.mxu0
    %v1323 = vadd.f32 0.0, %v1322
    %v1324 = vpop.f32.mrf.mxu0
    %1325 = vdwg.mxu0
    %1326 = vmatprep.subr.mxu0 0.0
    %1327 = vmatpush1.msra.mxu0 %v466
    %1328 = vmatprep.subr.mxu0 0.0
    %1329 = vmatpush1.msra.mxu0 %v465
    %1330 = vmatprep.subr.mxu0 0.0
    %1331 = vmatpush1.msra.mxu0 %v464
    %1332 = vmatprep.subr.mxu0 0.0
    %1333 = vmatpush1.msra.mxu0 %v463
    %1334 = vmatprep.subr.mxu0 0.0
    %1335 = vmatpush1.msra.mxu0 %v462
    %1336 = vmatprep.subr.mxu0 0.0
    %1337 = vmatpush1.msra.mxu0 %v461
    %1338 = vmatprep.subr.mxu0 0.0
    %1339 = vmatpush1.msra.mxu0 %v460
    %1340 = vmatprep.subr.mxu0 0.0
    %1341 = vmatpush1.msra.mxu0 %v459
    %1342 = vmatprep.subr.mxu0 0.0
    %1343 = vmatpush1.msra.mxu0 %v458
    %1344 = vmatprep.subr.mxu0 0.0
    %1345 = vmatpush1.msra.mxu0 %v457
    %1346 = vmatprep.subr.mxu0 0.0
    %1347 = vmatpush1.msra.mxu0 %v456
    %1348 = vmatprep.subr.mxu0 0.0
    %1349 = vmatpush1.msra.mxu0 %v455
    %1350 = vmatprep.subr.mxu0 0.0
    %1351 = vmatpush1.msra.mxu0 %v454
    %1352 = vmatprep.subr.mxu0 0.0
    %1353 = vmatpush1.msra.mxu0 %v453
    %1354 = vmatprep.subr.mxu0 0.0
    %1355 = vmatpush1.msra.mxu0 %v452
    %1356 = vmatprep.subr.mxu0 0.0
    %1357 = vmatpush1.msra.mxu0 %v451
    %1358 = vmatprep.subr.mxu0 0.0
    %1359 = vmatpush2.msra.mxu0 %v482
    %1360 = vmatprep.subr.mxu0 0.0
    %1361 = vmatpush2.msra.mxu0 %v481
    %1362 = vmatprep.subr.mxu0 0.0
    %1363 = vmatpush2.msra.mxu0 %v480
    %1364 = vmatprep.subr.mxu0 0.0
    %1365 = vmatpush2.msra.mxu0 %v479
    %1366 = vmatprep.subr.mxu0 0.0
    %1367 = vmatpush2.msra.mxu0 %v478
    %1368 = vmatprep.subr.mxu0 0.0
    %1369 = vmatpush2.msra.mxu0 %v477
    %1370 = vmatprep.subr.mxu0 0.0
    %1371 = vmatpush2.msra.mxu0 %v476
    %1372 = vmatprep.subr.mxu0 0.0
    %1373 = vmatpush2.msra.mxu0 %v475
    %1374 = vmatprep.subr.mxu0 0.0
    %1375 = vmatpush2.msra.mxu0 %v474
    %1376 = vmatprep.subr.mxu0 0.0
    %1377 = vmatpush2.msra.mxu0 %v473
    %1378 = vmatprep.subr.mxu0 0.0
    %1379 = vmatpush2.msra.mxu0 %v472
    %1380 = vmatprep.subr.mxu0 0.0
    %1381 = vmatpush2.msra.mxu0 %v471
    %1382 = vmatprep.subr.mxu0 0.0
    %1383 = vmatpush2.msra.mxu0 %v470
    %1384 = vmatprep.subr.mxu0 0.0
    %1385 = vmatpush2.msra.mxu0 %v469
    %1386 = vmatprep.subr.mxu0 0.0
    %1387 = vmatpush2.msra.mxu0 %v468
    %1388 = vmatprep.subr.mxu0 0.0
    %1389 = vmatpush2.msra.mxu0 %v467
    %1390 = vmatprep.mubr.f32.mxu0 %v892
    %1391 = vmatmul.mubr.f32.gmra.mxu0 %v890
    %v1392 = vpop.f32.mrf.mxu0
    %v1393 = vadd.f32 0.0, %v1392
    %v1394 = vpop.f32.mrf.mxu0
    %1395 = vdwg.mxu0
    %1396 = vmatprep.subr.mxu0 0.0
    %1397 = vmatpush1.msra.mxu0 %v498
    %1398 = vmatprep.subr.mxu0 0.0
    %1399 = vmatpush1.msra.mxu0 %v497
    %1400 = vmatprep.subr.mxu0 0.0
    %1401 = vmatpush1.msra.mxu0 %v496
    %1402 = vmatprep.subr.mxu0 0.0
    %1403 = vmatpush1.msra.mxu0 %v495
    %1404 = vmatprep.subr.mxu0 0.0
    %1405 = vmatpush1.msra.mxu0 %v494
    %1406 = vmatprep.subr.mxu0 0.0
    %1407 = vmatpush1.msra.mxu0 %v493
    %1408 = vmatprep.subr.mxu0 0.0
    %1409 = vmatpush1.msra.mxu0 %v492
    %1410 = vmatprep.subr.mxu0 0.0
    %1411 = vmatpush1.msra.mxu0 %v491
    %1412 = vmatprep.subr.mxu0 0.0
    %1413 = vmatpush1.msra.mxu0 %v490
    %1414 = vmatprep.subr.mxu0 0.0
    %1415 = vmatpush1.msra.mxu0 %v489
    %1416 = vmatprep.subr.mxu0 0.0
    %1417 = vmatpush1.msra.mxu0 %v488
    %1418 = vmatprep.subr.mxu0 0.0
    %1419 = vmatpush1.msra.mxu0 %v487
    %1420 = vmatprep.subr.mxu0 0.0
    %1421 = vmatpush1.msra.mxu0 %v486
    %1422 = vmatprep.subr.mxu0 0.0
    %1423 = vmatpush1.msra.mxu0 %v485
    %1424 = vmatprep.subr.mxu0 0.0
    %1425 = vmatpush1.msra.mxu0 %v484
    %1426 = vmatprep.subr.mxu0 0.0
    %1427 = vmatpush1.msra.mxu0 %v483
    %1428 = vmatprep.subr.mxu0 0.0
    %1429 = vmatpush2.msra.mxu0 %v514
    %1430 = vmatprep.subr.mxu0 0.0
    %1431 = vmatpush2.msra.mxu0 %v513
    %1432 = vmatprep.subr.mxu0 0.0
    %1433 = vmatpush2.msra.mxu0 %v512
    %1434 = vmatprep.subr.mxu0 0.0
    %1435 = vmatpush2.msra.mxu0 %v511
    %1436 = vmatprep.subr.mxu0 0.0
    %1437 = vmatpush2.msra.mxu0 %v510
    %1438 = vmatprep.subr.mxu0 0.0
    %1439 = vmatpush2.msra.mxu0 %v509
    %1440 = vmatprep.subr.mxu0 0.0
    %1441 = vmatpush2.msra.mxu0 %v508
    %1442 = vmatprep.subr.mxu0 0.0
    %1443 = vmatpush2.msra.mxu0 %v507
    %1444 = vmatprep.subr.mxu0 0.0
    %1445 = vmatpush2.msra.mxu0 %v506
    %1446 = vmatprep.subr.mxu0 0.0
    %1447 = vmatpush2.msra.mxu0 %v505
    %1448 = vmatprep.subr.mxu0 0.0
    %1449 = vmatpush2.msra.mxu0 %v504
    %1450 = vmatprep.subr.mxu0 0.0
    %1451 = vmatpush2.msra.mxu0 %v503
    %1452 = vmatprep.subr.mxu0 0.0
    %1453 = vmatpush2.msra.mxu0 %v502
    %1454 = vmatprep.subr.mxu0 0.0
    %1455 = vmatpush2.msra.mxu0 %v501
    %1456 = vmatprep.subr.mxu0 0.0
    %1457 = vmatpush2.msra.mxu0 %v500
    %1458 = vmatprep.subr.mxu0 0.0
    %1459 = vmatpush2.msra.mxu0 %v499
    %1460 = vmatprep.mubr.f32.mxu0 %v898
    %1461 = vmatmul.mubr.f32.gmra.mxu0 %v896
    %v1462 = vpop.f32.mrf.mxu0
    %v1463 = vadd.f32 0.0, %v1462
    %v1464 = vpop.f32.mrf.mxu0
    %1465 = vdwg.mxu0
    %1466 = vmatprep.subr.mxu0 0.0
    %1467 = vmatpush1.msra.mxu0 %v530
    %1468 = vmatprep.subr.mxu0 0.0
    %1469 = vmatpush1.msra.mxu0 %v529
    %1470 = vmatprep.subr.mxu0 0.0
    %1471 = vmatpush1.msra.mxu0 %v528
    %1472 = vmatprep.subr.mxu0 0.0
    %1473 = vmatpush1.msra.mxu0 %v527
    %1474 = vmatprep.subr.mxu0 0.0
    %1475 = vmatpush1.msra.mxu0 %v526
    %1476 = vmatprep.subr.mxu0 0.0
    %1477 = vmatpush1.msra.mxu0 %v525
    %1478 = vmatprep.subr.mxu0 0.0
    %1479 = vmatpush1.msra.mxu0 %v524
    %1480 = vmatprep.subr.mxu0 0.0
    %1481 = vmatpush1.msra.mxu0 %v523
    %1482 = vmatprep.subr.mxu0 0.0
    %1483 = vmatpush1.msra.mxu0 %v522
    %1484 = vmatprep.subr.mxu0 0.0
    %1485 = vmatpush1.msra.mxu0 %v521
    %1486 = vmatprep.subr.mxu0 0.0
    %1487 = vmatpush1.msra.mxu0 %v520
    %1488 = vmatprep.subr.mxu0 0.0
    %1489 = vmatpush1.msra.mxu0 %v519
    %1490 = vmatprep.subr.mxu0 0.0
    %1491 = vmatpush1.msra.mxu0 %v518
    %1492 = vmatprep.subr.mxu0 0.0
    %1493 = vmatpush1.msra.mxu0 %v517
    %1494 = vmatprep.subr.mxu0 0.0
    %1495 = vmatpush1.msra.mxu0 %v516
    %1496 = vmatprep.subr.mxu0 0.0
    %1497 = vmatpush1.msra.mxu0 %v515
    %1498 = vmatprep.subr.mxu0 0.0
    %1499 = vmatpush2.msra.mxu0 %v546
    %1500 = vmatprep.subr.mxu0 0.0
    %1501 = vmatpush2.msra.mxu0 %v545
    %1502 = vmatprep.subr.mxu0 0.0
    %1503 = vmatpush2.msra.mxu0 %v544
    %1504 = vmatprep.subr.mxu0 0.0
    %1505 = vmatpush2.msra.mxu0 %v543
    %1506 = vmatprep.subr.mxu0 0.0
    %1507 = vmatpush2.msra.mxu0 %v542
    %1508 = vmatprep.subr.mxu0 0.0
    %1509 = vmatpush2.msra.mxu0 %v541
    %1510 = vmatprep.subr.mxu0 0.0
    %1511 = vmatpush2.msra.mxu0 %v540
    %1512 = vmatprep.subr.mxu0 0.0
    %1513 = vmatpush2.msra.mxu0 %v539
    %1514 = vmatprep.subr.mxu0 0.0
    %1515 = vmatpush2.msra.mxu0 %v538
    %1516 = vmatprep.subr.mxu0 0.0
    %1517 = vmatpush2.msra.mxu0 %v537
    %1518 = vmatprep.subr.mxu0 0.0
    %1519 = vmatpush2.msra.mxu0 %v536
    %1520 = vmatprep.subr.mxu0 0.0
    %1521 = vmatpush2.msra.mxu0 %v535
    %1522 = vmatprep.subr.mxu0 0.0
    %1523 = vmatpush2.msra.mxu0 %v534
    %1524 = vmatprep.subr.mxu0 0.0
    %1525 = vmatpush2.msra.mxu0 %v533
    %1526 = vmatprep.subr.mxu0 0.0
    %1527 = vmatpush2.msra.mxu0 %v532
    %1528 = vmatprep.subr.mxu0 0.0
    %1529 = vmatpush2.msra.mxu0 %v531
    %1530 = vmatprep.mubr.f32.mxu0 %v904
    %1531 = vmatmul.mubr.f32.gmra.mxu0 %v902
    %v1532 = vpop.f32.mrf.mxu0
    %v1533 = vadd.f32 0.0, %v1532
    %v1534 = vpop.f32.mrf.mxu0
    %1535 = vdwg.mxu0
    %vm1536 = vcmask 523264
    %v1537 = vsel %vm1536, %v973, 0.0
    %v1538 = vsel %vm1536, %v1043, 0.0
    %v1539 = vadd.f32 %v1537, %v1538
    %v1540 = vsel %vm1536, %v1113, 0.0
    %v1541 = vadd.f32 %v1539, %v1540
    %v1542 = vsel %vm1536, %v1183, 0.0
    %v1543 = vadd.f32 %v1541, %v1542
    %v1544 = vsel %vm1536, %v1253, 0.0
    %v1545 = vadd.f32 %v1543, %v1544
    %v1546 = vsel %vm1536, %v1323, 0.0
    %v1547 = vadd.f32 %v1545, %v1546
    %v1548 = vsel %vm1536, %v1393, 0.0
    %v1549 = vadd.f32 %v1547, %v1548
    %v1550 = vsel %vm1536, %v1463, 0.0
    %v1551 = vadd.f32 %v1549, %v1550
    %v1552 = vsel %vm1536, %v1533, 0.0
    %v1553 = vadd.f32 %v1551, %v1552
    %v1554 = vld [vmem:[#allocation4] sm:$0xff]
    %v1555 = vld [vmem:[#allocation4 + $0x8] sm:$0xff]
    %v1556 = vld [vmem:[#allocation4 + $0x10] sm:$0xff]
    %v1557 = vld [vmem:[#allocation4 + $0x18] sm:$0xff]
    %v1558 = vld [vmem:[#allocation4 + $0x20] sm:$0xff]
    %v1559 = vld [vmem:[#allocation4 + $0x28] sm:$0xff]
    %v1560 = vld [vmem:[#allocation4 + $0x30] sm:$0xff]
    %v1561 = vld [vmem:[#allocation4 + $0x38] sm:$0xff]
    %v1562 = vld [vmem:[#allocation4 + $0x40] sm:$0xff]
    %1563 = vset.pattern.permute.xlu0 1
    %1564 = vperm.xlu0 %1563, %v655
    %v1565 = vpop.permute.xlu0 %1564
    %1567 = vset.pattern.permute.xlu0 1
    %1568 = vperm.xlu0 %1567, %v660
    %v1569 = vpop.permute.xlu0 %1568
    %1571 = vset.pattern.permute.xlu0 1
    %1572 = vperm.xlu0 %1571, %v665
    %v1573 = vpop.permute.xlu0 %1572
    %1575 = vset.pattern.permute.xlu0 1
    %1576 = vperm.xlu0 %1575, %v670
    %v1577 = vpop.permute.xlu0 %1576
    %1579 = vset.pattern.permute.xlu0 1
    %1580 = vperm.xlu0 %1579, %v675
    %v1581 = vpop.permute.xlu0 %1580
    %1583 = vset.pattern.permute.xlu0 1
    %1584 = vperm.xlu0 %1583, %v680
    %v1585 = vpop.permute.xlu0 %1584
    %1587 = vset.pattern.permute.xlu0 1
    %1588 = vperm.xlu0 %1587, %v685
    %v1589 = vpop.permute.xlu0 %1588
    %1591 = vset.pattern.permute.xlu0 1
    %1592 = vperm.xlu0 %1591, %v690
    %v1593 = vpop.permute.xlu0 %1592
    %1595 = vset.pattern.permute.xlu0 1
    %1596 = vperm.xlu0 %1595, %v695
    %v1597 = vpop.permute.xlu0 %1596
    %v1600 = vcombine.high %v258, %v258
    %v1602 = vsel %vm754, %v1554, 0
    %v1605 = vsel %vm754, %v1555, 0
    %v1608 = vsel %vm754, %v1556, 0
    %v1611 = vsel %vm754, %v1557, 0
    %v1614 = vsel %vm754, %v1558, 0
    %v1617 = vsel %vm754, %v1559, 0
    %v1620 = vsel %vm754, %v1560, 0
    %v1623 = vsel %vm754, %v1561, 0
    %v1626 = vsel %vm754, %v1562, 0
    %v1628 = vsel %vm782, %v258, 0
    %v1630 = vsel %vm782, %v1600, 0
    %1632 = vmatprep.subr.mxu0 0.0
    %1633 = vmatpush1.msra.mxu0 0.0
    %1634 = vmatprep.subr.mxu0 0.0
    %1635 = vmatpush1.msra.mxu0 0.0
    %1636 = vmatprep.subr.mxu0 0.0
    %1637 = vmatpush1.msra.mxu0 0.0
    %1638 = vmatprep.subr.mxu0 0.0
    %1639 = vmatpush1.msra.mxu0 0.0
    %1640 = vmatprep.subr.mxu0 0.0
    %1641 = vmatpush1.msra.mxu0 0.0
    %1642 = vmatprep.subr.mxu0 0.0
    %1643 = vmatpush1.msra.mxu0 0.0
    %1644 = vmatprep.subr.mxu0 0.0
    %1645 = vmatpush1.msra.mxu0 0.0
    %1646 = vmatprep.subr.mxu0 0.0
    %1647 = vmatpush1.msra.mxu0 0.0
    %1648 = vmatprep.subr.mxu0 0.0
    %1649 = vmatpush1.msra.mxu0 0.0
    %1650 = vmatprep.subr.mxu0 0.0
    %1651 = vmatpush1.msra.mxu0 0.0
    %1652 = vmatprep.subr.mxu0 0.0
    %1653 = vmatpush1.msra.mxu0 0.0
    %1654 = vmatprep.subr.mxu0 0.0
    %1655 = vmatpush1.msra.mxu0 0.0
    %1656 = vmatprep.subr.mxu0 0.0
    %1657 = vmatpush1.msra.mxu0 0.0
    %1658 = vmatprep.subr.mxu0 0.0
    %1659 = vmatpush1.msra.mxu0 0.0
    %1660 = vmatprep.subr.mxu0 0.0
    %1661 = vmatpush1.msra.mxu0 0.0
    %1662 = vmatprep.subr.mxu0 %v1630
    %1663 = vmatpush1.msra.mxu0 %v1628
    %1664 = vmatprep.subr.mxu0 0.0
    %1665 = vmatpush2.msra.mxu0 0.0
    %1666 = vmatprep.subr.mxu0 0.0
    %1667 = vmatpush2.msra.mxu0 0.0
    %1668 = vmatprep.subr.mxu0 0.0
    %1669 = vmatpush2.msra.mxu0 0.0
    %1670 = vmatprep.subr.mxu0 0.0
    %1671 = vmatpush2.msra.mxu0 0.0
    %1672 = vmatprep.subr.mxu0 0.0
    %1673 = vmatpush2.msra.mxu0 0.0
    %1674 = vmatprep.subr.mxu0 0.0
    %1675 = vmatpush2.msra.mxu0 0.0
    %1676 = vmatprep.subr.mxu0 0.0
    %1677 = vmatpush2.msra.mxu0 0.0
    %1678 = vmatprep.subr.mxu0 0.0
    %1679 = vmatpush2.msra.mxu0 0.0
    %1680 = vmatprep.subr.mxu0 0.0
    %1681 = vmatpush2.msra.mxu0 0.0
    %1682 = vmatprep.subr.mxu0 0.0
    %1683 = vmatpush2.msra.mxu0 0.0
    %1684 = vmatprep.subr.mxu0 0.0
    %1685 = vmatpush2.msra.mxu0 0.0
    %1686 = vmatprep.subr.mxu0 0.0
    %1687 = vmatpush2.msra.mxu0 0.0
    %1688 = vmatprep.subr.mxu0 0.0
    %1689 = vmatpush2.msra.mxu0 0.0
    %1690 = vmatprep.subr.mxu0 0.0
    %1691 = vmatpush2.msra.mxu0 0.0
    %1692 = vmatprep.subr.mxu0 0.0
    %1693 = vmatpush2.msra.mxu0 0.0
    %1694 = vmatprep.subr.mxu0 0.0
    %1695 = vmatpush2.msra.mxu0 0.0
    %1696 = vmatprep.mubr.f32.mxu0 0.0
    %1697 = vmatmul.mubr.f32.gmra.mxu0 %v1602
    %v1698 = vpop.f32.mrf.mxu0
    %v1699 = vadd.f32 %v1565, %v1698
    %v1700 = vpop.f32.mrf.mxu0
    %v1701 = vadd.f32 %v1565, %v1700
    %1702 = vmatprep.mubr.f32.mxu0 0.0
    %1703 = vmatmul.mubr.f32.gmra.mxu0 %v1605
    %v1704 = vpop.f32.mrf.mxu0
    %v1705 = vadd.f32 %v1569, %v1704
    %v1706 = vpop.f32.mrf.mxu0
    %v1707 = vadd.f32 %v1569, %v1706
    %1708 = vmatprep.mubr.f32.mxu0 0.0
    %1709 = vmatmul.mubr.f32.gmra.mxu0 %v1608
    %v1710 = vpop.f32.mrf.mxu0
    %v1711 = vadd.f32 %v1573, %v1710
    %v1712 = vpop.f32.mrf.mxu0
    %v1713 = vadd.f32 %v1573, %v1712
    %1714 = vmatprep.mubr.f32.mxu0 0.0
    %1715 = vmatmul.mubr.f32.gmra.mxu0 %v1611
    %v1716 = vpop.f32.mrf.mxu0
    %v1717 = vadd.f32 %v1577, %v1716
    %v1718 = vpop.f32.mrf.mxu0
    %v1719 = vadd.f32 %v1577, %v1718
    %1720 = vmatprep.mubr.f32.mxu0 0.0
    %1721 = vmatmul.mubr.f32.gmra.mxu0 %v1614
    %v1722 = vpop.f32.mrf.mxu0
    %v1723 = vadd.f32 %v1581, %v1722
    %v1724 = vpop.f32.mrf.mxu0
    %v1725 = vadd.f32 %v1581, %v1724
    %1726 = vmatprep.mubr.f32.mxu0 0.0
    %1727 = vmatmul.mubr.f32.gmra.mxu0 %v1617
    %v1728 = vpop.f32.mrf.mxu0
    %v1729 = vadd.f32 %v1585, %v1728
    %v1730 = vpop.f32.mrf.mxu0
    %v1731 = vadd.f32 %v1585, %v1730
    %1732 = vmatprep.mubr.f32.mxu0 0.0
    %1733 = vmatmul.mubr.f32.gmra.mxu0 %v1620
    %v1734 = vpop.f32.mrf.mxu0
    %v1735 = vadd.f32 %v1589, %v1734
    %v1736 = vpop.f32.mrf.mxu0
    %v1737 = vadd.f32 %v1589, %v1736
    %1738 = vmatprep.mubr.f32.mxu0 0.0
    %1739 = vmatmul.mubr.f32.gmra.mxu0 %v1623
    %v1740 = vpop.f32.mrf.mxu0
    %v1741 = vadd.f32 %v1593, %v1740
    %v1742 = vpop.f32.mrf.mxu0
    %v1743 = vadd.f32 %v1593, %v1742
    %1744 = vmatprep.mubr.f32.mxu0 0.0
    %1745 = vmatmul.mubr.f32.gmra.mxu0 %v1626
    %v1746 = vpop.f32.mrf.mxu0
    %v1747 = vadd.f32 %v1597, %v1746
    %v1748 = vpop.f32.mrf.mxu0
    %v1749 = vadd.f32 %v1597, %v1748
    %1750 = vdwg.mxu0
    %1751 = vmatprep.subr.mxu0 0.0
    %1752 = vmatpush1.msra.mxu0 %v274
    %1753 = vmatprep.subr.mxu0 0.0
    %1754 = vmatpush1.msra.mxu0 %v273
    %1755 = vmatprep.subr.mxu0 0.0
    %1756 = vmatpush1.msra.mxu0 %v272
    %1757 = vmatprep.subr.mxu0 0.0
    %1758 = vmatpush1.msra.mxu0 %v271
    %1759 = vmatprep.subr.mxu0 0.0
    %1760 = vmatpush1.msra.mxu0 %v270
    %1761 = vmatprep.subr.mxu0 0.0
    %1762 = vmatpush1.msra.mxu0 %v269
    %1763 = vmatprep.subr.mxu0 0.0
    %1764 = vmatpush1.msra.mxu0 %v268
    %1765 = vmatprep.subr.mxu0 0.0
    %1766 = vmatpush1.msra.mxu0 %v267
    %1767 = vmatprep.subr.mxu0 0.0
    %1768 = vmatpush1.msra.mxu0 %v266
    %1769 = vmatprep.subr.mxu0 0.0
    %1770 = vmatpush1.msra.mxu0 %v265
    %1771 = vmatprep.subr.mxu0 0.0
    %1772 = vmatpush1.msra.mxu0 %v264
    %1773 = vmatprep.subr.mxu0 0.0
    %1774 = vmatpush1.msra.mxu0 %v263
    %1775 = vmatprep.subr.mxu0 0.0
    %1776 = vmatpush1.msra.mxu0 %v262
    %1777 = vmatprep.subr.mxu0 0.0
    %1778 = vmatpush1.msra.mxu0 %v261
    %1779 = vmatprep.subr.mxu0 0.0
    %1780 = vmatpush1.msra.mxu0 %v260
    %1781 = vmatprep.subr.mxu0 0.0
    %1782 = vmatpush1.msra.mxu0 %v259
    %1783 = vmatprep.subr.mxu0 0.0
    %1784 = vmatpush2.msra.mxu0 %v290
    %1785 = vmatprep.subr.mxu0 0.0
    %1786 = vmatpush2.msra.mxu0 %v289
    %1787 = vmatprep.subr.mxu0 0.0
    %1788 = vmatpush2.msra.mxu0 %v288
    %1789 = vmatprep.subr.mxu0 0.0
    %1790 = vmatpush2.msra.mxu0 %v287
    %1791 = vmatprep.subr.mxu0 0.0
    %1792 = vmatpush2.msra.mxu0 %v286
    %1793 = vmatprep.subr.mxu0 0.0
    %1794 = vmatpush2.msra.mxu0 %v285
    %1795 = vmatprep.subr.mxu0 0.0
    %1796 = vmatpush2.msra.mxu0 %v284
    %1797 = vmatprep.subr.mxu0 0.0
    %1798 = vmatpush2.msra.mxu0 %v283
    %1799 = vmatprep.subr.mxu0 0.0
    %1800 = vmatpush2.msra.mxu0 %v282
    %1801 = vmatprep.subr.mxu0 0.0
    %1802 = vmatpush2.msra.mxu0 %v281
    %1803 = vmatprep.subr.mxu0 0.0
    %1804 = vmatpush2.msra.mxu0 %v280
    %1805 = vmatprep.subr.mxu0 0.0
    %1806 = vmatpush2.msra.mxu0 %v279
    %1807 = vmatprep.subr.mxu0 0.0
    %1808 = vmatpush2.msra.mxu0 %v278
    %1809 = vmatprep.subr.mxu0 0.0
    %1810 = vmatpush2.msra.mxu0 %v277
    %1811 = vmatprep.subr.mxu0 0.0
    %1812 = vmatpush2.msra.mxu0 %v276
    %1813 = vmatprep.subr.mxu0 0.0
    %1814 = vmatpush2.msra.mxu0 %v275
    %1815 = vmatprep.mubr.f32.mxu0 %v1701
    %1816 = vmatmul.mubr.f32.gmra.mxu0 %v1699
    %v1817 = vpop.f32.mrf.mxu0
    %v1818 = vadd.f32 0.0, %v1817
    %v1819 = vpop.f32.mrf.mxu0
    %1820 = vdwg.mxu0
    %1821 = vmatprep.subr.mxu0 0.0
    %1822 = vmatpush1.msra.mxu0 %v306
    %1823 = vmatprep.subr.mxu0 0.0
    %1824 = vmatpush1.msra.mxu0 %v305
    %1825 = vmatprep.subr.mxu0 0.0
    %1826 = vmatpush1.msra.mxu0 %v304
    %1827 = vmatprep.subr.mxu0 0.0
    %1828 = vmatpush1.msra.mxu0 %v303
    %1829 = vmatprep.subr.mxu0 0.0
    %1830 = vmatpush1.msra.mxu0 %v302
    %1831 = vmatprep.subr.mxu0 0.0
    %1832 = vmatpush1.msra.mxu0 %v301
    %1833 = vmatprep.subr.mxu0 0.0
    %1834 = vmatpush1.msra.mxu0 %v300
    %1835 = vmatprep.subr.mxu0 0.0
    %1836 = vmatpush1.msra.mxu0 %v299
    %1837 = vmatprep.subr.mxu0 0.0
    %1838 = vmatpush1.msra.mxu0 %v298
    %1839 = vmatprep.subr.mxu0 0.0
    %1840 = vmatpush1.msra.mxu0 %v297
    %1841 = vmatprep.subr.mxu0 0.0
    %1842 = vmatpush1.msra.mxu0 %v296
    %1843 = vmatprep.subr.mxu0 0.0
    %1844 = vmatpush1.msra.mxu0 %v295
    %1845 = vmatprep.subr.mxu0 0.0
    %1846 = vmatpush1.msra.mxu0 %v294
    %1847 = vmatprep.subr.mxu0 0.0
    %1848 = vmatpush1.msra.mxu0 %v293
    %1849 = vmatprep.subr.mxu0 0.0
    %1850 = vmatpush1.msra.mxu0 %v292
    %1851 = vmatprep.subr.mxu0 0.0
    %1852 = vmatpush1.msra.mxu0 %v291
    %1853 = vmatprep.subr.mxu0 0.0
    %1854 = vmatpush2.msra.mxu0 %v322
    %1855 = vmatprep.subr.mxu0 0.0
    %1856 = vmatpush2.msra.mxu0 %v321
    %1857 = vmatprep.subr.mxu0 0.0
    %1858 = vmatpush2.msra.mxu0 %v320
    %1859 = vmatprep.subr.mxu0 0.0
    %1860 = vmatpush2.msra.mxu0 %v319
    %1861 = vmatprep.subr.mxu0 0.0
    %1862 = vmatpush2.msra.mxu0 %v318
    %1863 = vmatprep.subr.mxu0 0.0
    %1864 = vmatpush2.msra.mxu0 %v317
    %1865 = vmatprep.subr.mxu0 0.0
    %1866 = vmatpush2.msra.mxu0 %v316
    %1867 = vmatprep.subr.mxu0 0.0
    %1868 = vmatpush2.msra.mxu0 %v315
    %1869 = vmatprep.subr.mxu0 0.0
    %1870 = vmatpush2.msra.mxu0 %v314
    %1871 = vmatprep.subr.mxu0 0.0
    %1872 = vmatpush2.msra.mxu0 %v313
    %1873 = vmatprep.subr.mxu0 0.0
    %1874 = vmatpush2.msra.mxu0 %v312
    %1875 = vmatprep.subr.mxu0 0.0
    %1876 = vmatpush2.msra.mxu0 %v311
    %1877 = vmatprep.subr.mxu0 0.0
    %1878 = vmatpush2.msra.mxu0 %v310
    %1879 = vmatprep.subr.mxu0 0.0
    %1880 = vmatpush2.msra.mxu0 %v309
    %1881 = vmatprep.subr.mxu0 0.0
    %1882 = vmatpush2.msra.mxu0 %v308
    %1883 = vmatprep.subr.mxu0 0.0
    %1884 = vmatpush2.msra.mxu0 %v307
    %1885 = vmatprep.mubr.f32.mxu0 %v1707
    %1886 = vmatmul.mubr.f32.gmra.mxu0 %v1705
    %v1887 = vpop.f32.mrf.mxu0
    %v1888 = vadd.f32 0.0, %v1887
    %v1889 = vpop.f32.mrf.mxu0
    %1890 = vdwg.mxu0
    %1891 = vmatprep.subr.mxu0 0.0
    %1892 = vmatpush1.msra.mxu0 %v338
    %1893 = vmatprep.subr.mxu0 0.0
    %1894 = vmatpush1.msra.mxu0 %v337
    %1895 = vmatprep.subr.mxu0 0.0
    %1896 = vmatpush1.msra.mxu0 %v336
    %1897 = vmatprep.subr.mxu0 0.0
    %1898 = vmatpush1.msra.mxu0 %v335
    %1899 = vmatprep.subr.mxu0 0.0
    %1900 = vmatpush1.msra.mxu0 %v334
    %1901 = vmatprep.subr.mxu0 0.0
    %1902 = vmatpush1.msra.mxu0 %v333
    %1903 = vmatprep.subr.mxu0 0.0
    %1904 = vmatpush1.msra.mxu0 %v332
    %1905 = vmatprep.subr.mxu0 0.0
    %1906 = vmatpush1.msra.mxu0 %v331
    %1907 = vmatprep.subr.mxu0 0.0
    %1908 = vmatpush1.msra.mxu0 %v330
    %1909 = vmatprep.subr.mxu0 0.0
    %1910 = vmatpush1.msra.mxu0 %v329
    %1911 = vmatprep.subr.mxu0 0.0
    %1912 = vmatpush1.msra.mxu0 %v328
    %1913 = vmatprep.subr.mxu0 0.0
    %1914 = vmatpush1.msra.mxu0 %v327
    %1915 = vmatprep.subr.mxu0 0.0
    %1916 = vmatpush1.msra.mxu0 %v326
    %1917 = vmatprep.subr.mxu0 0.0
    %1918 = vmatpush1.msra.mxu0 %v325
    %1919 = vmatprep.subr.mxu0 0.0
    %1920 = vmatpush1.msra.mxu0 %v324
    %1921 = vmatprep.subr.mxu0 0.0
    %1922 = vmatpush1.msra.mxu0 %v323
    %1923 = vmatprep.subr.mxu0 0.0
    %1924 = vmatpush2.msra.mxu0 %v354
    %1925 = vmatprep.subr.mxu0 0.0
    %1926 = vmatpush2.msra.mxu0 %v353
    %1927 = vmatprep.subr.mxu0 0.0
    %1928 = vmatpush2.msra.mxu0 %v352
    %1929 = vmatprep.subr.mxu0 0.0
    %1930 = vmatpush2.msra.mxu0 %v351
    %1931 = vmatprep.subr.mxu0 0.0
    %1932 = vmatpush2.msra.mxu0 %v350
    %1933 = vmatprep.subr.mxu0 0.0
    %1934 = vmatpush2.msra.mxu0 %v349
    %1935 = vmatprep.subr.mxu0 0.0
    %1936 = vmatpush2.msra.mxu0 %v348
    %1937 = vmatprep.subr.mxu0 0.0
    %1938 = vmatpush2.msra.mxu0 %v347
    %1939 = vmatprep.subr.mxu0 0.0
    %1940 = vmatpush2.msra.mxu0 %v346
    %1941 = vmatprep.subr.mxu0 0.0
    %1942 = vmatpush2.msra.mxu0 %v345
    %1943 = vmatprep.subr.mxu0 0.0
    %1944 = vmatpush2.msra.mxu0 %v344
    %1945 = vmatprep.subr.mxu0 0.0
    %1946 = vmatpush2.msra.mxu0 %v343
    %1947 = vmatprep.subr.mxu0 0.0
    %1948 = vmatpush2.msra.mxu0 %v342
    %1949 = vmatprep.subr.mxu0 0.0
    %1950 = vmatpush2.msra.mxu0 %v341
    %1951 = vmatprep.subr.mxu0 0.0
    %1952 = vmatpush2.msra.mxu0 %v340
    %1953 = vmatprep.subr.mxu0 0.0
    %1954 = vmatpush2.msra.mxu0 %v339
    %1955 = vmatprep.mubr.f32.mxu0 %v1713
    %1956 = vmatmul.mubr.f32.gmra.mxu0 %v1711
    %v1957 = vpop.f32.mrf.mxu0
    %v1958 = vadd.f32 0.0, %v1957
    %v1959 = vpop.f32.mrf.mxu0
    %1960 = vdwg.mxu0
    %1961 = vmatprep.subr.mxu0 0.0
    %1962 = vmatpush1.msra.mxu0 %v370
    %1963 = vmatprep.subr.mxu0 0.0
    %1964 = vmatpush1.msra.mxu0 %v369
    %1965 = vmatprep.subr.mxu0 0.0
    %1966 = vmatpush1.msra.mxu0 %v368
    %1967 = vmatprep.subr.mxu0 0.0
    %1968 = vmatpush1.msra.mxu0 %v367
    %1969 = vmatprep.subr.mxu0 0.0
    %1970 = vmatpush1.msra.mxu0 %v366
    %1971 = vmatprep.subr.mxu0 0.0
    %1972 = vmatpush1.msra.mxu0 %v365
    %1973 = vmatprep.subr.mxu0 0.0
    %1974 = vmatpush1.msra.mxu0 %v364
    %1975 = vmatprep.subr.mxu0 0.0
    %1976 = vmatpush1.msra.mxu0 %v363
    %1977 = vmatprep.subr.mxu0 0.0
    %1978 = vmatpush1.msra.mxu0 %v362
    %1979 = vmatprep.subr.mxu0 0.0
    %1980 = vmatpush1.msra.mxu0 %v361
    %1981 = vmatprep.subr.mxu0 0.0
    %1982 = vmatpush1.msra.mxu0 %v360
    %1983 = vmatprep.subr.mxu0 0.0
    %1984 = vmatpush1.msra.mxu0 %v359
    %1985 = vmatprep.subr.mxu0 0.0
    %1986 = vmatpush1.msra.mxu0 %v358
    %1987 = vmatprep.subr.mxu0 0.0
    %1988 = vmatpush1.msra.mxu0 %v357
    %1989 = vmatprep.subr.mxu0 0.0
    %1990 = vmatpush1.msra.mxu0 %v356
    %1991 = vmatprep.subr.mxu0 0.0
    %1992 = vmatpush1.msra.mxu0 %v355
    %1993 = vmatprep.subr.mxu0 0.0
    %1994 = vmatpush2.msra.mxu0 %v386
    %1995 = vmatprep.subr.mxu0 0.0
    %1996 = vmatpush2.msra.mxu0 %v385
    %1997 = vmatprep.subr.mxu0 0.0
    %1998 = vmatpush2.msra.mxu0 %v384
    %1999 = vmatprep.subr.mxu0 0.0
    %2000 = vmatpush2.msra.mxu0 %v383
    %2001 = vmatprep.subr.mxu0 0.0
    %2002 = vmatpush2.msra.mxu0 %v382
    %2003 = vmatprep.subr.mxu0 0.0
    %2004 = vmatpush2.msra.mxu0 %v381
    %2005 = vmatprep.subr.mxu0 0.0
    %2006 = vmatpush2.msra.mxu0 %v380
    %2007 = vmatprep.subr.mxu0 0.0
    %2008 = vmatpush2.msra.mxu0 %v379
    %2009 = vmatprep.subr.mxu0 0.0
    %2010 = vmatpush2.msra.mxu0 %v378
    %2011 = vmatprep.subr.mxu0 0.0
    %2012 = vmatpush2.msra.mxu0 %v377
    %2013 = vmatprep.subr.mxu0 0.0
    %2014 = vmatpush2.msra.mxu0 %v376
    %2015 = vmatprep.subr.mxu0 0.0
    %2016 = vmatpush2.msra.mxu0 %v375
    %2017 = vmatprep.subr.mxu0 0.0
    %2018 = vmatpush2.msra.mxu0 %v374
    %2019 = vmatprep.subr.mxu0 0.0
    %2020 = vmatpush2.msra.mxu0 %v373
    %2021 = vmatprep.subr.mxu0 0.0
    %2022 = vmatpush2.msra.mxu0 %v372
    %2023 = vmatprep.subr.mxu0 0.0
    %2024 = vmatpush2.msra.mxu0 %v371
    %2025 = vmatprep.mubr.f32.mxu0 %v1719
    %2026 = vmatmul.mubr.f32.gmra.mxu0 %v1717
    %v2027 = vpop.f32.mrf.mxu0
    %v2028 = vadd.f32 0.0, %v2027
    %v2029 = vpop.f32.mrf.mxu0
    %2030 = vdwg.mxu0
    %2031 = vmatprep.subr.mxu0 0.0
    %2032 = vmatpush1.msra.mxu0 %v402
    %2033 = vmatprep.subr.mxu0 0.0
    %2034 = vmatpush1.msra.mxu0 %v401
    %2035 = vmatprep.subr.mxu0 0.0
    %2036 = vmatpush1.msra.mxu0 %v400
    %2037 = vmatprep.subr.mxu0 0.0
    %2038 = vmatpush1.msra.mxu0 %v399
    %2039 = vmatprep.subr.mxu0 0.0
    %2040 = vmatpush1.msra.mxu0 %v398
    %2041 = vmatprep.subr.mxu0 0.0
    %2042 = vmatpush1.msra.mxu0 %v397
    %2043 = vmatprep.subr.mxu0 0.0
    %2044 = vmatpush1.msra.mxu0 %v396
    %2045 = vmatprep.subr.mxu0 0.0
    %2046 = vmatpush1.msra.mxu0 %v395
    %2047 = vmatprep.subr.mxu0 0.0
    %2048 = vmatpush1.msra.mxu0 %v394
    %2049 = vmatprep.subr.mxu0 0.0
    %2050 = vmatpush1.msra.mxu0 %v393
    %2051 = vmatprep.subr.mxu0 0.0
    %2052 = vmatpush1.msra.mxu0 %v392
    %2053 = vmatprep.subr.mxu0 0.0
    %2054 = vmatpush1.msra.mxu0 %v391
    %2055 = vmatprep.subr.mxu0 0.0
    %2056 = vmatpush1.msra.mxu0 %v390
    %2057 = vmatprep.subr.mxu0 0.0
    %2058 = vmatpush1.msra.mxu0 %v389
    %2059 = vmatprep.subr.mxu0 0.0
    %2060 = vmatpush1.msra.mxu0 %v388
    %2061 = vmatprep.subr.mxu0 0.0
    %2062 = vmatpush1.msra.mxu0 %v387
    %2063 = vmatprep.subr.mxu0 0.0
    %2064 = vmatpush2.msra.mxu0 %v418
    %2065 = vmatprep.subr.mxu0 0.0
    %2066 = vmatpush2.msra.mxu0 %v417
    %2067 = vmatprep.subr.mxu0 0.0
    %2068 = vmatpush2.msra.mxu0 %v416
    %2069 = vmatprep.subr.mxu0 0.0
    %2070 = vmatpush2.msra.mxu0 %v415
    %2071 = vmatprep.subr.mxu0 0.0
    %2072 = vmatpush2.msra.mxu0 %v414
    %2073 = vmatprep.subr.mxu0 0.0
    %2074 = vmatpush2.msra.mxu0 %v413
    %2075 = vmatprep.subr.mxu0 0.0
    %2076 = vmatpush2.msra.mxu0 %v412
    %2077 = vmatprep.subr.mxu0 0.0
    %2078 = vmatpush2.msra.mxu0 %v411
    %2079 = vmatprep.subr.mxu0 0.0
    %2080 = vmatpush2.msra.mxu0 %v410
    %2081 = vmatprep.subr.mxu0 0.0
    %2082 = vmatpush2.msra.mxu0 %v409
    %2083 = vmatprep.subr.mxu0 0.0
    %2084 = vmatpush2.msra.mxu0 %v408
    %2085 = vmatprep.subr.mxu0 0.0
    %2086 = vmatpush2.msra.mxu0 %v407
    %2087 = vmatprep.subr.mxu0 0.0
    %2088 = vmatpush2.msra.mxu0 %v406
    %2089 = vmatprep.subr.mxu0 0.0
    %2090 = vmatpush2.msra.mxu0 %v405
    %2091 = vmatprep.subr.mxu0 0.0
    %2092 = vmatpush2.msra.mxu0 %v404
    %2093 = vmatprep.subr.mxu0 0.0
    %2094 = vmatpush2.msra.mxu0 %v403
    %2095 = vmatprep.mubr.f32.mxu0 %v1725
    %2096 = vmatmul.mubr.f32.gmra.mxu0 %v1723
    %v2097 = vpop.f32.mrf.mxu0
    %v2098 = vadd.f32 0.0, %v2097
    %v2099 = vpop.f32.mrf.mxu0
    %2100 = vdwg.mxu0
    %2101 = vmatprep.subr.mxu0 0.0
    %2102 = vmatpush1.msra.mxu0 %v434
    %2103 = vmatprep.subr.mxu0 0.0
    %2104 = vmatpush1.msra.mxu0 %v433
    %2105 = vmatprep.subr.mxu0 0.0
    %2106 = vmatpush1.msra.mxu0 %v432
    %2107 = vmatprep.subr.mxu0 0.0
    %2108 = vmatpush1.msra.mxu0 %v431
    %2109 = vmatprep.subr.mxu0 0.0
    %2110 = vmatpush1.msra.mxu0 %v430
    %2111 = vmatprep.subr.mxu0 0.0
    %2112 = vmatpush1.msra.mxu0 %v429
    %2113 = vmatprep.subr.mxu0 0.0
    %2114 = vmatpush1.msra.mxu0 %v428
    %2115 = vmatprep.subr.mxu0 0.0
    %2116 = vmatpush1.msra.mxu0 %v427
    %2117 = vmatprep.subr.mxu0 0.0
    %2118 = vmatpush1.msra.mxu0 %v426
    %2119 = vmatprep.subr.mxu0 0.0
    %2120 = vmatpush1.msra.mxu0 %v425
    %2121 = vmatprep.subr.mxu0 0.0
    %2122 = vmatpush1.msra.mxu0 %v424
    %2123 = vmatprep.subr.mxu0 0.0
    %2124 = vmatpush1.msra.mxu0 %v423
    %2125 = vmatprep.subr.mxu0 0.0
    %2126 = vmatpush1.msra.mxu0 %v422
    %2127 = vmatprep.subr.mxu0 0.0
    %2128 = vmatpush1.msra.mxu0 %v421
    %2129 = vmatprep.subr.mxu0 0.0
    %2130 = vmatpush1.msra.mxu0 %v420
    %2131 = vmatprep.subr.mxu0 0.0
    %2132 = vmatpush1.msra.mxu0 %v419
    %2133 = vmatprep.subr.mxu0 0.0
    %2134 = vmatpush2.msra.mxu0 %v450
    %2135 = vmatprep.subr.mxu0 0.0
    %2136 = vmatpush2.msra.mxu0 %v449
    %2137 = vmatprep.subr.mxu0 0.0
    %2138 = vmatpush2.msra.mxu0 %v448
    %2139 = vmatprep.subr.mxu0 0.0
    %2140 = vmatpush2.msra.mxu0 %v447
    %2141 = vmatprep.subr.mxu0 0.0
    %2142 = vmatpush2.msra.mxu0 %v446
    %2143 = vmatprep.subr.mxu0 0.0
    %2144 = vmatpush2.msra.mxu0 %v445
    %2145 = vmatprep.subr.mxu0 0.0
    %2146 = vmatpush2.msra.mxu0 %v444
    %2147 = vmatprep.subr.mxu0 0.0
    %2148 = vmatpush2.msra.mxu0 %v443
    %2149 = vmatprep.subr.mxu0 0.0
    %2150 = vmatpush2.msra.mxu0 %v442
    %2151 = vmatprep.subr.mxu0 0.0
    %2152 = vmatpush2.msra.mxu0 %v441
    %2153 = vmatprep.subr.mxu0 0.0
    %2154 = vmatpush2.msra.mxu0 %v440
    %2155 = vmatprep.subr.mxu0 0.0
    %2156 = vmatpush2.msra.mxu0 %v439
    %2157 = vmatprep.subr.mxu0 0.0
    %2158 = vmatpush2.msra.mxu0 %v438
    %2159 = vmatprep.subr.mxu0 0.0
    %2160 = vmatpush2.msra.mxu0 %v437
    %2161 = vmatprep.subr.mxu0 0.0
    %2162 = vmatpush2.msra.mxu0 %v436
    %2163 = vmatprep.subr.mxu0 0.0
    %2164 = vmatpush2.msra.mxu0 %v435
    %2165 = vmatprep.mubr.f32.mxu0 %v1731
    %2166 = vmatmul.mubr.f32.gmra.mxu0 %v1729
    %v2167 = vpop.f32.mrf.mxu0
    %v2168 = vadd.f32 0.0, %v2167
    %v2169 = vpop.f32.mrf.mxu0
    %2170 = vdwg.mxu0
    %2171 = vmatprep.subr.mxu0 0.0
    %2172 = vmatpush1.msra.mxu0 %v466
    %2173 = vmatprep.subr.mxu0 0.0
    %2174 = vmatpush1.msra.mxu0 %v465
    %2175 = vmatprep.subr.mxu0 0.0
    %2176 = vmatpush1.msra.mxu0 %v464
    %2177 = vmatprep.subr.mxu0 0.0
    %2178 = vmatpush1.msra.mxu0 %v463
    %2179 = vmatprep.subr.mxu0 0.0
    %2180 = vmatpush1.msra.mxu0 %v462
    %2181 = vmatprep.subr.mxu0 0.0
    %2182 = vmatpush1.msra.mxu0 %v461
    %2183 = vmatprep.subr.mxu0 0.0
    %2184 = vmatpush1.msra.mxu0 %v460
    %2185 = vmatprep.subr.mxu0 0.0
    %2186 = vmatpush1.msra.mxu0 %v459
    %2187 = vmatprep.subr.mxu0 0.0
    %2188 = vmatpush1.msra.mxu0 %v458
    %2189 = vmatprep.subr.mxu0 0.0
    %2190 = vmatpush1.msra.mxu0 %v457
    %2191 = vmatprep.subr.mxu0 0.0
    %2192 = vmatpush1.msra.mxu0 %v456
    %2193 = vmatprep.subr.mxu0 0.0
    %2194 = vmatpush1.msra.mxu0 %v455
    %2195 = vmatprep.subr.mxu0 0.0
    %2196 = vmatpush1.msra.mxu0 %v454
    %2197 = vmatprep.subr.mxu0 0.0
    %2198 = vmatpush1.msra.mxu0 %v453
    %2199 = vmatprep.subr.mxu0 0.0
    %2200 = vmatpush1.msra.mxu0 %v452
    %2201 = vmatprep.subr.mxu0 0.0
    %2202 = vmatpush1.msra.mxu0 %v451
    %2203 = vmatprep.subr.mxu0 0.0
    %2204 = vmatpush2.msra.mxu0 %v482
    %2205 = vmatprep.subr.mxu0 0.0
    %2206 = vmatpush2.msra.mxu0 %v481
    %2207 = vmatprep.subr.mxu0 0.0
    %2208 = vmatpush2.msra.mxu0 %v480
    %2209 = vmatprep.subr.mxu0 0.0
    %2210 = vmatpush2.msra.mxu0 %v479
    %2211 = vmatprep.subr.mxu0 0.0
    %2212 = vmatpush2.msra.mxu0 %v478
    %2213 = vmatprep.subr.mxu0 0.0
    %2214 = vmatpush2.msra.mxu0 %v477
    %2215 = vmatprep.subr.mxu0 0.0
    %2216 = vmatpush2.msra.mxu0 %v476
    %2217 = vmatprep.subr.mxu0 0.0
    %2218 = vmatpush2.msra.mxu0 %v475
    %2219 = vmatprep.subr.mxu0 0.0
    %2220 = vmatpush2.msra.mxu0 %v474
    %2221 = vmatprep.subr.mxu0 0.0
    %2222 = vmatpush2.msra.mxu0 %v473
    %2223 = vmatprep.subr.mxu0 0.0
    %2224 = vmatpush2.msra.mxu0 %v472
    %2225 = vmatprep.subr.mxu0 0.0
    %2226 = vmatpush2.msra.mxu0 %v471
    %2227 = vmatprep.subr.mxu0 0.0
    %2228 = vmatpush2.msra.mxu0 %v470
    %2229 = vmatprep.subr.mxu0 0.0
    %2230 = vmatpush2.msra.mxu0 %v469
    %2231 = vmatprep.subr.mxu0 0.0
    %2232 = vmatpush2.msra.mxu0 %v468
    %2233 = vmatprep.subr.mxu0 0.0
    %2234 = vmatpush2.msra.mxu0 %v467
    %2235 = vmatprep.mubr.f32.mxu0 %v1737
    %2236 = vmatmul.mubr.f32.gmra.mxu0 %v1735
    %v2237 = vpop.f32.mrf.mxu0
    %v2238 = vadd.f32 0.0, %v2237
    %v2239 = vpop.f32.mrf.mxu0
    %2240 = vdwg.mxu0
    %2241 = vmatprep.subr.mxu0 0.0
    %2242 = vmatpush1.msra.mxu0 %v498
    %2243 = vmatprep.subr.mxu0 0.0
    %2244 = vmatpush1.msra.mxu0 %v497
    %2245 = vmatprep.subr.mxu0 0.0
    %2246 = vmatpush1.msra.mxu0 %v496
    %2247 = vmatprep.subr.mxu0 0.0
    %2248 = vmatpush1.msra.mxu0 %v495
    %2249 = vmatprep.subr.mxu0 0.0
    %2250 = vmatpush1.msra.mxu0 %v494
    %2251 = vmatprep.subr.mxu0 0.0
    %2252 = vmatpush1.msra.mxu0 %v493
    %2253 = vmatprep.subr.mxu0 0.0
    %2254 = vmatpush1.msra.mxu0 %v492
    %2255 = vmatprep.subr.mxu0 0.0
    %2256 = vmatpush1.msra.mxu0 %v491
    %2257 = vmatprep.subr.mxu0 0.0
    %2258 = vmatpush1.msra.mxu0 %v490
    %2259 = vmatprep.subr.mxu0 0.0
    %2260 = vmatpush1.msra.mxu0 %v489
    %2261 = vmatprep.subr.mxu0 0.0
    %2262 = vmatpush1.msra.mxu0 %v488
    %2263 = vmatprep.subr.mxu0 0.0
    %2264 = vmatpush1.msra.mxu0 %v487
    %2265 = vmatprep.subr.mxu0 0.0
    %2266 = vmatpush1.msra.mxu0 %v486
    %2267 = vmatprep.subr.mxu0 0.0
    %2268 = vmatpush1.msra.mxu0 %v485
    %2269 = vmatprep.subr.mxu0 0.0
    %2270 = vmatpush1.msra.mxu0 %v484
    %2271 = vmatprep.subr.mxu0 0.0
    %2272 = vmatpush1.msra.mxu0 %v483
    %2273 = vmatprep.subr.mxu0 0.0
    %2274 = vmatpush2.msra.mxu0 %v514
    %2275 = vmatprep.subr.mxu0 0.0
    %2276 = vmatpush2.msra.mxu0 %v513
    %2277 = vmatprep.subr.mxu0 0.0
    %2278 = vmatpush2.msra.mxu0 %v512
    %2279 = vmatprep.subr.mxu0 0.0
    %2280 = vmatpush2.msra.mxu0 %v511
    %2281 = vmatprep.subr.mxu0 0.0
    %2282 = vmatpush2.msra.mxu0 %v510
    %2283 = vmatprep.subr.mxu0 0.0
    %2284 = vmatpush2.msra.mxu0 %v509
    %2285 = vmatprep.subr.mxu0 0.0
    %2286 = vmatpush2.msra.mxu0 %v508
    %2287 = vmatprep.subr.mxu0 0.0
    %2288 = vmatpush2.msra.mxu0 %v507
    %2289 = vmatprep.subr.mxu0 0.0
    %2290 = vmatpush2.msra.mxu0 %v506
    %2291 = vmatprep.subr.mxu0 0.0
    %2292 = vmatpush2.msra.mxu0 %v505
    %2293 = vmatprep.subr.mxu0 0.0
    %2294 = vmatpush2.msra.mxu0 %v504
    %2295 = vmatprep.subr.mxu0 0.0
    %2296 = vmatpush2.msra.mxu0 %v503
    %2297 = vmatprep.subr.mxu0 0.0
    %2298 = vmatpush2.msra.mxu0 %v502
    %2299 = vmatprep.subr.mxu0 0.0
    %2300 = vmatpush2.msra.mxu0 %v501
    %2301 = vmatprep.subr.mxu0 0.0
    %2302 = vmatpush2.msra.mxu0 %v500
    %2303 = vmatprep.subr.mxu0 0.0
    %2304 = vmatpush2.msra.mxu0 %v499
    %2305 = vmatprep.mubr.f32.mxu0 %v1743
    %2306 = vmatmul.mubr.f32.gmra.mxu0 %v1741
    %v2307 = vpop.f32.mrf.mxu0
    %v2308 = vadd.f32 0.0, %v2307
    %v2309 = vpop.f32.mrf.mxu0
    %2310 = vdwg.mxu0
    %2311 = vmatprep.subr.mxu0 0.0
    %2312 = vmatpush1.msra.mxu0 %v530
    %2313 = vmatprep.subr.mxu0 0.0
    %2314 = vmatpush1.msra.mxu0 %v529
    %2315 = vmatprep.subr.mxu0 0.0
    %2316 = vmatpush1.msra.mxu0 %v528
    %2317 = vmatprep.subr.mxu0 0.0
    %2318 = vmatpush1.msra.mxu0 %v527
    %2319 = vmatprep.subr.mxu0 0.0
    %2320 = vmatpush1.msra.mxu0 %v526
    %2321 = vmatprep.subr.mxu0 0.0
    %2322 = vmatpush1.msra.mxu0 %v525
    %2323 = vmatprep.subr.mxu0 0.0
    %2324 = vmatpush1.msra.mxu0 %v524
    %2325 = vmatprep.subr.mxu0 0.0
    %2326 = vmatpush1.msra.mxu0 %v523
    %2327 = vmatprep.subr.mxu0 0.0
    %2328 = vmatpush1.msra.mxu0 %v522
    %2329 = vmatprep.subr.mxu0 0.0
    %2330 = vmatpush1.msra.mxu0 %v521
    %2331 = vmatprep.subr.mxu0 0.0
    %2332 = vmatpush1.msra.mxu0 %v520
    %2333 = vmatprep.subr.mxu0 0.0
    %2334 = vmatpush1.msra.mxu0 %v519
    %2335 = vmatprep.subr.mxu0 0.0
    %2336 = vmatpush1.msra.mxu0 %v518
    %2337 = vmatprep.subr.mxu0 0.0
    %2338 = vmatpush1.msra.mxu0 %v517
    %2339 = vmatprep.subr.mxu0 0.0
    %2340 = vmatpush1.msra.mxu0 %v516
    %2341 = vmatprep.subr.mxu0 0.0
    %2342 = vmatpush1.msra.mxu0 %v515
    %2343 = vmatprep.subr.mxu0 0.0
    %2344 = vmatpush2.msra.mxu0 %v546
    %2345 = vmatprep.subr.mxu0 0.0
    %2346 = vmatpush2.msra.mxu0 %v545
    %2347 = vmatprep.subr.mxu0 0.0
    %2348 = vmatpush2.msra.mxu0 %v544
    %2349 = vmatprep.subr.mxu0 0.0
    %2350 = vmatpush2.msra.mxu0 %v543
    %2351 = vmatprep.subr.mxu0 0.0
    %2352 = vmatpush2.msra.mxu0 %v542
    %2353 = vmatprep.subr.mxu0 0.0
    %2354 = vmatpush2.msra.mxu0 %v541
    %2355 = vmatprep.subr.mxu0 0.0
    %2356 = vmatpush2.msra.mxu0 %v540
    %2357 = vmatprep.subr.mxu0 0.0
    %2358 = vmatpush2.msra.mxu0 %v539
    %2359 = vmatprep.subr.mxu0 0.0
    %2360 = vmatpush2.msra.mxu0 %v538
    %2361 = vmatprep.subr.mxu0 0.0
    %2362 = vmatpush2.msra.mxu0 %v537
    %2363 = vmatprep.subr.mxu0 0.0
    %2364 = vmatpush2.msra.mxu0 %v536
    %2365 = vmatprep.subr.mxu0 0.0
    %2366 = vmatpush2.msra.mxu0 %v535
    %2367 = vmatprep.subr.mxu0 0.0
    %2368 = vmatpush2.msra.mxu0 %v534
    %2369 = vmatprep.subr.mxu0 0.0
    %2370 = vmatpush2.msra.mxu0 %v533
    %2371 = vmatprep.subr.mxu0 0.0
    %2372 = vmatpush2.msra.mxu0 %v532
    %2373 = vmatprep.subr.mxu0 0.0
    %2374 = vmatpush2.msra.mxu0 %v531
    %2375 = vmatprep.mubr.f32.mxu0 %v1749
    %2376 = vmatmul.mubr.f32.gmra.mxu0 %v1747
    %v2377 = vpop.f32.mrf.mxu0
    %v2378 = vadd.f32 0.0, %v2377
    %v2379 = vpop.f32.mrf.mxu0
    %2380 = vdwg.mxu0
    %v2381 = vsel %vm1536, %v1818, 0.0
    %v2382 = vsel %vm1536, %v1888, 0.0
    %v2383 = vadd.f32 %v2381, %v2382
    %v2384 = vsel %vm1536, %v1958, 0.0
    %v2385 = vadd.f32 %v2383, %v2384
    %v2386 = vsel %vm1536, %v2028, 0.0
    %v2387 = vadd.f32 %v2385, %v2386
    %v2388 = vsel %vm1536, %v2098, 0.0
    %v2389 = vadd.f32 %v2387, %v2388
    %v2390 = vsel %vm1536, %v2168, 0.0
    %v2391 = vadd.f32 %v2389, %v2390
    %v2392 = vsel %vm1536, %v2238, 0.0
    %v2393 = vadd.f32 %v2391, %v2392
    %v2394 = vsel %vm1536, %v2308, 0.0
    %v2395 = vadd.f32 %v2393, %v2394
    %v2396 = vsel %vm1536, %v2378, 0.0
    %v2397 = vadd.f32 %v2395, %v2396
    %2399 = vrot.lane.b32.xlu0 %v2397, 64
    %v2400 = vpop.permute.xlu0 %2399
    %v2402 = vsel %vm1536, %v1553, %v2400
    %v2403 = vld [vmem:[#allocation9] sm:$0xff]
    %v2404 = vld [vmem:[#allocation10] sm:$0xff]
    %2405 = vadd.xlane.f32.xlu0 %v2402
    %v2406 = vpop.xlane.xlu0 %2405
    %v2407 = vrcp.pop 128.0
    %v2408 = vmul.f32 %v2406, %v2407
    %v2409 = vmul.f32 %v2402, %v2402
    %2410 = vadd.xlane.f32.xlu0 %v2409
    %v2411 = vpop.xlane.xlu0 %2410
    %v2412 = vmul.f32 %v2411, %v2407
    %v2413 = vmul.f32 %v2408, %v2408
    %v2414 = vsub.f32 %v2412, %v2413
    %v2415 = vadd.f32 %v2414, 1e-05
    %v2416 = vrsqrt.pop %v2415
    %v2417 = vmul.f32 %v2403, %v2416
    %2419 = vset.pattern.permute.xlu0 0
    %2420 = vperm.xlu0 %2419, %v2417
    %v2421 = vpop.permute.xlu0 %2420
    %v2423 = vmul.f32 %v2402, %v2421
    %v2424 = vmul.f32 %v2408, %v2417
    %v2425 = vsub.f32 %v2404, %v2424
    %2427 = vset.pattern.permute.xlu0 0
    %2428 = vperm.xlu0 %2427, %v2425
    %v2429 = vpop.permute.xlu0 %2428
    %v2431 = vadd.f32 %v2423, %v2429
    %v2432 = vmax.f32 %v2431, 0.0
    %v2433 = vld [vmem:[#allocation12] sm:$0xff]
    %v2434 = vld [vmem:[#allocation12 + $0x8] sm:$0xff]
    %v2435 = vld [vmem:[#allocation12 + $0x10] sm:$0xff]
    %v2436 = vld [vmem:[#allocation12 + $0x18] sm:$0xff]
    %v2437 = vld [vmem:[#allocation12 + $0x20] sm:$0xff]
    %v2438 = vld [vmem:[#allocation12 + $0x28] sm:$0xff]
    %v2439 = vld [vmem:[#allocation12 + $0x30] sm:$0xff]
    %v2440 = vld [vmem:[#allocation12 + $0x38] sm:$0xff]
    %v2441 = vld [vmem:[#allocation12 + $0x40] sm:$0xff]
    %v2442 = vld [vmem:[#allocation12 + $0x48] sm:$0xff]
    %v2443 = vld [vmem:[#allocation12 + $0x50] sm:$0xff]
    %v2444 = vld [vmem:[#allocation12 + $0x58] sm:$0xff]
    %v2445 = vld [vmem:[#allocation12 + $0x60] sm:$0xff]
    %v2446 = vld [vmem:[#allocation12 + $0x68] sm:$0xff]
    %v2447 = vld [vmem:[#allocation12 + $0x70] sm:$0xff]
    %v2448 = vld [vmem:[#allocation12 + $0x78] sm:$0xff]
    %v2449 = vld [vmem:[#allocation12 + $0x80] sm:$0xff]
    %v2450 = vld [vmem:[#allocation12 + $0x88] sm:$0xff]
    %v2451 = vld [vmem:[#allocation12 + $0x90] sm:$0xff]
    %v2452 = vld [vmem:[#allocation12 + $0x98] sm:$0xff]
    %v2453 = vld [vmem:[#allocation12 + $0xa0] sm:$0xff]
    %v2454 = vld [vmem:[#allocation12 + $0xa8] sm:$0xff]
    %v2455 = vld [vmem:[#allocation12 + $0xb0] sm:$0xff]
    %v2456 = vld [vmem:[#allocation12 + $0xb8] sm:$0xff]
    %v2457 = vld [vmem:[#allocation12 + $0xc0] sm:$0xff]
    %v2458 = vld [vmem:[#allocation12 + $0xc8] sm:$0xff]
    %v2459 = vld [vmem:[#allocation12 + $0xd0] sm:$0xff]
    %v2460 = vld [vmem:[#allocation12 + $0xd8] sm:$0xff]
    %v2461 = vld [vmem:[#allocation12 + $0xe0] sm:$0xff]
    %v2462 = vld [vmem:[#allocation12 + $0xe8] sm:$0xff]
    %v2463 = vld [vmem:[#allocation12 + $0xf0] sm:$0xff]
    %v2464 = vld [vmem:[#allocation12 + $0xf8] sm:$0xff]
    %v2465 = vld [vmem:[#allocation12 + $0x100] sm:$0xff]
    %v2466 = vld [vmem:[#allocation12 + $0x108] sm:$0xff]
    %v2467 = vld [vmem:[#allocation12 + $0x110] sm:$0xff]
    %v2468 = vld [vmem:[#allocation12 + $0x118] sm:$0xff]
    %2469 = vmatprep.subr.mxu0 0.0
    %2470 = vmatpush1.xpose.msra.mxu0 0.0
    %2471 = vmatprep.subr.mxu0 0.0
    %2472 = vmatpush1.xpose.msra.mxu0 0.0
    %2473 = vmatprep.subr.mxu0 0.0
    %2474 = vmatpush1.xpose.msra.mxu0 0.0
    %2475 = vmatprep.subr.mxu0 0.0
    %2476 = vmatpush1.xpose.msra.mxu0 0.0
    %2477 = vmatprep.subr.mxu0 0.0
    %2478 = vmatpush1.xpose.msra.mxu0 0.0
    %2479 = vmatprep.subr.mxu0 0.0
    %2480 = vmatpush1.xpose.msra.mxu0 0.0
    %2481 = vmatprep.subr.mxu0 0.0
    %2482 = vmatpush1.xpose.msra.mxu0 0.0
    %2483 = vmatprep.subr.mxu0 0.0
    %2484 = vmatpush1.xpose.msra.mxu0 0.0
    %2485 = vmatprep.subr.mxu0 0.0
    %2486 = vmatpush1.xpose.msra.mxu0 0.0
    %2487 = vmatprep.subr.mxu0 0.0
    %2488 = vmatpush1.xpose.msra.mxu0 0.0
    %2489 = vmatprep.subr.mxu0 0.0
    %2490 = vmatpush1.xpose.msra.mxu0 0.0
    %2491 = vmatprep.subr.mxu0 0.0
    %2492 = vmatpush1.xpose.msra.mxu0 0.0
    %2493 = vmatprep.subr.mxu0 0.0
    %2494 = vmatpush1.xpose.msra.mxu0 0.0
    %2495 = vmatprep.subr.mxu0 0.0
    %2496 = vmatpush1.xpose.msra.mxu0 0.0
    %2497 = vmatprep.subr.mxu0 0.0
    %2498 = vmatpush1.xpose.msra.mxu0 0.0
    %2499 = vmatprep.subr.mxu0 0.0
    %2500 = vmatpush1.xpose.msra.mxu0 %v2432
    %2501 = vmatprep.subr.mxu0 0.0
    %2502 = vmatpush2.xpose.msra.mxu0 0.0
    %2503 = vmatprep.subr.mxu0 0.0
    %2504 = vmatpush2.xpose.msra.mxu0 0.0
    %2505 = vmatprep.subr.mxu0 0.0
    %2506 = vmatpush2.xpose.msra.mxu0 0.0
    %2507 = vmatprep.subr.mxu0 0.0
    %2508 = vmatpush2.xpose.msra.mxu0 0.0
    %2509 = vmatprep.subr.mxu0 0.0
    %2510 = vmatpush2.xpose.msra.mxu0 0.0
    %2511 = vmatprep.subr.mxu0 0.0
    %2512 = vmatpush2.xpose.msra.mxu0 0.0
    %2513 = vmatprep.subr.mxu0 0.0
    %2514 = vmatpush2.xpose.msra.mxu0 0.0
    %2515 = vmatprep.subr.mxu0 0.0
    %2516 = vmatpush2.xpose.msra.mxu0 0.0
    %2517 = vmatprep.subr.mxu0 0.0
    %2518 = vmatpush2.xpose.msra.mxu0 0.0
    %2519 = vmatprep.subr.mxu0 0.0
    %2520 = vmatpush2.xpose.msra.mxu0 0.0
    %2521 = vmatprep.subr.mxu0 0.0
    %2522 = vmatpush2.xpose.msra.mxu0 0.0
    %2523 = vmatprep.subr.mxu0 0.0
    %2524 = vmatpush2.xpose.msra.mxu0 0.0
    %2525 = vmatprep.subr.mxu0 0.0
    %2526 = vmatpush2.xpose.msra.mxu0 0.0
    %2527 = vmatprep.subr.mxu0 0.0
    %2528 = vmatpush2.xpose.msra.mxu0 0.0
    %2529 = vmatprep.subr.mxu0 0.0
    %2530 = vmatpush2.xpose.msra.mxu0 0.0
    %2531 = vmatprep.subr.mxu0 0.0
    %2532 = vmatpush2.xpose.msra.mxu0 0.0
    %2533 = vmatprep.mubr.f32.mxu0 0.0
    %2534 = vmatmul.mubr.f32.gmra.mxu0 %v2433
    %v2535 = vpop.f32.mrf.mxu0
    %v2536 = vadd.f32 0.0, %v2535
    %v2537 = vpop.f32.mrf.mxu0
    %2538 = vmatprep.mubr.f32.mxu0 0.0
    %2539 = vmatmul.mubr.f32.gmra.mxu0 %v2434
    %v2540 = vpop.f32.mrf.mxu0
    %v2541 = vadd.f32 0.0, %v2540
    %v2542 = vpop.f32.mrf.mxu0
    %2543 = vmatprep.mubr.f32.mxu0 0.0
    %2544 = vmatmul.mubr.f32.gmra.mxu0 %v2435
    %v2545 = vpop.f32.mrf.mxu0
    %v2546 = vadd.f32 0.0, %v2545
    %v2547 = vpop.f32.mrf.mxu0
    %2548 = vmatprep.mubr.f32.mxu0 0.0
    %2549 = vmatmul.mubr.f32.gmra.mxu0 %v2436
    %v2550 = vpop.f32.mrf.mxu0
    %v2551 = vadd.f32 0.0, %v2550
    %v2552 = vpop.f32.mrf.mxu0
    %2553 = vmatprep.mubr.f32.mxu0 0.0
    %2554 = vmatmul.mubr.f32.gmra.mxu0 %v2437
    %v2555 = vpop.f32.mrf.mxu0
    %v2556 = vadd.f32 0.0, %v2555
    %v2557 = vpop.f32.mrf.mxu0
    %2558 = vmatprep.mubr.f32.mxu0 0.0
    %2559 = vmatmul.mubr.f32.gmra.mxu0 %v2438
    %v2560 = vpop.f32.mrf.mxu0
    %v2561 = vadd.f32 0.0, %v2560
    %v2562 = vpop.f32.mrf.mxu0
    %2563 = vmatprep.mubr.f32.mxu0 0.0
    %2564 = vmatmul.mubr.f32.gmra.mxu0 %v2439
    %v2565 = vpop.f32.mrf.mxu0
    %v2566 = vadd.f32 0.0, %v2565
    %v2567 = vpop.f32.mrf.mxu0
    %2568 = vmatprep.mubr.f32.mxu0 0.0
    %2569 = vmatmul.mubr.f32.gmra.mxu0 %v2440
    %v2570 = vpop.f32.mrf.mxu0
    %v2571 = vadd.f32 0.0, %v2570
    %v2572 = vpop.f32.mrf.mxu0
    %2573 = vmatprep.mubr.f32.mxu0 0.0
    %2574 = vmatmul.mubr.f32.gmra.mxu0 %v2441
    %v2575 = vpop.f32.mrf.mxu0
    %v2576 = vadd.f32 0.0, %v2575
    %v2577 = vpop.f32.mrf.mxu0
    %2578 = vmatprep.mubr.f32.mxu0 0.0
    %2579 = vmatmul.mubr.f32.gmra.mxu0 %v2442
    %v2580 = vpop.f32.mrf.mxu0
    %v2581 = vadd.f32 0.0, %v2580
    %v2582 = vpop.f32.mrf.mxu0
    %2583 = vmatprep.mubr.f32.mxu0 0.0
    %2584 = vmatmul.mubr.f32.gmra.mxu0 %v2443
    %v2585 = vpop.f32.mrf.mxu0
    %v2586 = vadd.f32 0.0, %v2585
    %v2587 = vpop.f32.mrf.mxu0
    %2588 = vmatprep.mubr.f32.mxu0 0.0
    %2589 = vmatmul.mubr.f32.gmra.mxu0 %v2444
    %v2590 = vpop.f32.mrf.mxu0
    %v2591 = vadd.f32 0.0, %v2590
    %v2592 = vpop.f32.mrf.mxu0
    %2593 = vmatprep.mubr.f32.mxu0 0.0
    %2594 = vmatmul.mubr.f32.gmra.mxu0 %v2445
    %v2595 = vpop.f32.mrf.mxu0
    %v2596 = vadd.f32 0.0, %v2595
    %v2597 = vpop.f32.mrf.mxu0
    %2598 = vmatprep.mubr.f32.mxu0 0.0
    %2599 = vmatmul.mubr.f32.gmra.mxu0 %v2446
    %v2600 = vpop.f32.mrf.mxu0
    %v2601 = vadd.f32 0.0, %v2600
    %v2602 = vpop.f32.mrf.mxu0
    %2603 = vmatprep.mubr.f32.mxu0 0.0
    %2604 = vmatmul.mubr.f32.gmra.mxu0 %v2447
    %v2605 = vpop.f32.mrf.mxu0
    %v2606 = vadd.f32 0.0, %v2605
    %v2607 = vpop.f32.mrf.mxu0
    %2608 = vmatprep.mubr.f32.mxu0 0.0
    %2609 = vmatmul.mubr.f32.gmra.mxu0 %v2448
    %v2610 = vpop.f32.mrf.mxu0
    %v2611 = vadd.f32 0.0, %v2610
    %v2612 = vpop.f32.mrf.mxu0
    %2613 = vmatprep.mubr.f32.mxu0 0.0
    %2614 = vmatmul.mubr.f32.gmra.mxu0 %v2449
    %v2615 = vpop.f32.mrf.mxu0
    %v2616 = vadd.f32 0.0, %v2615
    %v2617 = vpop.f32.mrf.mxu0
    %2618 = vmatprep.mubr.f32.mxu0 0.0
    %2619 = vmatmul.mubr.f32.gmra.mxu0 %v2450
    %v2620 = vpop.f32.mrf.mxu0
    %v2621 = vadd.f32 0.0, %v2620
    %v2622 = vpop.f32.mrf.mxu0
    %2623 = vmatprep.mubr.f32.mxu0 0.0
    %2624 = vmatmul.mubr.f32.gmra.mxu0 %v2451
    %v2625 = vpop.f32.mrf.mxu0
    %v2626 = vadd.f32 0.0, %v2625
    %v2627 = vpop.f32.mrf.mxu0
    %2628 = vmatprep.mubr.f32.mxu0 0.0
    %2629 = vmatmul.mubr.f32.gmra.mxu0 %v2452
    %v2630 = vpop.f32.mrf.mxu0
    %v2631 = vadd.f32 0.0, %v2630
    %v2632 = vpop.f32.mrf.mxu0
    %2633 = vmatprep.mubr.f32.mxu0 0.0
    %2634 = vmatmul.mubr.f32.gmra.mxu0 %v2453
    %v2635 = vpop.f32.mrf.mxu0
    %v2636 = vadd.f32 0.0, %v2635
    %v2637 = vpop.f32.mrf.mxu0
    %2638 = vmatprep.mubr.f32.mxu0 0.0
    %2639 = vmatmul.mubr.f32.gmra.mxu0 %v2454
    %v2640 = vpop.f32.mrf.mxu0
    %v2641 = vadd.f32 0.0, %v2640
    %v2642 = vpop.f32.mrf.mxu0
    %2643 = vmatprep.mubr.f32.mxu0 0.0
    %2644 = vmatmul.mubr.f32.gmra.mxu0 %v2455
    %v2645 = vpop.f32.mrf.mxu0
    %v2646 = vadd.f32 0.0, %v2645
    %v2647 = vpop.f32.mrf.mxu0
    %2648 = vmatprep.mubr.f32.mxu0 0.0
    %2649 = vmatmul.mubr.f32.gmra.mxu0 %v2456
    %v2650 = vpop.f32.mrf.mxu0
    %v2651 = vadd.f32 0.0, %v2650
    %v2652 = vpop.f32.mrf.mxu0
    %2653 = vmatprep.mubr.f32.mxu0 0.0
    %2654 = vmatmul.mubr.f32.gmra.mxu0 %v2457
    %v2655 = vpop.f32.mrf.mxu0
    %v2656 = vadd.f32 0.0, %v2655
    %v2657 = vpop.f32.mrf.mxu0
    %2658 = vmatprep.mubr.f32.mxu0 0.0
    %2659 = vmatmul.mubr.f32.gmra.mxu0 %v2458
    %v2660 = vpop.f32.mrf.mxu0
    %v2661 = vadd.f32 0.0, %v2660
    %v2662 = vpop.f32.mrf.mxu0
    %2663 = vmatprep.mubr.f32.mxu0 0.0
    %2664 = vmatmul.mubr.f32.gmra.mxu0 %v2459
    %v2665 = vpop.f32.mrf.mxu0
    %v2666 = vadd.f32 0.0, %v2665
    %v2667 = vpop.f32.mrf.mxu0
    %2668 = vmatprep.mubr.f32.mxu0 0.0
    %2669 = vmatmul.mubr.f32.gmra.mxu0 %v2460
    %v2670 = vpop.f32.mrf.mxu0
    %v2671 = vadd.f32 0.0, %v2670
    %v2672 = vpop.f32.mrf.mxu0
    %2673 = vmatprep.mubr.f32.mxu0 0.0
    %2674 = vmatmul.mubr.f32.gmra.mxu0 %v2461
    %v2675 = vpop.f32.mrf.mxu0
    %v2676 = vadd.f32 0.0, %v2675
    %v2677 = vpop.f32.mrf.mxu0
    %2678 = vmatprep.mubr.f32.mxu0 0.0
    %2679 = vmatmul.mubr.f32.gmra.mxu0 %v2462
    %v2680 = vpop.f32.mrf.mxu0
    %v2681 = vadd.f32 0.0, %v2680
    %v2682 = vpop.f32.mrf.mxu0
    %2683 = vmatprep.mubr.f32.mxu0 0.0
    %2684 = vmatmul.mubr.f32.gmra.mxu0 %v2463
    %v2685 = vpop.f32.mrf.mxu0
    %v2686 = vadd.f32 0.0, %v2685
    %v2687 = vpop.f32.mrf.mxu0
    %2688 = vmatprep.mubr.f32.mxu0 0.0
    %2689 = vmatmul.mubr.f32.gmra.mxu0 %v2464
    %v2690 = vpop.f32.mrf.mxu0
    %v2691 = vadd.f32 0.0, %v2690
    %v2692 = vpop.f32.mrf.mxu0
    %2693 = vmatprep.mubr.f32.mxu0 0.0
    %2694 = vmatmul.mubr.f32.gmra.mxu0 %v2465
    %v2695 = vpop.f32.mrf.mxu0
    %v2696 = vadd.f32 0.0, %v2695
    %v2697 = vpop.f32.mrf.mxu0
    %2698 = vmatprep.mubr.f32.mxu0 0.0
    %2699 = vmatmul.mubr.f32.gmra.mxu0 %v2466
    %v2700 = vpop.f32.mrf.mxu0
    %v2701 = vadd.f32 0.0, %v2700
    %v2702 = vpop.f32.mrf.mxu0
    %2703 = vmatprep.mubr.f32.mxu0 0.0
    %2704 = vmatmul.mubr.f32.gmra.mxu0 %v2467
    %v2705 = vpop.f32.mrf.mxu0
    %v2706 = vadd.f32 0.0, %v2705
    %v2707 = vpop.f32.mrf.mxu0
    %2708 = vmatprep.mubr.f32.mxu0 0.0
    %2709 = vmatmul.mubr.f32.gmra.mxu0 %v2468
    %v2710 = vpop.f32.mrf.mxu0
    %v2711 = vadd.f32 0.0, %v2710
    %v2712 = vpop.f32.mrf.mxu0
    %2713 = vdwg.mxu0
    %v2714 = vld [vmem:[#allocation13] sm:$0xff]
    %v2715 = vld [vmem:[#allocation13 + $0x8] sm:$0xff]
    %v2716 = vld [vmem:[#allocation13 + $0x10] sm:$0xff]
    %v2717 = vld [vmem:[#allocation13 + $0x18] sm:$0xff]
    %v2718 = vld [vmem:[#allocation13 + $0x20] sm:$0xff]
    %v2719 = vld [vmem:[#allocation13 + $0x28] sm:$0xff]
    %v2720 = vld [vmem:[#allocation13 + $0x30] sm:$0xff]
    %v2721 = vld [vmem:[#allocation13 + $0x38] sm:$0xff]
    %v2722 = vld [vmem:[#allocation13 + $0x40] sm:$0xff]
    %vm2723 = vcmask 64512
    %v2725 = vsel %vm2723, %v2536, 0
    %v2728 = vsel %vm2723, %v2541, 0
    %v2731 = vsel %vm2723, %v2546, 0
    %v2734 = vsel %vm2723, %v2551, 0
    %2736 = vmatprep.subr.mxu0 0.0
    %2737 = vmatpush1.msra.mxu0 0.0
    %2738 = vmatprep.subr.mxu0 0.0
    %2739 = vmatpush1.msra.mxu0 0.0
    %2740 = vmatprep.subr.mxu0 0.0
    %2741 = vmatpush1.msra.mxu0 0.0
    %2742 = vmatprep.subr.mxu0 0.0
    %2743 = vmatpush1.msra.mxu0 0.0
    %2744 = vmatprep.subr.mxu0 0.0
    %2745 = vmatpush1.msra.mxu0 0.0
    %2746 = vmatprep.subr.mxu0 0.0
    %2747 = vmatpush1.msra.mxu0 0.0
    %2748 = vmatprep.subr.mxu0 0.0
    %2749 = vmatpush1.msra.mxu0 0.0
    %2750 = vmatprep.subr.mxu0 0.0
    %2751 = vmatpush1.msra.mxu0 0.0
    %2752 = vmatprep.subr.mxu0 0.0
    %2753 = vmatpush1.msra.mxu0 0.0
    %2754 = vmatprep.subr.mxu0 0.0
    %2755 = vmatpush1.msra.mxu0 0.0
    %2756 = vmatprep.subr.mxu0 0.0
    %2757 = vmatpush1.msra.mxu0 0.0
    %2758 = vmatprep.subr.mxu0 0.0
    %2759 = vmatpush1.msra.mxu0 0.0
    %2760 = vmatprep.subr.mxu0 0.0
    %2761 = vmatpush1.msra.mxu0 0.0
    %2762 = vmatprep.subr.mxu0 0.0
    %2763 = vmatpush1.msra.mxu0 0.0
    %2764 = vmatprep.subr.mxu0 0.0
    %2765 = vmatpush1.msra.mxu0 0.0
    %2766 = vmatprep.subr.mxu0 0.0
    %2767 = vmatpush1.msra.mxu0 %v2714
    %2768 = vmatprep.subr.mxu0 0.0
    %2769 = vmatpush2.msra.mxu0 0.0
    %2770 = vmatprep.subr.mxu0 0.0
    %2771 = vmatpush2.msra.mxu0 0.0
    %2772 = vmatprep.subr.mxu0 0.0
    %2773 = vmatpush2.msra.mxu0 0.0
    %2774 = vmatprep.subr.mxu0 0.0
    %2775 = vmatpush2.msra.mxu0 0.0
    %2776 = vmatprep.subr.mxu0 0.0
    %2777 = vmatpush2.msra.mxu0 0.0
    %2778 = vmatprep.subr.mxu0 0.0
    %2779 = vmatpush2.msra.mxu0 0.0
    %2780 = vmatprep.subr.mxu0 0.0
    %2781 = vmatpush2.msra.mxu0 0.0
    %2782 = vmatprep.subr.mxu0 0.0
    %2783 = vmatpush2.msra.mxu0 0.0
    %2784 = vmatprep.subr.mxu0 0.0
    %2785 = vmatpush2.msra.mxu0 0.0
    %2786 = vmatprep.subr.mxu0 0.0
    %2787 = vmatpush2.msra.mxu0 0.0
    %2788 = vmatprep.subr.mxu0 0.0
    %2789 = vmatpush2.msra.mxu0 0.0
    %2790 = vmatprep.subr.mxu0 0.0
    %2791 = vmatpush2.msra.mxu0 0.0
    %2792 = vmatprep.subr.mxu0 0.0
    %2793 = vmatpush2.msra.mxu0 0.0
    %2794 = vmatprep.subr.mxu0 0.0
    %2795 = vmatpush2.msra.mxu0 0.0
    %2796 = vmatprep.subr.mxu0 0.0
    %2797 = vmatpush2.msra.mxu0 0.0
    %2798 = vmatprep.subr.mxu0 0.0
    %2799 = vmatpush2.msra.mxu0 0.0
    %2800 = vmatprep.mubr.f32.mxu0 0.0
    %2801 = vmatmul.mubr.f32.gmra.mxu0 %v2725
    %v2802 = vpop.f32.mrf.mxu0
    %v2803 = vadd.f32 0.0, %v2802
    %v2804 = vpop.f32.mrf.mxu0
    %2805 = vmatprep.mubr.f32.mxu0 0.0
    %2806 = vmatmul.mubr.f32.gmra.mxu0 %v2728
    %v2807 = vpop.f32.mrf.mxu0
    %v2808 = vadd.f32 0.0, %v2807
    %v2809 = vpop.f32.mrf.mxu0
    %2810 = vmatprep.mubr.f32.mxu0 0.0
    %2811 = vmatmul.mubr.f32.gmra.mxu0 %v2731
    %v2812 = vpop.f32.mrf.mxu0
    %v2813 = vadd.f32 0.0, %v2812
    %v2814 = vpop.f32.mrf.mxu0
    %2815 = vmatprep.mubr.f32.mxu0 0.0
    %2816 = vmatmul.mubr.f32.gmra.mxu0 %v2734
    %v2817 = vpop.f32.mrf.mxu0
    %v2818 = vadd.f32 0.0, %v2817
    %v2819 = vpop.f32.mrf.mxu0
    %2820 = vdwg.mxu0
    %v2822 = vsel %vm2723, %v2556, 0
    %v2825 = vsel %vm2723, %v2561, 0
    %v2828 = vsel %vm2723, %v2566, 0
    %v2831 = vsel %vm2723, %v2571, 0
    %2833 = vmatprep.subr.mxu0 0.0
    %2834 = vmatpush1.msra.mxu0 0.0
    %2835 = vmatprep.subr.mxu0 0.0
    %2836 = vmatpush1.msra.mxu0 0.0
    %2837 = vmatprep.subr.mxu0 0.0
    %2838 = vmatpush1.msra.mxu0 0.0
    %2839 = vmatprep.subr.mxu0 0.0
    %2840 = vmatpush1.msra.mxu0 0.0
    %2841 = vmatprep.subr.mxu0 0.0
    %2842 = vmatpush1.msra.mxu0 0.0
    %2843 = vmatprep.subr.mxu0 0.0
    %2844 = vmatpush1.msra.mxu0 0.0
    %2845 = vmatprep.subr.mxu0 0.0
    %2846 = vmatpush1.msra.mxu0 0.0
    %2847 = vmatprep.subr.mxu0 0.0
    %2848 = vmatpush1.msra.mxu0 0.0
    %2849 = vmatprep.subr.mxu0 0.0
    %2850 = vmatpush1.msra.mxu0 0.0
    %2851 = vmatprep.subr.mxu0 0.0
    %2852 = vmatpush1.msra.mxu0 0.0
    %2853 = vmatprep.subr.mxu0 0.0
    %2854 = vmatpush1.msra.mxu0 0.0
    %2855 = vmatprep.subr.mxu0 0.0
    %2856 = vmatpush1.msra.mxu0 0.0
    %2857 = vmatprep.subr.mxu0 0.0
    %2858 = vmatpush1.msra.mxu0 0.0
    %2859 = vmatprep.subr.mxu0 0.0
    %2860 = vmatpush1.msra.mxu0 0.0
    %2861 = vmatprep.subr.mxu0 0.0
    %2862 = vmatpush1.msra.mxu0 0.0
    %2863 = vmatprep.subr.mxu0 0.0
    %2864 = vmatpush1.msra.mxu0 %v2715
    %2865 = vmatprep.subr.mxu0 0.0
    %2866 = vmatpush2.msra.mxu0 0.0
    %2867 = vmatprep.subr.mxu0 0.0
    %2868 = vmatpush2.msra.mxu0 0.0
    %2869 = vmatprep.subr.mxu0 0.0
    %2870 = vmatpush2.msra.mxu0 0.0
    %2871 = vmatprep.subr.mxu0 0.0
    %2872 = vmatpush2.msra.mxu0 0.0
    %2873 = vmatprep.subr.mxu0 0.0
    %2874 = vmatpush2.msra.mxu0 0.0
    %2875 = vmatprep.subr.mxu0 0.0
    %2876 = vmatpush2.msra.mxu0 0.0
    %2877 = vmatprep.subr.mxu0 0.0
    %2878 = vmatpush2.msra.mxu0 0.0
    %2879 = vmatprep.subr.mxu0 0.0
    %2880 = vmatpush2.msra.mxu0 0.0
    %2881 = vmatprep.subr.mxu0 0.0
    %2882 = vmatpush2.msra.mxu0 0.0
    %2883 = vmatprep.subr.mxu0 0.0
    %2884 = vmatpush2.msra.mxu0 0.0
    %2885 = vmatprep.subr.mxu0 0.0
    %2886 = vmatpush2.msra.mxu0 0.0
    %2887 = vmatprep.subr.mxu0 0.0
    %2888 = vmatpush2.msra.mxu0 0.0
    %2889 = vmatprep.subr.mxu0 0.0
    %2890 = vmatpush2.msra.mxu0 0.0
    %2891 = vmatprep.subr.mxu0 0.0
    %2892 = vmatpush2.msra.mxu0 0.0
    %2893 = vmatprep.subr.mxu0 0.0
    %2894 = vmatpush2.msra.mxu0 0.0
    %2895 = vmatprep.subr.mxu0 0.0
    %2896 = vmatpush2.msra.mxu0 0.0
    %2897 = vmatprep.mubr.f32.mxu0 0.0
    %2898 = vmatmul.mubr.f32.gmra.mxu0 %v2822
    %v2899 = vpop.f32.mrf.mxu0
    %v2900 = vadd.f32 0.0, %v2899
    %v2901 = vpop.f32.mrf.mxu0
    %2902 = vmatprep.mubr.f32.mxu0 0.0
    %2903 = vmatmul.mubr.f32.gmra.mxu0 %v2825
    %v2904 = vpop.f32.mrf.mxu0
    %v2905 = vadd.f32 0.0, %v2904
    %v2906 = vpop.f32.mrf.mxu0
    %2907 = vmatprep.mubr.f32.mxu0 0.0
    %2908 = vmatmul.mubr.f32.gmra.mxu0 %v2828
    %v2909 = vpop.f32.mrf.mxu0
    %v2910 = vadd.f32 0.0, %v2909
    %v2911 = vpop.f32.mrf.mxu0
    %2912 = vmatprep.mubr.f32.mxu0 0.0
    %2913 = vmatmul.mubr.f32.gmra.mxu0 %v2831
    %v2914 = vpop.f32.mrf.mxu0
    %v2915 = vadd.f32 0.0, %v2914
    %v2916 = vpop.f32.mrf.mxu0
    %2917 = vdwg.mxu0
    %v2919 = vsel %vm2723, %v2576, 0
    %v2922 = vsel %vm2723, %v2581, 0
    %v2925 = vsel %vm2723, %v2586, 0
    %v2928 = vsel %vm2723, %v2591, 0
    %2930 = vmatprep.subr.mxu0 0.0
    %2931 = vmatpush1.msra.mxu0 0.0
    %2932 = vmatprep.subr.mxu0 0.0
    %2933 = vmatpush1.msra.mxu0 0.0
    %2934 = vmatprep.subr.mxu0 0.0
    %2935 = vmatpush1.msra.mxu0 0.0
    %2936 = vmatprep.subr.mxu0 0.0
    %2937 = vmatpush1.msra.mxu0 0.0
    %2938 = vmatprep.subr.mxu0 0.0
    %2939 = vmatpush1.msra.mxu0 0.0
    %2940 = vmatprep.subr.mxu0 0.0
    %2941 = vmatpush1.msra.mxu0 0.0
    %2942 = vmatprep.subr.mxu0 0.0
    %2943 = vmatpush1.msra.mxu0 0.0
    %2944 = vmatprep.subr.mxu0 0.0
    %2945 = vmatpush1.msra.mxu0 0.0
    %2946 = vmatprep.subr.mxu0 0.0
    %2947 = vmatpush1.msra.mxu0 0.0
    %2948 = vmatprep.subr.mxu0 0.0
    %2949 = vmatpush1.msra.mxu0 0.0
    %2950 = vmatprep.subr.mxu0 0.0
    %2951 = vmatpush1.msra.mxu0 0.0
    %2952 = vmatprep.subr.mxu0 0.0
    %2953 = vmatpush1.msra.mxu0 0.0
    %2954 = vmatprep.subr.mxu0 0.0
    %2955 = vmatpush1.msra.mxu0 0.0
    %2956 = vmatprep.subr.mxu0 0.0
    %2957 = vmatpush1.msra.mxu0 0.0
    %2958 = vmatprep.subr.mxu0 0.0
    %2959 = vmatpush1.msra.mxu0 0.0
    %2960 = vmatprep.subr.mxu0 0.0
    %2961 = vmatpush1.msra.mxu0 %v2716
    %2962 = vmatprep.subr.mxu0 0.0
    %2963 = vmatpush2.msra.mxu0 0.0
    %2964 = vmatprep.subr.mxu0 0.0
    %2965 = vmatpush2.msra.mxu0 0.0
    %2966 = vmatprep.subr.mxu0 0.0
    %2967 = vmatpush2.msra.mxu0 0.0
    %2968 = vmatprep.subr.mxu0 0.0
    %2969 = vmatpush2.msra.mxu0 0.0
    %2970 = vmatprep.subr.mxu0 0.0
    %2971 = vmatpush2.msra.mxu0 0.0
    %2972 = vmatprep.subr.mxu0 0.0
    %2973 = vmatpush2.msra.mxu0 0.0
    %2974 = vmatprep.subr.mxu0 0.0
    %2975 = vmatpush2.msra.mxu0 0.0
    %2976 = vmatprep.subr.mxu0 0.0
    %2977 = vmatpush2.msra.mxu0 0.0
    %2978 = vmatprep.subr.mxu0 0.0
    %2979 = vmatpush2.msra.mxu0 0.0
    %2980 = vmatprep.subr.mxu0 0.0
    %2981 = vmatpush2.msra.mxu0 0.0
    %2982 = vmatprep.subr.mxu0 0.0
    %2983 = vmatpush2.msra.mxu0 0.0
    %2984 = vmatprep.subr.mxu0 0.0
    %2985 = vmatpush2.msra.mxu0 0.0
    %2986 = vmatprep.subr.mxu0 0.0
    %2987 = vmatpush2.msra.mxu0 0.0
    %2988 = vmatprep.subr.mxu0 0.0
    %2989 = vmatpush2.msra.mxu0 0.0
    %2990 = vmatprep.subr.mxu0 0.0
    %2991 = vmatpush2.msra.mxu0 0.0
    %2992 = vmatprep.subr.mxu0 0.0
    %2993 = vmatpush2.msra.mxu0 0.0
    %2994 = vmatprep.mubr.f32.mxu0 0.0
    %2995 = vmatmul.mubr.f32.gmra.mxu0 %v2919
    %v2996 = vpop.f32.mrf.mxu0
    %v2997 = vadd.f32 0.0, %v2996
    %v2998 = vpop.f32.mrf.mxu0
    %2999 = vmatprep.mubr.f32.mxu0 0.0
    %3000 = vmatmul.mubr.f32.gmra.mxu0 %v2922
    %v3001 = vpop.f32.mrf.mxu0
    %v3002 = vadd.f32 0.0, %v3001
    %v3003 = vpop.f32.mrf.mxu0
    %3004 = vmatprep.mubr.f32.mxu0 0.0
    %3005 = vmatmul.mubr.f32.gmra.mxu0 %v2925
    %v3006 = vpop.f32.mrf.mxu0
    %v3007 = vadd.f32 0.0, %v3006
    %v3008 = vpop.f32.mrf.mxu0
    %3009 = vmatprep.mubr.f32.mxu0 0.0
    %3010 = vmatmul.mubr.f32.gmra.mxu0 %v2928
    %v3011 = vpop.f32.mrf.mxu0
    %v3012 = vadd.f32 0.0, %v3011
    %v3013 = vpop.f32.mrf.mxu0
    %3014 = vdwg.mxu0
    %v3016 = vsel %vm2723, %v2596, 0
    %v3019 = vsel %vm2723, %v2601, 0
    %v3022 = vsel %vm2723, %v2606, 0
    %v3025 = vsel %vm2723, %v2611, 0
    %3027 = vmatprep.subr.mxu0 0.0
    %3028 = vmatpush1.msra.mxu0 0.0
    %3029 = vmatprep.subr.mxu0 0.0
    %3030 = vmatpush1.msra.mxu0 0.0
    %3031 = vmatprep.subr.mxu0 0.0
    %3032 = vmatpush1.msra.mxu0 0.0
    %3033 = vmatprep.subr.mxu0 0.0
    %3034 = vmatpush1.msra.mxu0 0.0
    %3035 = vmatprep.subr.mxu0 0.0
    %3036 = vmatpush1.msra.mxu0 0.0
    %3037 = vmatprep.subr.mxu0 0.0
    %3038 = vmatpush1.msra.mxu0 0.0
    %3039 = vmatprep.subr.mxu0 0.0
    %3040 = vmatpush1.msra.mxu0 0.0
    %3041 = vmatprep.subr.mxu0 0.0
    %3042 = vmatpush1.msra.mxu0 0.0
    %3043 = vmatprep.subr.mxu0 0.0
    %3044 = vmatpush1.msra.mxu0 0.0
    %3045 = vmatprep.subr.mxu0 0.0
    %3046 = vmatpush1.msra.mxu0 0.0
    %3047 = vmatprep.subr.mxu0 0.0
    %3048 = vmatpush1.msra.mxu0 0.0
    %3049 = vmatprep.subr.mxu0 0.0
    %3050 = vmatpush1.msra.mxu0 0.0
    %3051 = vmatprep.subr.mxu0 0.0
    %3052 = vmatpush1.msra.mxu0 0.0
    %3053 = vmatprep.subr.mxu0 0.0
    %3054 = vmatpush1.msra.mxu0 0.0
    %3055 = vmatprep.subr.mxu0 0.0
    %3056 = vmatpush1.msra.mxu0 0.0
    %3057 = vmatprep.subr.mxu0 0.0
    %3058 = vmatpush1.msra.mxu0 %v2717
    %3059 = vmatprep.subr.mxu0 0.0
    %3060 = vmatpush2.msra.mxu0 0.0
    %3061 = vmatprep.subr.mxu0 0.0
    %3062 = vmatpush2.msra.mxu0 0.0
    %3063 = vmatprep.subr.mxu0 0.0
    %3064 = vmatpush2.msra.mxu0 0.0
    %3065 = vmatprep.subr.mxu0 0.0
    %3066 = vmatpush2.msra.mxu0 0.0
    %3067 = vmatprep.subr.mxu0 0.0
    %3068 = vmatpush2.msra.mxu0 0.0
    %3069 = vmatprep.subr.mxu0 0.0
    %3070 = vmatpush2.msra.mxu0 0.0
    %3071 = vmatprep.subr.mxu0 0.0
    %3072 = vmatpush2.msra.mxu0 0.0
    %3073 = vmatprep.subr.mxu0 0.0
    %3074 = vmatpush2.msra.mxu0 0.0
    %3075 = vmatprep.subr.mxu0 0.0
    %3076 = vmatpush2.msra.mxu0 0.0
    %3077 = vmatprep.subr.mxu0 0.0
    %3078 = vmatpush2.msra.mxu0 0.0
    %3079 = vmatprep.subr.mxu0 0.0
    %3080 = vmatpush2.msra.mxu0 0.0
    %3081 = vmatprep.subr.mxu0 0.0
    %3082 = vmatpush2.msra.mxu0 0.0
    %3083 = vmatprep.subr.mxu0 0.0
    %3084 = vmatpush2.msra.mxu0 0.0
    %3085 = vmatprep.subr.mxu0 0.0
    %3086 = vmatpush2.msra.mxu0 0.0
    %3087 = vmatprep.subr.mxu0 0.0
    %3088 = vmatpush2.msra.mxu0 0.0
    %3089 = vmatprep.subr.mxu0 0.0
    %3090 = vmatpush2.msra.mxu0 0.0
    %3091 = vmatprep.mubr.f32.mxu0 0.0
    %3092 = vmatmul.mubr.f32.gmra.mxu0 %v3016
    %v3093 = vpop.f32.mrf.mxu0
    %v3094 = vadd.f32 0.0, %v3093
    %v3095 = vpop.f32.mrf.mxu0
    %3096 = vmatprep.mubr.f32.mxu0 0.0
    %3097 = vmatmul.mubr.f32.gmra.mxu0 %v3019
    %v3098 = vpop.f32.mrf.mxu0
    %v3099 = vadd.f32 0.0, %v3098
    %v3100 = vpop.f32.mrf.mxu0
    %3101 = vmatprep.mubr.f32.mxu0 0.0
    %3102 = vmatmul.mubr.f32.gmra.mxu0 %v3022
    %v3103 = vpop.f32.mrf.mxu0
    %v3104 = vadd.f32 0.0, %v3103
    %v3105 = vpop.f32.mrf.mxu0
    %3106 = vmatprep.mubr.f32.mxu0 0.0
    %3107 = vmatmul.mubr.f32.gmra.mxu0 %v3025
    %v3108 = vpop.f32.mrf.mxu0
    %v3109 = vadd.f32 0.0, %v3108
    %v3110 = vpop.f32.mrf.mxu0
    %3111 = vdwg.mxu0
    %v3113 = vsel %vm2723, %v2616, 0
    %v3116 = vsel %vm2723, %v2621, 0
    %v3119 = vsel %vm2723, %v2626, 0
    %v3122 = vsel %vm2723, %v2631, 0
    %3124 = vmatprep.subr.mxu0 0.0
    %3125 = vmatpush1.msra.mxu0 0.0
    %3126 = vmatprep.subr.mxu0 0.0
    %3127 = vmatpush1.msra.mxu0 0.0
    %3128 = vmatprep.subr.mxu0 0.0
    %3129 = vmatpush1.msra.mxu0 0.0
    %3130 = vmatprep.subr.mxu0 0.0
    %3131 = vmatpush1.msra.mxu0 0.0
    %3132 = vmatprep.subr.mxu0 0.0
    %3133 = vmatpush1.msra.mxu0 0.0
    %3134 = vmatprep.subr.mxu0 0.0
    %3135 = vmatpush1.msra.mxu0 0.0
    %3136 = vmatprep.subr.mxu0 0.0
    %3137 = vmatpush1.msra.mxu0 0.0
    %3138 = vmatprep.subr.mxu0 0.0
    %3139 = vmatpush1.msra.mxu0 0.0
    %3140 = vmatprep.subr.mxu0 0.0
    %3141 = vmatpush1.msra.mxu0 0.0
    %3142 = vmatprep.subr.mxu0 0.0
    %3143 = vmatpush1.msra.mxu0 0.0
    %3144 = vmatprep.subr.mxu0 0.0
    %3145 = vmatpush1.msra.mxu0 0.0
    %3146 = vmatprep.subr.mxu0 0.0
    %3147 = vmatpush1.msra.mxu0 0.0
    %3148 = vmatprep.subr.mxu0 0.0
    %3149 = vmatpush1.msra.mxu0 0.0
    %3150 = vmatprep.subr.mxu0 0.0
    %3151 = vmatpush1.msra.mxu0 0.0
    %3152 = vmatprep.subr.mxu0 0.0
    %3153 = vmatpush1.msra.mxu0 0.0
    %3154 = vmatprep.subr.mxu0 0.0
    %3155 = vmatpush1.msra.mxu0 %v2718
    %3156 = vmatprep.subr.mxu0 0.0
    %3157 = vmatpush2.msra.mxu0 0.0
    %3158 = vmatprep.subr.mxu0 0.0
    %3159 = vmatpush2.msra.mxu0 0.0
    %3160 = vmatprep.subr.mxu0 0.0
    %3161 = vmatpush2.msra.mxu0 0.0
    %3162 = vmatprep.subr.mxu0 0.0
    %3163 = vmatpush2.msra.mxu0 0.0
    %3164 = vmatprep.subr.mxu0 0.0
    %3165 = vmatpush2.msra.mxu0 0.0
    %3166 = vmatprep.subr.mxu0 0.0
    %3167 = vmatpush2.msra.mxu0 0.0
    %3168 = vmatprep.subr.mxu0 0.0
    %3169 = vmatpush2.msra.mxu0 0.0
    %3170 = vmatprep.subr.mxu0 0.0
    %3171 = vmatpush2.msra.mxu0 0.0
    %3172 = vmatprep.subr.mxu0 0.0
    %3173 = vmatpush2.msra.mxu0 0.0
    %3174 = vmatprep.subr.mxu0 0.0
    %3175 = vmatpush2.msra.mxu0 0.0
    %3176 = vmatprep.subr.mxu0 0.0
    %3177 = vmatpush2.msra.mxu0 0.0
    %3178 = vmatprep.subr.mxu0 0.0
    %3179 = vmatpush2.msra.mxu0 0.0
    %3180 = vmatprep.subr.mxu0 0.0
    %3181 = vmatpush2.msra.mxu0 0.0
    %3182 = vmatprep.subr.mxu0 0.0
    %3183 = vmatpush2.msra.mxu0 0.0
    %3184 = vmatprep.subr.mxu0 0.0
    %3185 = vmatpush2.msra.mxu0 0.0
    %3186 = vmatprep.subr.mxu0 0.0
    %3187 = vmatpush2.msra.mxu0 0.0
    %3188 = vmatprep.mubr.f32.mxu0 0.0
    %3189 = vmatmul.mubr.f32.gmra.mxu0 %v3113
    %v3190 = vpop.f32.mrf.mxu0
    %v3191 = vadd.f32 0.0, %v3190
    %v3192 = vpop.f32.mrf.mxu0
    %3193 = vmatprep.mubr.f32.mxu0 0.0
    %3194 = vmatmul.mubr.f32.gmra.mxu0 %v3116
    %v3195 = vpop.f32.mrf.mxu0
    %v3196 = vadd.f32 0.0, %v3195
    %v3197 = vpop.f32.mrf.mxu0
    %3198 = vmatprep.mubr.f32.mxu0 0.0
    %3199 = vmatmul.mubr.f32.gmra.mxu0 %v3119
    %v3200 = vpop.f32.mrf.mxu0
    %v3201 = vadd.f32 0.0, %v3200
    %v3202 = vpop.f32.mrf.mxu0
    %3203 = vmatprep.mubr.f32.mxu0 0.0
    %3204 = vmatmul.mubr.f32.gmra.mxu0 %v3122
    %v3205 = vpop.f32.mrf.mxu0
    %v3206 = vadd.f32 0.0, %v3205
    %v3207 = vpop.f32.mrf.mxu0
    %3208 = vdwg.mxu0
    %v3210 = vsel %vm2723, %v2636, 0
    %v3213 = vsel %vm2723, %v2641, 0
    %v3216 = vsel %vm2723, %v2646, 0
    %v3219 = vsel %vm2723, %v2651, 0
    %3221 = vmatprep.subr.mxu0 0.0
    %3222 = vmatpush1.msra.mxu0 0.0
    %3223 = vmatprep.subr.mxu0 0.0
    %3224 = vmatpush1.msra.mxu0 0.0
    %3225 = vmatprep.subr.mxu0 0.0
    %3226 = vmatpush1.msra.mxu0 0.0
    %3227 = vmatprep.subr.mxu0 0.0
    %3228 = vmatpush1.msra.mxu0 0.0
    %3229 = vmatprep.subr.mxu0 0.0
    %3230 = vmatpush1.msra.mxu0 0.0
    %3231 = vmatprep.subr.mxu0 0.0
    %3232 = vmatpush1.msra.mxu0 0.0
    %3233 = vmatprep.subr.mxu0 0.0
    %3234 = vmatpush1.msra.mxu0 0.0
    %3235 = vmatprep.subr.mxu0 0.0
    %3236 = vmatpush1.msra.mxu0 0.0
    %3237 = vmatprep.subr.mxu0 0.0
    %3238 = vmatpush1.msra.mxu0 0.0
    %3239 = vmatprep.subr.mxu0 0.0
    %3240 = vmatpush1.msra.mxu0 0.0
    %3241 = vmatprep.subr.mxu0 0.0
    %3242 = vmatpush1.msra.mxu0 0.0
    %3243 = vmatprep.subr.mxu0 0.0
    %3244 = vmatpush1.msra.mxu0 0.0
    %3245 = vmatprep.subr.mxu0 0.0
    %3246 = vmatpush1.msra.mxu0 0.0
    %3247 = vmatprep.subr.mxu0 0.0
    %3248 = vmatpush1.msra.mxu0 0.0
    %3249 = vmatprep.subr.mxu0 0.0
    %3250 = vmatpush1.msra.mxu0 0.0
    %3251 = vmatprep.subr.mxu0 0.0
    %3252 = vmatpush1.msra.mxu0 %v2719
    %3253 = vmatprep.subr.mxu0 0.0
    %3254 = vmatpush2.msra.mxu0 0.0
    %3255 = vmatprep.subr.mxu0 0.0
    %3256 = vmatpush2.msra.mxu0 0.0
    %3257 = vmatprep.subr.mxu0 0.0
    %3258 = vmatpush2.msra.mxu0 0.0
    %3259 = vmatprep.subr.mxu0 0.0
    %3260 = vmatpush2.msra.mxu0 0.0
    %3261 = vmatprep.subr.mxu0 0.0
    %3262 = vmatpush2.msra.mxu0 0.0
    %3263 = vmatprep.subr.mxu0 0.0
    %3264 = vmatpush2.msra.mxu0 0.0
    %3265 = vmatprep.subr.mxu0 0.0
    %3266 = vmatpush2.msra.mxu0 0.0
    %3267 = vmatprep.subr.mxu0 0.0
    %3268 = vmatpush2.msra.mxu0 0.0
    %3269 = vmatprep.subr.mxu0 0.0
    %3270 = vmatpush2.msra.mxu0 0.0
    %3271 = vmatprep.subr.mxu0 0.0
    %3272 = vmatpush2.msra.mxu0 0.0
    %3273 = vmatprep.subr.mxu0 0.0
    %3274 = vmatpush2.msra.mxu0 0.0
    %3275 = vmatprep.subr.mxu0 0.0
    %3276 = vmatpush2.msra.mxu0 0.0
    %3277 = vmatprep.subr.mxu0 0.0
    %3278 = vmatpush2.msra.mxu0 0.0
    %3279 = vmatprep.subr.mxu0 0.0
    %3280 = vmatpush2.msra.mxu0 0.0
    %3281 = vmatprep.subr.mxu0 0.0
    %3282 = vmatpush2.msra.mxu0 0.0
    %3283 = vmatprep.subr.mxu0 0.0
    %3284 = vmatpush2.msra.mxu0 0.0
    %3285 = vmatprep.mubr.f32.mxu0 0.0
    %3286 = vmatmul.mubr.f32.gmra.mxu0 %v3210
    %v3287 = vpop.f32.mrf.mxu0
    %v3288 = vadd.f32 0.0, %v3287
    %v3289 = vpop.f32.mrf.mxu0
    %3290 = vmatprep.mubr.f32.mxu0 0.0
    %3291 = vmatmul.mubr.f32.gmra.mxu0 %v3213
    %v3292 = vpop.f32.mrf.mxu0
    %v3293 = vadd.f32 0.0, %v3292
    %v3294 = vpop.f32.mrf.mxu0
    %3295 = vmatprep.mubr.f32.mxu0 0.0
    %3296 = vmatmul.mubr.f32.gmra.mxu0 %v3216
    %v3297 = vpop.f32.mrf.mxu0
    %v3298 = vadd.f32 0.0, %v3297
    %v3299 = vpop.f32.mrf.mxu0
    %3300 = vmatprep.mubr.f32.mxu0 0.0
    %3301 = vmatmul.mubr.f32.gmra.mxu0 %v3219
    %v3302 = vpop.f32.mrf.mxu0
    %v3303 = vadd.f32 0.0, %v3302
    %v3304 = vpop.f32.mrf.mxu0
    %3305 = vdwg.mxu0
    %v3307 = vsel %vm2723, %v2656, 0
    %v3310 = vsel %vm2723, %v2661, 0
    %v3313 = vsel %vm2723, %v2666, 0
    %v3316 = vsel %vm2723, %v2671, 0
    %3318 = vmatprep.subr.mxu0 0.0
    %3319 = vmatpush1.msra.mxu0 0.0
    %3320 = vmatprep.subr.mxu0 0.0
    %3321 = vmatpush1.msra.mxu0 0.0
    %3322 = vmatprep.subr.mxu0 0.0
    %3323 = vmatpush1.msra.mxu0 0.0
    %3324 = vmatprep.subr.mxu0 0.0
    %3325 = vmatpush1.msra.mxu0 0.0
    %3326 = vmatprep.subr.mxu0 0.0
    %3327 = vmatpush1.msra.mxu0 0.0
    %3328 = vmatprep.subr.mxu0 0.0
    %3329 = vmatpush1.msra.mxu0 0.0
    %3330 = vmatprep.subr.mxu0 0.0
    %3331 = vmatpush1.msra.mxu0 0.0
    %3332 = vmatprep.subr.mxu0 0.0
    %3333 = vmatpush1.msra.mxu0 0.0
    %3334 = vmatprep.subr.mxu0 0.0
    %3335 = vmatpush1.msra.mxu0 0.0
    %3336 = vmatprep.subr.mxu0 0.0
    %3337 = vmatpush1.msra.mxu0 0.0
    %3338 = vmatprep.subr.mxu0 0.0
    %3339 = vmatpush1.msra.mxu0 0.0
    %3340 = vmatprep.subr.mxu0 0.0
    %3341 = vmatpush1.msra.mxu0 0.0
    %3342 = vmatprep.subr.mxu0 0.0
    %3343 = vmatpush1.msra.mxu0 0.0
    %3344 = vmatprep.subr.mxu0 0.0
    %3345 = vmatpush1.msra.mxu0 0.0
    %3346 = vmatprep.subr.mxu0 0.0
    %3347 = vmatpush1.msra.mxu0 0.0
    %3348 = vmatprep.subr.mxu0 0.0
    %3349 = vmatpush1.msra.mxu0 %v2720
    %3350 = vmatprep.subr.mxu0 0.0
    %3351 = vmatpush2.msra.mxu0 0.0
    %3352 = vmatprep.subr.mxu0 0.0
    %3353 = vmatpush2.msra.mxu0 0.0
    %3354 = vmatprep.subr.mxu0 0.0
    %3355 = vmatpush2.msra.mxu0 0.0
    %3356 = vmatprep.subr.mxu0 0.0
    %3357 = vmatpush2.msra.mxu0 0.0
    %3358 = vmatprep.subr.mxu0 0.0
    %3359 = vmatpush2.msra.mxu0 0.0
    %3360 = vmatprep.subr.mxu0 0.0
    %3361 = vmatpush2.msra.mxu0 0.0
    %3362 = vmatprep.subr.mxu0 0.0
    %3363 = vmatpush2.msra.mxu0 0.0
    %3364 = vmatprep.subr.mxu0 0.0
    %3365 = vmatpush2.msra.mxu0 0.0
    %3366 = vmatprep.subr.mxu0 0.0
    %3367 = vmatpush2.msra.mxu0 0.0
    %3368 = vmatprep.subr.mxu0 0.0
    %3369 = vmatpush2.msra.mxu0 0.0
    %3370 = vmatprep.subr.mxu0 0.0
    %3371 = vmatpush2.msra.mxu0 0.0
    %3372 = vmatprep.subr.mxu0 0.0
    %3373 = vmatpush2.msra.mxu0 0.0
    %3374 = vmatprep.subr.mxu0 0.0
    %3375 = vmatpush2.msra.mxu0 0.0
    %3376 = vmatprep.subr.mxu0 0.0
    %3377 = vmatpush2.msra.mxu0 0.0
    %3378 = vmatprep.subr.mxu0 0.0
    %3379 = vmatpush2.msra.mxu0 0.0
    %3380 = vmatprep.subr.mxu0 0.0
    %3381 = vmatpush2.msra.mxu0 0.0
    %3382 = vmatprep.mubr.f32.mxu0 0.0
    %3383 = vmatmul.mubr.f32.gmra.mxu0 %v3307
    %v3384 = vpop.f32.mrf.mxu0
    %v3385 = vadd.f32 0.0, %v3384
    %v3386 = vpop.f32.mrf.mxu0
    %3387 = vmatprep.mubr.f32.mxu0 0.0
    %3388 = vmatmul.mubr.f32.gmra.mxu0 %v3310
    %v3389 = vpop.f32.mrf.mxu0
    %v3390 = vadd.f32 0.0, %v3389
    %v3391 = vpop.f32.mrf.mxu0
    %3392 = vmatprep.mubr.f32.mxu0 0.0
    %3393 = vmatmul.mubr.f32.gmra.mxu0 %v3313
    %v3394 = vpop.f32.mrf.mxu0
    %v3395 = vadd.f32 0.0, %v3394
    %v3396 = vpop.f32.mrf.mxu0
    %3397 = vmatprep.mubr.f32.mxu0 0.0
    %3398 = vmatmul.mubr.f32.gmra.mxu0 %v3316
    %v3399 = vpop.f32.mrf.mxu0
    %v3400 = vadd.f32 0.0, %v3399
    %v3401 = vpop.f32.mrf.mxu0
    %3402 = vdwg.mxu0
    %v3404 = vsel %vm2723, %v2676, 0
    %v3407 = vsel %vm2723, %v2681, 0
    %v3410 = vsel %vm2723, %v2686, 0
    %v3413 = vsel %vm2723, %v2691, 0
    %3415 = vmatprep.subr.mxu0 0.0
    %3416 = vmatpush1.msra.mxu0 0.0
    %3417 = vmatprep.subr.mxu0 0.0
    %3418 = vmatpush1.msra.mxu0 0.0
    %3419 = vmatprep.subr.mxu0 0.0
    %3420 = vmatpush1.msra.mxu0 0.0
    %3421 = vmatprep.subr.mxu0 0.0
    %3422 = vmatpush1.msra.mxu0 0.0
    %3423 = vmatprep.subr.mxu0 0.0
    %3424 = vmatpush1.msra.mxu0 0.0
    %3425 = vmatprep.subr.mxu0 0.0
    %3426 = vmatpush1.msra.mxu0 0.0
    %3427 = vmatprep.subr.mxu0 0.0
    %3428 = vmatpush1.msra.mxu0 0.0
    %3429 = vmatprep.subr.mxu0 0.0
    %3430 = vmatpush1.msra.mxu0 0.0
    %3431 = vmatprep.subr.mxu0 0.0
    %3432 = vmatpush1.msra.mxu0 0.0
    %3433 = vmatprep.subr.mxu0 0.0
    %3434 = vmatpush1.msra.mxu0 0.0
    %3435 = vmatprep.subr.mxu0 0.0
    %3436 = vmatpush1.msra.mxu0 0.0
    %3437 = vmatprep.subr.mxu0 0.0
    %3438 = vmatpush1.msra.mxu0 0.0
    %3439 = vmatprep.subr.mxu0 0.0
    %3440 = vmatpush1.msra.mxu0 0.0
    %3441 = vmatprep.subr.mxu0 0.0
    %3442 = vmatpush1.msra.mxu0 0.0
    %3443 = vmatprep.subr.mxu0 0.0
    %3444 = vmatpush1.msra.mxu0 0.0
    %3445 = vmatprep.subr.mxu0 0.0
    %3446 = vmatpush1.msra.mxu0 %v2721
    %3447 = vmatprep.subr.mxu0 0.0
    %3448 = vmatpush2.msra.mxu0 0.0
    %3449 = vmatprep.subr.mxu0 0.0
    %3450 = vmatpush2.msra.mxu0 0.0
    %3451 = vmatprep.subr.mxu0 0.0
    %3452 = vmatpush2.msra.mxu0 0.0
    %3453 = vmatprep.subr.mxu0 0.0
    %3454 = vmatpush2.msra.mxu0 0.0
    %3455 = vmatprep.subr.mxu0 0.0
    %3456 = vmatpush2.msra.mxu0 0.0
    %3457 = vmatprep.subr.mxu0 0.0
    %3458 = vmatpush2.msra.mxu0 0.0
    %3459 = vmatprep.subr.mxu0 0.0
    %3460 = vmatpush2.msra.mxu0 0.0
    %3461 = vmatprep.subr.mxu0 0.0
    %3462 = vmatpush2.msra.mxu0 0.0
    %3463 = vmatprep.subr.mxu0 0.0
    %3464 = vmatpush2.msra.mxu0 0.0
    %3465 = vmatprep.subr.mxu0 0.0
    %3466 = vmatpush2.msra.mxu0 0.0
    %3467 = vmatprep.subr.mxu0 0.0
    %3468 = vmatpush2.msra.mxu0 0.0
    %3469 = vmatprep.subr.mxu0 0.0
    %3470 = vmatpush2.msra.mxu0 0.0
    %3471 = vmatprep.subr.mxu0 0.0
    %3472 = vmatpush2.msra.mxu0 0.0
    %3473 = vmatprep.subr.mxu0 0.0
    %3474 = vmatpush2.msra.mxu0 0.0
    %3475 = vmatprep.subr.mxu0 0.0
    %3476 = vmatpush2.msra.mxu0 0.0
    %3477 = vmatprep.subr.mxu0 0.0
    %3478 = vmatpush2.msra.mxu0 0.0
    %3479 = vmatprep.mubr.f32.mxu0 0.0
    %3480 = vmatmul.mubr.f32.gmra.mxu0 %v3404
    %v3481 = vpop.f32.mrf.mxu0
    %v3482 = vadd.f32 0.0, %v3481
    %v3483 = vpop.f32.mrf.mxu0
    %3484 = vmatprep.mubr.f32.mxu0 0.0
    %3485 = vmatmul.mubr.f32.gmra.mxu0 %v3407
    %v3486 = vpop.f32.mrf.mxu0
    %v3487 = vadd.f32 0.0, %v3486
    %v3488 = vpop.f32.mrf.mxu0
    %3489 = vmatprep.mubr.f32.mxu0 0.0
    %3490 = vmatmul.mubr.f32.gmra.mxu0 %v3410
    %v3491 = vpop.f32.mrf.mxu0
    %v3492 = vadd.f32 0.0, %v3491
    %v3493 = vpop.f32.mrf.mxu0
    %3494 = vmatprep.mubr.f32.mxu0 0.0
    %3495 = vmatmul.mubr.f32.gmra.mxu0 %v3413
    %v3496 = vpop.f32.mrf.mxu0
    %v3497 = vadd.f32 0.0, %v3496
    %v3498 = vpop.f32.mrf.mxu0
    %3499 = vdwg.mxu0
    %v3501 = vsel %vm2723, %v2696, 0
    %v3504 = vsel %vm2723, %v2701, 0
    %v3507 = vsel %vm2723, %v2706, 0
    %v3510 = vsel %vm2723, %v2711, 0
    %3512 = vmatprep.subr.mxu0 0.0
    %3513 = vmatpush1.msra.mxu0 0.0
    %3514 = vmatprep.subr.mxu0 0.0
    %3515 = vmatpush1.msra.mxu0 0.0
    %3516 = vmatprep.subr.mxu0 0.0
    %3517 = vmatpush1.msra.mxu0 0.0
    %3518 = vmatprep.subr.mxu0 0.0
    %3519 = vmatpush1.msra.mxu0 0.0
    %3520 = vmatprep.subr.mxu0 0.0
    %3521 = vmatpush1.msra.mxu0 0.0
    %3522 = vmatprep.subr.mxu0 0.0
    %3523 = vmatpush1.msra.mxu0 0.0
    %3524 = vmatprep.subr.mxu0 0.0
    %3525 = vmatpush1.msra.mxu0 0.0
    %3526 = vmatprep.subr.mxu0 0.0
    %3527 = vmatpush1.msra.mxu0 0.0
    %3528 = vmatprep.subr.mxu0 0.0
    %3529 = vmatpush1.msra.mxu0 0.0
    %3530 = vmatprep.subr.mxu0 0.0
    %3531 = vmatpush1.msra.mxu0 0.0
    %3532 = vmatprep.subr.mxu0 0.0
    %3533 = vmatpush1.msra.mxu0 0.0
    %3534 = vmatprep.subr.mxu0 0.0
    %3535 = vmatpush1.msra.mxu0 0.0
    %3536 = vmatprep.subr.mxu0 0.0
    %3537 = vmatpush1.msra.mxu0 0.0
    %3538 = vmatprep.subr.mxu0 0.0
    %3539 = vmatpush1.msra.mxu0 0.0
    %3540 = vmatprep.subr.mxu0 0.0
    %3541 = vmatpush1.msra.mxu0 0.0
    %3542 = vmatprep.subr.mxu0 0.0
    %3543 = vmatpush1.msra.mxu0 %v2722
    %3544 = vmatprep.subr.mxu0 0.0
    %3545 = vmatpush2.msra.mxu0 0.0
    %3546 = vmatprep.subr.mxu0 0.0
    %3547 = vmatpush2.msra.mxu0 0.0
    %3548 = vmatprep.subr.mxu0 0.0
    %3549 = vmatpush2.msra.mxu0 0.0
    %3550 = vmatprep.subr.mxu0 0.0
    %3551 = vmatpush2.msra.mxu0 0.0
    %3552 = vmatprep.subr.mxu0 0.0
    %3553 = vmatpush2.msra.mxu0 0.0
    %3554 = vmatprep.subr.mxu0 0.0
    %3555 = vmatpush2.msra.mxu0 0.0
    %3556 = vmatprep.subr.mxu0 0.0
    %3557 = vmatpush2.msra.mxu0 0.0
    %3558 = vmatprep.subr.mxu0 0.0
    %3559 = vmatpush2.msra.mxu0 0.0
    %3560 = vmatprep.subr.mxu0 0.0
    %3561 = vmatpush2.msra.mxu0 0.0
    %3562 = vmatprep.subr.mxu0 0.0
    %3563 = vmatpush2.msra.mxu0 0.0
    %3564 = vmatprep.subr.mxu0 0.0
    %3565 = vmatpush2.msra.mxu0 0.0
    %3566 = vmatprep.subr.mxu0 0.0
    %3567 = vmatpush2.msra.mxu0 0.0
    %3568 = vmatprep.subr.mxu0 0.0
    %3569 = vmatpush2.msra.mxu0 0.0
    %3570 = vmatprep.subr.mxu0 0.0
    %3571 = vmatpush2.msra.mxu0 0.0
    %3572 = vmatprep.subr.mxu0 0.0
    %3573 = vmatpush2.msra.mxu0 0.0
    %3574 = vmatprep.subr.mxu0 0.0
    %3575 = vmatpush2.msra.mxu0 0.0
    %3576 = vmatprep.mubr.f32.mxu0 0.0
    %3577 = vmatmul.mubr.f32.gmra.mxu0 %v3501
    %v3578 = vpop.f32.mrf.mxu0
    %v3579 = vadd.f32 0.0, %v3578
    %v3580 = vpop.f32.mrf.mxu0
    %3581 = vmatprep.mubr.f32.mxu0 0.0
    %3582 = vmatmul.mubr.f32.gmra.mxu0 %v3504
    %v3583 = vpop.f32.mrf.mxu0
    %v3584 = vadd.f32 0.0, %v3583
    %v3585 = vpop.f32.mrf.mxu0
    %3586 = vmatprep.mubr.f32.mxu0 0.0
    %3587 = vmatmul.mubr.f32.gmra.mxu0 %v3507
    %v3588 = vpop.f32.mrf.mxu0
    %v3589 = vadd.f32 0.0, %v3588
    %v3590 = vpop.f32.mrf.mxu0
    %3591 = vmatprep.mubr.f32.mxu0 0.0
    %3592 = vmatmul.mubr.f32.gmra.mxu0 %v3510
    %v3593 = vpop.f32.mrf.mxu0
    %v3594 = vadd.f32 0.0, %v3593
    %v3595 = vpop.f32.mrf.mxu0
    %3596 = vdwg.mxu0
    %vm3597 = vcmask 130048
    %v3598 = vsel %vm3597, %v2803, 0.0
    %v3599 = vsel %vm3597, %v2900, 0.0
    %v3600 = vadd.f32 %v3598, %v3599
    %v3601 = vsel %vm3597, %v2997, 0.0
    %v3602 = vadd.f32 %v3600, %v3601
    %v3603 = vsel %vm3597, %v3094, 0.0
    %v3604 = vadd.f32 %v3602, %v3603
    %v3605 = vsel %vm3597, %v3191, 0.0
    %v3606 = vadd.f32 %v3604, %v3605
    %v3607 = vsel %vm3597, %v3288, 0.0
    %v3608 = vadd.f32 %v3606, %v3607
    %v3609 = vsel %vm3597, %v3385, 0.0
    %v3610 = vadd.f32 %v3608, %v3609
    %v3611 = vsel %vm3597, %v3482, 0.0
    %v3612 = vadd.f32 %v3610, %v3611
    %v3613 = vsel %vm3597, %v3579, 0.0
    %v3614 = vadd.f32 %v3612, %v3613
    %v3615 = vsel %vm3597, %v2808, 0.0
    %v3616 = vsel %vm3597, %v2905, 0.0
    %v3617 = vadd.f32 %v3615, %v3616
    %v3618 = vsel %vm3597, %v3002, 0.0
    %v3619 = vadd.f32 %v3617, %v3618
    %v3620 = vsel %vm3597, %v3099, 0.0
    %v3621 = vadd.f32 %v3619, %v3620
    %v3622 = vsel %vm3597, %v3196, 0.0
    %v3623 = vadd.f32 %v3621, %v3622
    %v3624 = vsel %vm3597, %v3293, 0.0
    %v3625 = vadd.f32 %v3623, %v3624
    %v3626 = vsel %vm3597, %v3390, 0.0
    %v3627 = vadd.f32 %v3625, %v3626
    %v3628 = vsel %vm3597, %v3487, 0.0
    %v3629 = vadd.f32 %v3627, %v3628
    %v3630 = vsel %vm3597, %v3584, 0.0
    %v3631 = vadd.f32 %v3629, %v3630
    %v3632 = vsel %vm3597, %v2813, 0.0
    %v3633 = vsel %vm3597, %v2910, 0.0
    %v3634 = vadd.f32 %v3632, %v3633
    %v3635 = vsel %vm3597, %v3007, 0.0
    %v3636 = vadd.f32 %v3634, %v3635
    %v3637 = vsel %vm3597, %v3104, 0.0
    %v3638 = vadd.f32 %v3636, %v3637
    %v3639 = vsel %vm3597, %v3201, 0.0
    %v3640 = vadd.f32 %v3638, %v3639
    %v3641 = vsel %vm3597, %v3298, 0.0
    %v3642 = vadd.f32 %v3640, %v3641
    %v3643 = vsel %vm3597, %v3395, 0.0
    %v3644 = vadd.f32 %v3642, %v3643
    %v3645 = vsel %vm3597, %v3492, 0.0
    %v3646 = vadd.f32 %v3644, %v3645
    %v3647 = vsel %vm3597, %v3589, 0.0
    %v3648 = vadd.f32 %v3646, %v3647
    %v3649 = vsel %vm3597, %v2818, 0.0
    %v3650 = vsel %vm3597, %v2915, 0.0
    %v3651 = vadd.f32 %v3649, %v3650
    %v3652 = vsel %vm3597, %v3012, 0.0
    %v3653 = vadd.f32 %v3651, %v3652
    %v3654 = vsel %vm3597, %v3109, 0.0
    %v3655 = vadd.f32 %v3653, %v3654
    %v3656 = vsel %vm3597, %v3206, 0.0
    %v3657 = vadd.f32 %v3655, %v3656
    %v3658 = vsel %vm3597, %v3303, 0.0
    %v3659 = vadd.f32 %v3657, %v3658
    %v3660 = vsel %vm3597, %v3400, 0.0
    %v3661 = vadd.f32 %v3659, %v3660
    %v3662 = vsel %vm3597, %v3497, 0.0
    %v3663 = vadd.f32 %v3661, %v3662
    %v3664 = vsel %vm3597, %v3594, 0.0
    %v3665 = vadd.f32 %v3663, %v3664
    %v3666 = vld [vmem:[#allocation15] sm:$0x1]
    %v3667 = vld [vmem:[#allocation16] sm:$0x1]
    %v3668 = vsel %vm3597, %v3614, 0.0
    %v3669 = vsel %vm3597, %v3631, 0.0
    %v3670 = vadd.f32 %v3668, %v3669
    %v3671 = vsel %vm3597, %v3648, 0.0
    %v3672 = vadd.f32 %v3670, %v3671
    %v3673 = vsel %vm3597, %v3665, 0.0
    %v3674 = vadd.f32 %v3672, %v3673
    %v3675 = vrot.slane %v3674, 4
    %v3676 = vadd.f32 %v3674, %v3675
    %v3677 = vrot.slane %v3676, 2
    %v3678 = vadd.f32 %v3676, %v3677
    %v3679 = vrot.slane %v3678, 1
    %v3680 = vadd.f32 %v3678, %v3679
    %v3681 = vrcp.pop 32.0
    %v3682 = vmul.f32 %v3680, %v3681
    %v3683 = vmul.f32 %v3614, %v3614
    %v3684 = vmul.f32 %v3631, %v3631
    %v3685 = vmul.f32 %v3648, %v3648
    %v3686 = vmul.f32 %v3665, %v3665
    %v3687 = vsel %vm3597, %v3683, 0.0
    %v3688 = vsel %vm3597, %v3684, 0.0
    %v3689 = vadd.f32 %v3687, %v3688
    %v3690 = vsel %vm3597, %v3685, 0.0
    %v3691 = vadd.f32 %v3689, %v3690
    %v3692 = vsel %vm3597, %v3686, 0.0
    %v3693 = vadd.f32 %v3691, %v3692
    %v3694 = vrot.slane %v3693, 4
    %v3695 = vadd.f32 %v3693, %v3694
    %v3696 = vrot.slane %v3695, 2
    %v3697 = vadd.f32 %v3695, %v3696
    %v3698 = vrot.slane %v3697, 1
    %v3699 = vadd.f32 %v3697, %v3698
    %v3700 = vmul.f32 %v3699, %v3681
    %v3701 = vmul.f32 %v3682, %v3682
    %v3702 = vsub.f32 %v3700, %v3701
    %v3703 = vadd.f32 %v3702, 1e-05
    %v3704 = vrsqrt.pop %v3703
    %v3705 = vmul.f32 %v3666, %v3704
    %v3707 = vlaneseq
    %v3708 = vshrl.u32 %v3707, 7
    %v3709 = vsub.s32 0, %v3708
    %v3710 = vrot.slane %v3705, %v3709
    %v3712 = vmul.f32 %v3614, %v3710
    %v3713 = vmul.f32 %v3631, %v3710
    %v3714 = vmul.f32 %v3648, %v3710
    %v3715 = vmul.f32 %v3665, %v3710
    %v3716 = vmul.f32 %v3682, %v3705
    %v3717 = vsub.f32 %v3667, %v3716
    %v3719 = vlaneseq
    %v3720 = vshrl.u32 %v3719, 7
    %v3721 = vsub.s32 0, %v3720
    %v3722 = vrot.slane %v3717, %v3721
    %v3724 = vadd.f32 %v3712, %v3722
    %v3725 = vadd.f32 %v3713, %v3722
    %v3726 = vadd.f32 %v3714, %v3722
    %v3727 = vadd.f32 %v3715, %v3722
    %v3728 = vmax.f32 %v3724, 0.0
    %v3729 = vmax.f32 %v3725, 0.0
    %v3730 = vmax.f32 %v3726, 0.0
    %v3731 = vmax.f32 %v3727, 0.0
    %v3732 = vld [vmem:[#allocation18] sm:$0xff]
    %v3733 = vld [vmem:[#allocation18 + $0x8] sm:$0xff]
    %v3734 = vld [vmem:[#allocation18 + $0x10] sm:$0xff]
    %v3735 = vld [vmem:[#allocation18 + $0x18] sm:$0xff]
    %v3736 = vld [vmem:[#allocation18 + $0x20] sm:$0xff]
    %v3737 = vld [vmem:[#allocation18 + $0x28] sm:$0xff]
    %v3738 = vld [vmem:[#allocation18 + $0x30] sm:$0xff]
    %v3739 = vld [vmem:[#allocation18 + $0x38] sm:$0xff]
    %v3740 = vld [vmem:[#allocation18 + $0x40] sm:$0xff]
    %vm3741 = vcmask 261120
    %v3743 = vsel %vm3741, %v3732, 0
    %v3746 = vsel %vm3741, %v3733, 0
    %v3749 = vsel %vm3741, %v3734, 0
    %v3752 = vsel %vm3741, %v3735, 0
    %v3755 = vsel %vm3741, %v3736, 0
    %v3758 = vsel %vm3741, %v3737, 0
    %v3761 = vsel %vm3741, %v3738, 0
    %v3764 = vsel %vm3741, %v3739, 0
    %v3767 = vsel %vm3741, %v3740, 0
    %3769 = vmatprep.subr.mxu0 0.0
    %3770 = vmatpush1.msra.mxu0 0.0
    %3771 = vmatprep.subr.mxu0 0.0
    %3772 = vmatpush1.msra.mxu0 0.0
    %3773 = vmatprep.subr.mxu0 0.0
    %3774 = vmatpush1.msra.mxu0 0.0
    %3775 = vmatprep.subr.mxu0 0.0
    %3776 = vmatpush1.msra.mxu0 0.0
    %3777 = vmatprep.subr.mxu0 0.0
    %3778 = vmatpush1.msra.mxu0 0.0
    %3779 = vmatprep.subr.mxu0 0.0
    %3780 = vmatpush1.msra.mxu0 0.0
    %3781 = vmatprep.subr.mxu0 0.0
    %3782 = vmatpush1.msra.mxu0 0.0
    %3783 = vmatprep.subr.mxu0 0.0
    %3784 = vmatpush1.msra.mxu0 0.0
    %3785 = vmatprep.subr.mxu0 0.0
    %3786 = vmatpush1.msra.mxu0 0.0
    %3787 = vmatprep.subr.mxu0 0.0
    %3788 = vmatpush1.msra.mxu0 0.0
    %3789 = vmatprep.subr.mxu0 0.0
    %3790 = vmatpush1.msra.mxu0 0.0
    %3791 = vmatprep.subr.mxu0 0.0
    %3792 = vmatpush1.msra.mxu0 0.0
    %3793 = vmatprep.subr.mxu0 0.0
    %3794 = vmatpush1.msra.mxu0 %v3731
    %3795 = vmatprep.subr.mxu0 0.0
    %3796 = vmatpush1.msra.mxu0 %v3730
    %3797 = vmatprep.subr.mxu0 0.0
    %3798 = vmatpush1.msra.mxu0 %v3729
    %3799 = vmatprep.subr.mxu0 0.0
    %3800 = vmatpush1.msra.mxu0 %v3728
    %3801 = vmatprep.subr.mxu0 0.0
    %3802 = vmatpush2.msra.mxu0 0.0
    %3803 = vmatprep.subr.mxu0 0.0
    %3804 = vmatpush2.msra.mxu0 0.0
    %3805 = vmatprep.subr.mxu0 0.0
    %3806 = vmatpush2.msra.mxu0 0.0
    %3807 = vmatprep.subr.mxu0 0.0
    %3808 = vmatpush2.msra.mxu0 0.0
    %3809 = vmatprep.subr.mxu0 0.0
    %3810 = vmatpush2.msra.mxu0 0.0
    %3811 = vmatprep.subr.mxu0 0.0
    %3812 = vmatpush2.msra.mxu0 0.0
    %3813 = vmatprep.subr.mxu0 0.0
    %3814 = vmatpush2.msra.mxu0 0.0
    %3815 = vmatprep.subr.mxu0 0.0
    %3816 = vmatpush2.msra.mxu0 0.0
    %3817 = vmatprep.subr.mxu0 0.0
    %3818 = vmatpush2.msra.mxu0 0.0
    %3819 = vmatprep.subr.mxu0 0.0
    %3820 = vmatpush2.msra.mxu0 0.0
    %3821 = vmatprep.subr.mxu0 0.0
    %3822 = vmatpush2.msra.mxu0 0.0
    %3823 = vmatprep.subr.mxu0 0.0
    %3824 = vmatpush2.msra.mxu0 0.0
    %3825 = vmatprep.subr.mxu0 0.0
    %3826 = vmatpush2.msra.mxu0 0.0
    %3827 = vmatprep.subr.mxu0 0.0
    %3828 = vmatpush2.msra.mxu0 0.0
    %3829 = vmatprep.subr.mxu0 0.0
    %3830 = vmatpush2.msra.mxu0 0.0
    %3831 = vmatprep.subr.mxu0 0.0
    %3832 = vmatpush2.msra.mxu0 0.0
    %3833 = vmatprep.mubr.f32.mxu0 0.0
    %3834 = vmatmul.mubr.f32.gmra.mxu0 %v3743
    %v3835 = vpop.f32.mrf.mxu0
    %v3836 = vadd.f32 0.0, %v3835
    %v3837 = vpop.f32.mrf.mxu0
    %3838 = vmatprep.mubr.f32.mxu0 0.0
    %3839 = vmatmul.mubr.f32.gmra.mxu0 %v3746
    %v3840 = vpop.f32.mrf.mxu0
    %v3841 = vadd.f32 0.0, %v3840
    %v3842 = vpop.f32.mrf.mxu0
    %3843 = vmatprep.mubr.f32.mxu0 0.0
    %3844 = vmatmul.mubr.f32.gmra.mxu0 %v3749
    %v3845 = vpop.f32.mrf.mxu0
    %v3846 = vadd.f32 0.0, %v3845
    %v3847 = vpop.f32.mrf.mxu0
    %3848 = vmatprep.mubr.f32.mxu0 0.0
    %3849 = vmatmul.mubr.f32.gmra.mxu0 %v3752
    %v3850 = vpop.f32.mrf.mxu0
    %v3851 = vadd.f32 0.0, %v3850
    %v3852 = vpop.f32.mrf.mxu0
    %3853 = vmatprep.mubr.f32.mxu0 0.0
    %3854 = vmatmul.mubr.f32.gmra.mxu0 %v3755
    %v3855 = vpop.f32.mrf.mxu0
    %v3856 = vadd.f32 0.0, %v3855
    %v3857 = vpop.f32.mrf.mxu0
    %3858 = vmatprep.mubr.f32.mxu0 0.0
    %3859 = vmatmul.mubr.f32.gmra.mxu0 %v3758
    %v3860 = vpop.f32.mrf.mxu0
    %v3861 = vadd.f32 0.0, %v3860
    %v3862 = vpop.f32.mrf.mxu0
    %3863 = vmatprep.mubr.f32.mxu0 0.0
    %3864 = vmatmul.mubr.f32.gmra.mxu0 %v3761
    %v3865 = vpop.f32.mrf.mxu0
    %v3866 = vadd.f32 0.0, %v3865
    %v3867 = vpop.f32.mrf.mxu0
    %3868 = vmatprep.mubr.f32.mxu0 0.0
    %3869 = vmatmul.mubr.f32.gmra.mxu0 %v3764
    %v3870 = vpop.f32.mrf.mxu0
    %v3871 = vadd.f32 0.0, %v3870
    %v3872 = vpop.f32.mrf.mxu0
    %3873 = vmatprep.mubr.f32.mxu0 0.0
    %3874 = vmatmul.mubr.f32.gmra.mxu0 %v3767
    %v3875 = vpop.f32.mrf.mxu0
    %v3876 = vadd.f32 0.0, %v3875
    %v3877 = vpop.f32.mrf.mxu0
    %3878 = vdwg.mxu0
    %v3879 = vld [vmem:[#allocation19] sm:$0xff]
    %v3880 = vld [vmem:[#allocation19 + $0x8] sm:$0xff]
    %v3881 = vld [vmem:[#allocation19 + $0x10] sm:$0xff]
    %v3882 = vld [vmem:[#allocation19 + $0x18] sm:$0xff]
    %v3883 = vld [vmem:[#allocation19 + $0x20] sm:$0xff]
    %v3884 = vld [vmem:[#allocation19 + $0x28] sm:$0xff]
    %v3885 = vld [vmem:[#allocation19 + $0x30] sm:$0xff]
    %v3886 = vld [vmem:[#allocation19 + $0x38] sm:$0xff]
    %v3887 = vld [vmem:[#allocation19 + $0x40] sm:$0xff]
    %v3888 = vld [vmem:[#allocation19 + $0x48] sm:$0xff]
    %v3889 = vld [vmem:[#allocation19 + $0x50] sm:$0xff]
    %v3890 = vld [vmem:[#allocation19 + $0x58] sm:$0xff]
    %v3891 = vld [vmem:[#allocation19 + $0x60] sm:$0xff]
    %v3892 = vld [vmem:[#allocation19 + $0x68] sm:$0xff]
    %v3893 = vld [vmem:[#allocation19 + $0x70] sm:$0xff]
    %v3894 = vld [vmem:[#allocation19 + $0x78] sm:$0xff]
    %v3895 = vld [vmem:[#allocation19 + $0x80] sm:$0xff]
    %v3896 = vld [vmem:[#allocation19 + $0x88] sm:$0xff]
    %v3898 = vsel %vm3597, %v3836, 0
    %3900 = vmatprep.subr.mxu0 0.0
    %3901 = vmatpush1.msra.mxu0 0.0
    %3902 = vmatprep.subr.mxu0 0.0
    %3903 = vmatpush1.msra.mxu0 0.0
    %3904 = vmatprep.subr.mxu0 0.0
    %3905 = vmatpush1.msra.mxu0 0.0
    %3906 = vmatprep.subr.mxu0 0.0
    %3907 = vmatpush1.msra.mxu0 0.0
    %3908 = vmatprep.subr.mxu0 0.0
    %3909 = vmatpush1.msra.mxu0 0.0
    %3910 = vmatprep.subr.mxu0 0.0
    %3911 = vmatpush1.msra.mxu0 0.0
    %3912 = vmatprep.subr.mxu0 0.0
    %3913 = vmatpush1.msra.mxu0 0.0
    %3914 = vmatprep.subr.mxu0 0.0
    %3915 = vmatpush1.msra.mxu0 0.0
    %3916 = vmatprep.subr.mxu0 0.0
    %3917 = vmatpush1.msra.mxu0 0.0
    %3918 = vmatprep.subr.mxu0 0.0
    %3919 = vmatpush1.msra.mxu0 0.0
    %3920 = vmatprep.subr.mxu0 0.0
    %3921 = vmatpush1.msra.mxu0 0.0
    %3922 = vmatprep.subr.mxu0 0.0
    %3923 = vmatpush1.msra.mxu0 0.0
    %3924 = vmatprep.subr.mxu0 0.0
    %3925 = vmatpush1.msra.mxu0 0.0
    %3926 = vmatprep.subr.mxu0 0.0
    %3927 = vmatpush1.msra.mxu0 0.0
    %3928 = vmatprep.subr.mxu0 0.0
    %3929 = vmatpush1.msra.mxu0 %v3880
    %3930 = vmatprep.subr.mxu0 0.0
    %3931 = vmatpush1.msra.mxu0 %v3879
    %3932 = vmatprep.subr.mxu0 0.0
    %3933 = vmatpush2.msra.mxu0 0.0
    %3934 = vmatprep.subr.mxu0 0.0
    %3935 = vmatpush2.msra.mxu0 0.0
    %3936 = vmatprep.subr.mxu0 0.0
    %3937 = vmatpush2.msra.mxu0 0.0
    %3938 = vmatprep.subr.mxu0 0.0
    %3939 = vmatpush2.msra.mxu0 0.0
    %3940 = vmatprep.subr.mxu0 0.0
    %3941 = vmatpush2.msra.mxu0 0.0
    %3942 = vmatprep.subr.mxu0 0.0
    %3943 = vmatpush2.msra.mxu0 0.0
    %3944 = vmatprep.subr.mxu0 0.0
    %3945 = vmatpush2.msra.mxu0 0.0
    %3946 = vmatprep.subr.mxu0 0.0
    %3947 = vmatpush2.msra.mxu0 0.0
    %3948 = vmatprep.subr.mxu0 0.0
    %3949 = vmatpush2.msra.mxu0 0.0
    %3950 = vmatprep.subr.mxu0 0.0
    %3951 = vmatpush2.msra.mxu0 0.0
    %3952 = vmatprep.subr.mxu0 0.0
    %3953 = vmatpush2.msra.mxu0 0.0
    %3954 = vmatprep.subr.mxu0 0.0
    %3955 = vmatpush2.msra.mxu0 0.0
    %3956 = vmatprep.subr.mxu0 0.0
    %3957 = vmatpush2.msra.mxu0 0.0
    %3958 = vmatprep.subr.mxu0 0.0
    %3959 = vmatpush2.msra.mxu0 0.0
    %3960 = vmatprep.subr.mxu0 0.0
    %3961 = vmatpush2.msra.mxu0 0.0
    %3962 = vmatprep.subr.mxu0 0.0
    %3963 = vmatpush2.msra.mxu0 0.0
    %3964 = vmatprep.mubr.f32.mxu0 0.0
    %3965 = vmatmul.mubr.f32.gmra.mxu0 %v3898
    %v3966 = vpop.f32.mrf.mxu0
    %v3967 = vadd.f32 0.0, %v3966
    %v3968 = vpop.f32.mrf.mxu0
    %3969 = vdwg.mxu0
    %v3971 = vsel %vm3597, %v3841, 0
    %3973 = vmatprep.subr.mxu0 0.0
    %3974 = vmatpush1.msra.mxu0 0.0
    %3975 = vmatprep.subr.mxu0 0.0
    %3976 = vmatpush1.msra.mxu0 0.0
    %3977 = vmatprep.subr.mxu0 0.0
    %3978 = vmatpush1.msra.mxu0 0.0
    %3979 = vmatprep.subr.mxu0 0.0
    %3980 = vmatpush1.msra.mxu0 0.0
    %3981 = vmatprep.subr.mxu0 0.0
    %3982 = vmatpush1.msra.mxu0 0.0
    %3983 = vmatprep.subr.mxu0 0.0
    %3984 = vmatpush1.msra.mxu0 0.0
    %3985 = vmatprep.subr.mxu0 0.0
    %3986 = vmatpush1.msra.mxu0 0.0
    %3987 = vmatprep.subr.mxu0 0.0
    %3988 = vmatpush1.msra.mxu0 0.0
    %3989 = vmatprep.subr.mxu0 0.0
    %3990 = vmatpush1.msra.mxu0 0.0
    %3991 = vmatprep.subr.mxu0 0.0
    %3992 = vmatpush1.msra.mxu0 0.0
    %3993 = vmatprep.subr.mxu0 0.0
    %3994 = vmatpush1.msra.mxu0 0.0
    %3995 = vmatprep.subr.mxu0 0.0
    %3996 = vmatpush1.msra.mxu0 0.0
    %3997 = vmatprep.subr.mxu0 0.0
    %3998 = vmatpush1.msra.mxu0 0.0
    %3999 = vmatprep.subr.mxu0 0.0
    %4000 = vmatpush1.msra.mxu0 0.0
    %4001 = vmatprep.subr.mxu0 0.0
    %4002 = vmatpush1.msra.mxu0 %v3882
    %4003 = vmatprep.subr.mxu0 0.0
    %4004 = vmatpush1.msra.mxu0 %v3881
    %4005 = vmatprep.subr.mxu0 0.0
    %4006 = vmatpush2.msra.mxu0 0.0
    %4007 = vmatprep.subr.mxu0 0.0
    %4008 = vmatpush2.msra.mxu0 0.0
    %4009 = vmatprep.subr.mxu0 0.0
    %4010 = vmatpush2.msra.mxu0 0.0
    %4011 = vmatprep.subr.mxu0 0.0
    %4012 = vmatpush2.msra.mxu0 0.0
    %4013 = vmatprep.subr.mxu0 0.0
    %4014 = vmatpush2.msra.mxu0 0.0
    %4015 = vmatprep.subr.mxu0 0.0
    %4016 = vmatpush2.msra.mxu0 0.0
    %4017 = vmatprep.subr.mxu0 0.0
    %4018 = vmatpush2.msra.mxu0 0.0
    %4019 = vmatprep.subr.mxu0 0.0
    %4020 = vmatpush2.msra.mxu0 0.0
    %4021 = vmatprep.subr.mxu0 0.0
    %4022 = vmatpush2.msra.mxu0 0.0
    %4023 = vmatprep.subr.mxu0 0.0
    %4024 = vmatpush2.msra.mxu0 0.0
    %4025 = vmatprep.subr.mxu0 0.0
    %4026 = vmatpush2.msra.mxu0 0.0
    %4027 = vmatprep.subr.mxu0 0.0
    %4028 = vmatpush2.msra.mxu0 0.0
    %4029 = vmatprep.subr.mxu0 0.0
    %4030 = vmatpush2.msra.mxu0 0.0
    %4031 = vmatprep.subr.mxu0 0.0
    %4032 = vmatpush2.msra.mxu0 0.0
    %4033 = vmatprep.subr.mxu0 0.0
    %4034 = vmatpush2.msra.mxu0 0.0
    %4035 = vmatprep.subr.mxu0 0.0
    %4036 = vmatpush2.msra.mxu0 0.0
    %4037 = vmatprep.mubr.f32.mxu0 0.0
    %4038 = vmatmul.mubr.f32.gmra.mxu0 %v3971
    %v4039 = vpop.f32.mrf.mxu0
    %v4040 = vadd.f32 0.0, %v4039
    %v4041 = vpop.f32.mrf.mxu0
    %4042 = vdwg.mxu0
    %v4044 = vsel %vm3597, %v3846, 0
    %4046 = vmatprep.subr.mxu0 0.0
    %4047 = vmatpush1.msra.mxu0 0.0
    %4048 = vmatprep.subr.mxu0 0.0
    %4049 = vmatpush1.msra.mxu0 0.0
    %4050 = vmatprep.subr.mxu0 0.0
    %4051 = vmatpush1.msra.mxu0 0.0
    %4052 = vmatprep.subr.mxu0 0.0
    %4053 = vmatpush1.msra.mxu0 0.0
    %4054 = vmatprep.subr.mxu0 0.0
    %4055 = vmatpush1.msra.mxu0 0.0
    %4056 = vmatprep.subr.mxu0 0.0
    %4057 = vmatpush1.msra.mxu0 0.0
    %4058 = vmatprep.subr.mxu0 0.0
    %4059 = vmatpush1.msra.mxu0 0.0
    %4060 = vmatprep.subr.mxu0 0.0
    %4061 = vmatpush1.msra.mxu0 0.0
    %4062 = vmatprep.subr.mxu0 0.0
    %4063 = vmatpush1.msra.mxu0 0.0
    %4064 = vmatprep.subr.mxu0 0.0
    %4065 = vmatpush1.msra.mxu0 0.0
    %4066 = vmatprep.subr.mxu0 0.0
    %4067 = vmatpush1.msra.mxu0 0.0
    %4068 = vmatprep.subr.mxu0 0.0
    %4069 = vmatpush1.msra.mxu0 0.0
    %4070 = vmatprep.subr.mxu0 0.0
    %4071 = vmatpush1.msra.mxu0 0.0
    %4072 = vmatprep.subr.mxu0 0.0
    %4073 = vmatpush1.msra.mxu0 0.0
    %4074 = vmatprep.subr.mxu0 0.0
    %4075 = vmatpush1.msra.mxu0 %v3884
    %4076 = vmatprep.subr.mxu0 0.0
    %4077 = vmatpush1.msra.mxu0 %v3883
    %4078 = vmatprep.subr.mxu0 0.0
    %4079 = vmatpush2.msra.mxu0 0.0
    %4080 = vmatprep.subr.mxu0 0.0
    %4081 = vmatpush2.msra.mxu0 0.0
    %4082 = vmatprep.subr.mxu0 0.0
    %4083 = vmatpush2.msra.mxu0 0.0
    %4084 = vmatprep.subr.mxu0 0.0
    %4085 = vmatpush2.msra.mxu0 0.0
    %4086 = vmatprep.subr.mxu0 0.0
    %4087 = vmatpush2.msra.mxu0 0.0
    %4088 = vmatprep.subr.mxu0 0.0
    %4089 = vmatpush2.msra.mxu0 0.0
    %4090 = vmatprep.subr.mxu0 0.0
    %4091 = vmatpush2.msra.mxu0 0.0
    %4092 = vmatprep.subr.mxu0 0.0
    %4093 = vmatpush2.msra.mxu0 0.0
    %4094 = vmatprep.subr.mxu0 0.0
    %4095 = vmatpush2.msra.mxu0 0.0
    %4096 = vmatprep.subr.mxu0 0.0
    %4097 = vmatpush2.msra.mxu0 0.0
    %4098 = vmatprep.subr.mxu0 0.0
    %4099 = vmatpush2.msra.mxu0 0.0
    %4100 = vmatprep.subr.mxu0 0.0
    %4101 = vmatpush2.msra.mxu0 0.0
    %4102 = vmatprep.subr.mxu0 0.0
    %4103 = vmatpush2.msra.mxu0 0.0
    %4104 = vmatprep.subr.mxu0 0.0
    %4105 = vmatpush2.msra.mxu0 0.0
    %4106 = vmatprep.subr.mxu0 0.0
    %4107 = vmatpush2.msra.mxu0 0.0
    %4108 = vmatprep.subr.mxu0 0.0
    %4109 = vmatpush2.msra.mxu0 0.0
    %4110 = vmatprep.mubr.f32.mxu0 0.0
    %4111 = vmatmul.mubr.f32.gmra.mxu0 %v4044
    %v4112 = vpop.f32.mrf.mxu0
    %v4113 = vadd.f32 0.0, %v4112
    %v4114 = vpop.f32.mrf.mxu0
    %4115 = vdwg.mxu0
    %v4117 = vsel %vm3597, %v3851, 0
    %4119 = vmatprep.subr.mxu0 0.0
    %4120 = vmatpush1.msra.mxu0 0.0
    %4121 = vmatprep.subr.mxu0 0.0
    %4122 = vmatpush1.msra.mxu0 0.0
    %4123 = vmatprep.subr.mxu0 0.0
    %4124 = vmatpush1.msra.mxu0 0.0
    %4125 = vmatprep.subr.mxu0 0.0
    %4126 = vmatpush1.msra.mxu0 0.0
    %4127 = vmatprep.subr.mxu0 0.0
    %4128 = vmatpush1.msra.mxu0 0.0
    %4129 = vmatprep.subr.mxu0 0.0
    %4130 = vmatpush1.msra.mxu0 0.0
    %4131 = vmatprep.subr.mxu0 0.0
    %4132 = vmatpush1.msra.mxu0 0.0
    %4133 = vmatprep.subr.mxu0 0.0
    %4134 = vmatpush1.msra.mxu0 0.0
    %4135 = vmatprep.subr.mxu0 0.0
    %4136 = vmatpush1.msra.mxu0 0.0
    %4137 = vmatprep.subr.mxu0 0.0
    %4138 = vmatpush1.msra.mxu0 0.0
    %4139 = vmatprep.subr.mxu0 0.0
    %4140 = vmatpush1.msra.mxu0 0.0
    %4141 = vmatprep.subr.mxu0 0.0
    %4142 = vmatpush1.msra.mxu0 0.0
    %4143 = vmatprep.subr.mxu0 0.0
    %4144 = vmatpush1.msra.mxu0 0.0
    %4145 = vmatprep.subr.mxu0 0.0
    %4146 = vmatpush1.msra.mxu0 0.0
    %4147 = vmatprep.subr.mxu0 0.0
    %4148 = vmatpush1.msra.mxu0 %v3886
    %4149 = vmatprep.subr.mxu0 0.0
    %4150 = vmatpush1.msra.mxu0 %v3885
    %4151 = vmatprep.subr.mxu0 0.0
    %4152 = vmatpush2.msra.mxu0 0.0
    %4153 = vmatprep.subr.mxu0 0.0
    %4154 = vmatpush2.msra.mxu0 0.0
    %4155 = vmatprep.subr.mxu0 0.0
    %4156 = vmatpush2.msra.mxu0 0.0
    %4157 = vmatprep.subr.mxu0 0.0
    %4158 = vmatpush2.msra.mxu0 0.0
    %4159 = vmatprep.subr.mxu0 0.0
    %4160 = vmatpush2.msra.mxu0 0.0
    %4161 = vmatprep.subr.mxu0 0.0
    %4162 = vmatpush2.msra.mxu0 0.0
    %4163 = vmatprep.subr.mxu0 0.0
    %4164 = vmatpush2.msra.mxu0 0.0
    %4165 = vmatprep.subr.mxu0 0.0
    %4166 = vmatpush2.msra.mxu0 0.0
    %4167 = vmatprep.subr.mxu0 0.0
    %4168 = vmatpush2.msra.mxu0 0.0
    %4169 = vmatprep.subr.mxu0 0.0
    %4170 = vmatpush2.msra.mxu0 0.0
    %4171 = vmatprep.subr.mxu0 0.0
    %4172 = vmatpush2.msra.mxu0 0.0
    %4173 = vmatprep.subr.mxu0 0.0
    %4174 = vmatpush2.msra.mxu0 0.0
    %4175 = vmatprep.subr.mxu0 0.0
    %4176 = vmatpush2.msra.mxu0 0.0
    %4177 = vmatprep.subr.mxu0 0.0
    %4178 = vmatpush2.msra.mxu0 0.0
    %4179 = vmatprep.subr.mxu0 0.0
    %4180 = vmatpush2.msra.mxu0 0.0
    %4181 = vmatprep.subr.mxu0 0.0
    %4182 = vmatpush2.msra.mxu0 0.0
    %4183 = vmatprep.mubr.f32.mxu0 0.0
    %4184 = vmatmul.mubr.f32.gmra.mxu0 %v4117
    %v4185 = vpop.f32.mrf.mxu0
    %v4186 = vadd.f32 0.0, %v4185
    %v4187 = vpop.f32.mrf.mxu0
    %4188 = vdwg.mxu0
    %v4190 = vsel %vm3597, %v3856, 0
    %4192 = vmatprep.subr.mxu0 0.0
    %4193 = vmatpush1.msra.mxu0 0.0
    %4194 = vmatprep.subr.mxu0 0.0
    %4195 = vmatpush1.msra.mxu0 0.0
    %4196 = vmatprep.subr.mxu0 0.0
    %4197 = vmatpush1.msra.mxu0 0.0
    %4198 = vmatprep.subr.mxu0 0.0
    %4199 = vmatpush1.msra.mxu0 0.0
    %4200 = vmatprep.subr.mxu0 0.0
    %4201 = vmatpush1.msra.mxu0 0.0
    %4202 = vmatprep.subr.mxu0 0.0
    %4203 = vmatpush1.msra.mxu0 0.0
    %4204 = vmatprep.subr.mxu0 0.0
    %4205 = vmatpush1.msra.mxu0 0.0
    %4206 = vmatprep.subr.mxu0 0.0
    %4207 = vmatpush1.msra.mxu0 0.0
    %4208 = vmatprep.subr.mxu0 0.0
    %4209 = vmatpush1.msra.mxu0 0.0
    %4210 = vmatprep.subr.mxu0 0.0
    %4211 = vmatpush1.msra.mxu0 0.0
    %4212 = vmatprep.subr.mxu0 0.0
    %4213 = vmatpush1.msra.mxu0 0.0
    %4214 = vmatprep.subr.mxu0 0.0
    %4215 = vmatpush1.msra.mxu0 0.0
    %4216 = vmatprep.subr.mxu0 0.0
    %4217 = vmatpush1.msra.mxu0 0.0
    %4218 = vmatprep.subr.mxu0 0.0
    %4219 = vmatpush1.msra.mxu0 0.0
    %4220 = vmatprep.subr.mxu0 0.0
    %4221 = vmatpush1.msra.mxu0 %v3888
    %4222 = vmatprep.subr.mxu0 0.0
    %4223 = vmatpush1.msra.mxu0 %v3887
    %4224 = vmatprep.subr.mxu0 0.0
    %4225 = vmatpush2.msra.mxu0 0.0
    %4226 = vmatprep.subr.mxu0 0.0
    %4227 = vmatpush2.msra.mxu0 0.0
    %4228 = vmatprep.subr.mxu0 0.0
    %4229 = vmatpush2.msra.mxu0 0.0
    %4230 = vmatprep.subr.mxu0 0.0
    %4231 = vmatpush2.msra.mxu0 0.0
    %4232 = vmatprep.subr.mxu0 0.0
    %4233 = vmatpush2.msra.mxu0 0.0
    %4234 = vmatprep.subr.mxu0 0.0
    %4235 = vmatpush2.msra.mxu0 0.0
    %4236 = vmatprep.subr.mxu0 0.0
    %4237 = vmatpush2.msra.mxu0 0.0
    %4238 = vmatprep.subr.mxu0 0.0
    %4239 = vmatpush2.msra.mxu0 0.0
    %4240 = vmatprep.subr.mxu0 0.0
    %4241 = vmatpush2.msra.mxu0 0.0
    %4242 = vmatprep.subr.mxu0 0.0
    %4243 = vmatpush2.msra.mxu0 0.0
    %4244 = vmatprep.subr.mxu0 0.0
    %4245 = vmatpush2.msra.mxu0 0.0
    %4246 = vmatprep.subr.mxu0 0.0
    %4247 = vmatpush2.msra.mxu0 0.0
    %4248 = vmatprep.subr.mxu0 0.0
    %4249 = vmatpush2.msra.mxu0 0.0
    %4250 = vmatprep.subr.mxu0 0.0
    %4251 = vmatpush2.msra.mxu0 0.0
    %4252 = vmatprep.subr.mxu0 0.0
    %4253 = vmatpush2.msra.mxu0 0.0
    %4254 = vmatprep.subr.mxu0 0.0
    %4255 = vmatpush2.msra.mxu0 0.0
    %4256 = vmatprep.mubr.f32.mxu0 0.0
    %4257 = vmatmul.mubr.f32.gmra.mxu0 %v4190
    %v4258 = vpop.f32.mrf.mxu0
    %v4259 = vadd.f32 0.0, %v4258
    %v4260 = vpop.f32.mrf.mxu0
    %4261 = vdwg.mxu0
    %v4263 = vsel %vm3597, %v3861, 0
    %4265 = vmatprep.subr.mxu0 0.0
    %4266 = vmatpush1.msra.mxu0 0.0
    %4267 = vmatprep.subr.mxu0 0.0
    %4268 = vmatpush1.msra.mxu0 0.0
    %4269 = vmatprep.subr.mxu0 0.0
    %4270 = vmatpush1.msra.mxu0 0.0
    %4271 = vmatprep.subr.mxu0 0.0
    %4272 = vmatpush1.msra.mxu0 0.0
    %4273 = vmatprep.subr.mxu0 0.0
    %4274 = vmatpush1.msra.mxu0 0.0
    %4275 = vmatprep.subr.mxu0 0.0
    %4276 = vmatpush1.msra.mxu0 0.0
    %4277 = vmatprep.subr.mxu0 0.0
    %4278 = vmatpush1.msra.mxu0 0.0
    %4279 = vmatprep.subr.mxu0 0.0
    %4280 = vmatpush1.msra.mxu0 0.0
    %4281 = vmatprep.subr.mxu0 0.0
    %4282 = vmatpush1.msra.mxu0 0.0
    %4283 = vmatprep.subr.mxu0 0.0
    %4284 = vmatpush1.msra.mxu0 0.0
    %4285 = vmatprep.subr.mxu0 0.0
    %4286 = vmatpush1.msra.mxu0 0.0
    %4287 = vmatprep.subr.mxu0 0.0
    %4288 = vmatpush1.msra.mxu0 0.0
    %4289 = vmatprep.subr.mxu0 0.0
    %4290 = vmatpush1.msra.mxu0 0.0
    %4291 = vmatprep.subr.mxu0 0.0
    %4292 = vmatpush1.msra.mxu0 0.0
    %4293 = vmatprep.subr.mxu0 0.0
    %4294 = vmatpush1.msra.mxu0 %v3890
    %4295 = vmatprep.subr.mxu0 0.0
    %4296 = vmatpush1.msra.mxu0 %v3889
    %4297 = vmatprep.subr.mxu0 0.0
    %4298 = vmatpush2.msra.mxu0 0.0
    %4299 = vmatprep.subr.mxu0 0.0
    %4300 = vmatpush2.msra.mxu0 0.0
    %4301 = vmatprep.subr.mxu0 0.0
    %4302 = vmatpush2.msra.mxu0 0.0
    %4303 = vmatprep.subr.mxu0 0.0
    %4304 = vmatpush2.msra.mxu0 0.0
    %4305 = vmatprep.subr.mxu0 0.0
    %4306 = vmatpush2.msra.mxu0 0.0
    %4307 = vmatprep.subr.mxu0 0.0
    %4308 = vmatpush2.msra.mxu0 0.0
    %4309 = vmatprep.subr.mxu0 0.0
    %4310 = vmatpush2.msra.mxu0 0.0
    %4311 = vmatprep.subr.mxu0 0.0
    %4312 = vmatpush2.msra.mxu0 0.0
    %4313 = vmatprep.subr.mxu0 0.0
    %4314 = vmatpush2.msra.mxu0 0.0
    %4315 = vmatprep.subr.mxu0 0.0
    %4316 = vmatpush2.msra.mxu0 0.0
    %4317 = vmatprep.subr.mxu0 0.0
    %4318 = vmatpush2.msra.mxu0 0.0
    %4319 = vmatprep.subr.mxu0 0.0
    %4320 = vmatpush2.msra.mxu0 0.0
    %4321 = vmatprep.subr.mxu0 0.0
    %4322 = vmatpush2.msra.mxu0 0.0
    %4323 = vmatprep.subr.mxu0 0.0
    %4324 = vmatpush2.msra.mxu0 0.0
    %4325 = vmatprep.subr.mxu0 0.0
    %4326 = vmatpush2.msra.mxu0 0.0
    %4327 = vmatprep.subr.mxu0 0.0
    %4328 = vmatpush2.msra.mxu0 0.0
    %4329 = vmatprep.mubr.f32.mxu0 0.0
    %4330 = vmatmul.mubr.f32.gmra.mxu0 %v4263
    %v4331 = vpop.f32.mrf.mxu0
    %v4332 = vadd.f32 0.0, %v4331
    %v4333 = vpop.f32.mrf.mxu0
    %4334 = vdwg.mxu0
    %v4336 = vsel %vm3597, %v3866, 0
    %4338 = vmatprep.subr.mxu0 0.0
    %4339 = vmatpush1.msra.mxu0 0.0
    %4340 = vmatprep.subr.mxu0 0.0
    %4341 = vmatpush1.msra.mxu0 0.0
    %4342 = vmatprep.subr.mxu0 0.0
    %4343 = vmatpush1.msra.mxu0 0.0
    %4344 = vmatprep.subr.mxu0 0.0
    %4345 = vmatpush1.msra.mxu0 0.0
    %4346 = vmatprep.subr.mxu0 0.0
    %4347 = vmatpush1.msra.mxu0 0.0
    %4348 = vmatprep.subr.mxu0 0.0
    %4349 = vmatpush1.msra.mxu0 0.0
    %4350 = vmatprep.subr.mxu0 0.0
    %4351 = vmatpush1.msra.mxu0 0.0
    %4352 = vmatprep.subr.mxu0 0.0
    %4353 = vmatpush1.msra.mxu0 0.0
    %4354 = vmatprep.subr.mxu0 0.0
    %4355 = vmatpush1.msra.mxu0 0.0
    %4356 = vmatprep.subr.mxu0 0.0
    %4357 = vmatpush1.msra.mxu0 0.0
    %4358 = vmatprep.subr.mxu0 0.0
    %4359 = vmatpush1.msra.mxu0 0.0
    %4360 = vmatprep.subr.mxu0 0.0
    %4361 = vmatpush1.msra.mxu0 0.0
    %4362 = vmatprep.subr.mxu0 0.0
    %4363 = vmatpush1.msra.mxu0 0.0
    %4364 = vmatprep.subr.mxu0 0.0
    %4365 = vmatpush1.msra.mxu0 0.0
    %4366 = vmatprep.subr.mxu0 0.0
    %4367 = vmatpush1.msra.mxu0 %v3892
    %4368 = vmatprep.subr.mxu0 0.0
    %4369 = vmatpush1.msra.mxu0 %v3891
    %4370 = vmatprep.subr.mxu0 0.0
    %4371 = vmatpush2.msra.mxu0 0.0
    %4372 = vmatprep.subr.mxu0 0.0
    %4373 = vmatpush2.msra.mxu0 0.0
    %4374 = vmatprep.subr.mxu0 0.0
    %4375 = vmatpush2.msra.mxu0 0.0
    %4376 = vmatprep.subr.mxu0 0.0
    %4377 = vmatpush2.msra.mxu0 0.0
    %4378 = vmatprep.subr.mxu0 0.0
    %4379 = vmatpush2.msra.mxu0 0.0
    %4380 = vmatprep.subr.mxu0 0.0
    %4381 = vmatpush2.msra.mxu0 0.0
    %4382 = vmatprep.subr.mxu0 0.0
    %4383 = vmatpush2.msra.mxu0 0.0
    %4384 = vmatprep.subr.mxu0 0.0
    %4385 = vmatpush2.msra.mxu0 0.0
    %4386 = vmatprep.subr.mxu0 0.0
    %4387 = vmatpush2.msra.mxu0 0.0
    %4388 = vmatprep.subr.mxu0 0.0
    %4389 = vmatpush2.msra.mxu0 0.0
    %4390 = vmatprep.subr.mxu0 0.0
    %4391 = vmatpush2.msra.mxu0 0.0
    %4392 = vmatprep.subr.mxu0 0.0
    %4393 = vmatpush2.msra.mxu0 0.0
    %4394 = vmatprep.subr.mxu0 0.0
    %4395 = vmatpush2.msra.mxu0 0.0
    %4396 = vmatprep.subr.mxu0 0.0
    %4397 = vmatpush2.msra.mxu0 0.0
    %4398 = vmatprep.subr.mxu0 0.0
    %4399 = vmatpush2.msra.mxu0 0.0
    %4400 = vmatprep.subr.mxu0 0.0
    %4401 = vmatpush2.msra.mxu0 0.0
    %4402 = vmatprep.mubr.f32.mxu0 0.0
    %4403 = vmatmul.mubr.f32.gmra.mxu0 %v4336
    %v4404 = vpop.f32.mrf.mxu0
    %v4405 = vadd.f32 0.0, %v4404
    %v4406 = vpop.f32.mrf.mxu0
    %4407 = vdwg.mxu0
    %v4409 = vsel %vm3597, %v3871, 0
    %4411 = vmatprep.subr.mxu0 0.0
    %4412 = vmatpush1.msra.mxu0 0.0
    %4413 = vmatprep.subr.mxu0 0.0
    %4414 = vmatpush1.msra.mxu0 0.0
    %4415 = vmatprep.subr.mxu0 0.0
    %4416 = vmatpush1.msra.mxu0 0.0
    %4417 = vmatprep.subr.mxu0 0.0
    %4418 = vmatpush1.msra.mxu0 0.0
    %4419 = vmatprep.subr.mxu0 0.0
    %4420 = vmatpush1.msra.mxu0 0.0
    %4421 = vmatprep.subr.mxu0 0.0
    %4422 = vmatpush1.msra.mxu0 0.0
    %4423 = vmatprep.subr.mxu0 0.0
    %4424 = vmatpush1.msra.mxu0 0.0
    %4425 = vmatprep.subr.mxu0 0.0
    %4426 = vmatpush1.msra.mxu0 0.0
    %4427 = vmatprep.subr.mxu0 0.0
    %4428 = vmatpush1.msra.mxu0 0.0
    %4429 = vmatprep.subr.mxu0 0.0
    %4430 = vmatpush1.msra.mxu0 0.0
    %4431 = vmatprep.subr.mxu0 0.0
    %4432 = vmatpush1.msra.mxu0 0.0
    %4433 = vmatprep.subr.mxu0 0.0
    %4434 = vmatpush1.msra.mxu0 0.0
    %4435 = vmatprep.subr.mxu0 0.0
    %4436 = vmatpush1.msra.mxu0 0.0
    %4437 = vmatprep.subr.mxu0 0.0
    %4438 = vmatpush1.msra.mxu0 0.0
    %4439 = vmatprep.subr.mxu0 0.0
    %4440 = vmatpush1.msra.mxu0 %v3894
    %4441 = vmatprep.subr.mxu0 0.0
    %4442 = vmatpush1.msra.mxu0 %v3893
    %4443 = vmatprep.subr.mxu0 0.0
    %4444 = vmatpush2.msra.mxu0 0.0
    %4445 = vmatprep.subr.mxu0 0.0
    %4446 = vmatpush2.msra.mxu0 0.0
    %4447 = vmatprep.subr.mxu0 0.0
    %4448 = vmatpush2.msra.mxu0 0.0
    %4449 = vmatprep.subr.mxu0 0.0
    %4450 = vmatpush2.msra.mxu0 0.0
    %4451 = vmatprep.subr.mxu0 0.0
    %4452 = vmatpush2.msra.mxu0 0.0
    %4453 = vmatprep.subr.mxu0 0.0
    %4454 = vmatpush2.msra.mxu0 0.0
    %4455 = vmatprep.subr.mxu0 0.0
    %4456 = vmatpush2.msra.mxu0 0.0
    %4457 = vmatprep.subr.mxu0 0.0
    %4458 = vmatpush2.msra.mxu0 0.0
    %4459 = vmatprep.subr.mxu0 0.0
    %4460 = vmatpush2.msra.mxu0 0.0
    %4461 = vmatprep.subr.mxu0 0.0
    %4462 = vmatpush2.msra.mxu0 0.0
    %4463 = vmatprep.subr.mxu0 0.0
    %4464 = vmatpush2.msra.mxu0 0.0
    %4465 = vmatprep.subr.mxu0 0.0
    %4466 = vmatpush2.msra.mxu0 0.0
    %4467 = vmatprep.subr.mxu0 0.0
    %4468 = vmatpush2.msra.mxu0 0.0
    %4469 = vmatprep.subr.mxu0 0.0
    %4470 = vmatpush2.msra.mxu0 0.0
    %4471 = vmatprep.subr.mxu0 0.0
    %4472 = vmatpush2.msra.mxu0 0.0
    %4473 = vmatprep.subr.mxu0 0.0
    %4474 = vmatpush2.msra.mxu0 0.0
    %4475 = vmatprep.mubr.f32.mxu0 0.0
    %4476 = vmatmul.mubr.f32.gmra.mxu0 %v4409
    %v4477 = vpop.f32.mrf.mxu0
    %v4478 = vadd.f32 0.0, %v4477
    %v4479 = vpop.f32.mrf.mxu0
    %4480 = vdwg.mxu0
    %v4482 = vsel %vm3597, %v3876, 0
    %4484 = vmatprep.subr.mxu0 0.0
    %4485 = vmatpush1.msra.mxu0 0.0
    %4486 = vmatprep.subr.mxu0 0.0
    %4487 = vmatpush1.msra.mxu0 0.0
    %4488 = vmatprep.subr.mxu0 0.0
    %4489 = vmatpush1.msra.mxu0 0.0
    %4490 = vmatprep.subr.mxu0 0.0
    %4491 = vmatpush1.msra.mxu0 0.0
    %4492 = vmatprep.subr.mxu0 0.0
    %4493 = vmatpush1.msra.mxu0 0.0
    %4494 = vmatprep.subr.mxu0 0.0
    %4495 = vmatpush1.msra.mxu0 0.0
    %4496 = vmatprep.subr.mxu0 0.0
    %4497 = vmatpush1.msra.mxu0 0.0
    %4498 = vmatprep.subr.mxu0 0.0
    %4499 = vmatpush1.msra.mxu0 0.0
    %4500 = vmatprep.subr.mxu0 0.0
    %4501 = vmatpush1.msra.mxu0 0.0
    %4502 = vmatprep.subr.mxu0 0.0
    %4503 = vmatpush1.msra.mxu0 0.0
    %4504 = vmatprep.subr.mxu0 0.0
    %4505 = vmatpush1.msra.mxu0 0.0
    %4506 = vmatprep.subr.mxu0 0.0
    %4507 = vmatpush1.msra.mxu0 0.0
    %4508 = vmatprep.subr.mxu0 0.0
    %4509 = vmatpush1.msra.mxu0 0.0
    %4510 = vmatprep.subr.mxu0 0.0
    %4511 = vmatpush1.msra.mxu0 0.0
    %4512 = vmatprep.subr.mxu0 0.0
    %4513 = vmatpush1.msra.mxu0 %v3896
    %4514 = vmatprep.subr.mxu0 0.0
    %4515 = vmatpush1.msra.mxu0 %v3895
    %4516 = vmatprep.subr.mxu0 0.0
    %4517 = vmatpush2.msra.mxu0 0.0
    %4518 = vmatprep.subr.mxu0 0.0
    %4519 = vmatpush2.msra.mxu0 0.0
    %4520 = vmatprep.subr.mxu0 0.0
    %4521 = vmatpush2.msra.mxu0 0.0
    %4522 = vmatprep.subr.mxu0 0.0
    %4523 = vmatpush2.msra.mxu0 0.0
    %4524 = vmatprep.subr.mxu0 0.0
    %4525 = vmatpush2.msra.mxu0 0.0
    %4526 = vmatprep.subr.mxu0 0.0
    %4527 = vmatpush2.msra.mxu0 0.0
    %4528 = vmatprep.subr.mxu0 0.0
    %4529 = vmatpush2.msra.mxu0 0.0
    %4530 = vmatprep.subr.mxu0 0.0
    %4531 = vmatpush2.msra.mxu0 0.0
    %4532 = vmatprep.subr.mxu0 0.0
    %4533 = vmatpush2.msra.mxu0 0.0
    %4534 = vmatprep.subr.mxu0 0.0
    %4535 = vmatpush2.msra.mxu0 0.0
    %4536 = vmatprep.subr.mxu0 0.0
    %4537 = vmatpush2.msra.mxu0 0.0
    %4538 = vmatprep.subr.mxu0 0.0
    %4539 = vmatpush2.msra.mxu0 0.0
    %4540 = vmatprep.subr.mxu0 0.0
    %4541 = vmatpush2.msra.mxu0 0.0
    %4542 = vmatprep.subr.mxu0 0.0
    %4543 = vmatpush2.msra.mxu0 0.0
    %4544 = vmatprep.subr.mxu0 0.0
    %4545 = vmatpush2.msra.mxu0 0.0
    %4546 = vmatprep.subr.mxu0 0.0
    %4547 = vmatpush2.msra.mxu0 0.0
    %4548 = vmatprep.mubr.f32.mxu0 0.0
    %4549 = vmatmul.mubr.f32.gmra.mxu0 %v4482
    %v4550 = vpop.f32.mrf.mxu0
    %v4551 = vadd.f32 0.0, %v4550
    %v4552 = vpop.f32.mrf.mxu0
    %4553 = vdwg.mxu0
    %v4554 = vsel %vm3741, %v3967, 0.0
    %v4555 = vsel %vm3741, %v4040, 0.0
    %v4556 = vadd.f32 %v4554, %v4555
    %v4557 = vsel %vm3741, %v4113, 0.0
    %v4558 = vadd.f32 %v4556, %v4557
    %v4559 = vsel %vm3741, %v4186, 0.0
    %v4560 = vadd.f32 %v4558, %v4559
    %v4561 = vsel %vm3741, %v4259, 0.0
    %v4562 = vadd.f32 %v4560, %v4561
    %v4563 = vsel %vm3741, %v4332, 0.0
    %v4564 = vadd.f32 %v4562, %v4563
    %v4565 = vsel %vm3741, %v4405, 0.0
    %v4566 = vadd.f32 %v4564, %v4565
    %v4567 = vsel %vm3741, %v4478, 0.0
    %v4568 = vadd.f32 %v4566, %v4567
    %v4569 = vsel %vm3741, %v4551, 0.0
    %v4570 = vadd.f32 %v4568, %v4569
    %v4571 = vld [vmem:[#allocation21] sm:$0x1]
    %v4572 = vld [vmem:[#allocation22] sm:$0x1]
    %v4573 = vsel %vm3741, %v4570, 0.0
    %v4574 = vrot.slane %v4573, 4
    %v4575 = vadd.f32 %v4573, %v4574
    %v4576 = vrot.slane %v4575, 2
    %v4577 = vadd.f32 %v4575, %v4576
    %v4578 = vrot.slane %v4577, 1
    %v4579 = vadd.f32 %v4577, %v4578
    %v4580 = vrcp.pop 8.0
    %v4581 = vmul.f32 %v4579, %v4580
    %v4582 = vmul.f32 %v4570, %v4570
    %v4583 = vsel %vm3741, %v4582, 0.0
    %v4584 = vrot.slane %v4583, 4
    %v4585 = vadd.f32 %v4583, %v4584
    %v4586 = vrot.slane %v4585, 2
    %v4587 = vadd.f32 %v4585, %v4586
    %v4588 = vrot.slane %v4587, 1
    %v4589 = vadd.f32 %v4587, %v4588
    %v4590 = vmul.f32 %v4589, %v4580
    %v4591 = vmul.f32 %v4581, %v4581
    %v4592 = vsub.f32 %v4590, %v4591
    %v4593 = vadd.f32 %v4592, 1e-05
    %v4594 = vrsqrt.pop %v4593
    %v4595 = vmul.f32 %v4571, %v4594
    %v4597 = vlaneseq
    %v4598 = vshrl.u32 %v4597, 7
    %v4599 = vsub.s32 0, %v4598
    %v4600 = vrot.slane %v4595, %v4599
    %v4602 = vmul.f32 %v4570, %v4600
    %v4603 = vmul.f32 %v4581, %v4595
    %v4604 = vsub.f32 %v4572, %v4603
    %v4606 = vlaneseq
    %v4607 = vshrl.u32 %v4606, 7
    %v4608 = vsub.s32 0, %v4607
    %v4609 = vrot.slane %v4604, %v4608
    %v4611 = vadd.f32 %v4602, %v4609
    %v4612 = vmax.f32 %v4611, 0.0
    %v4614 = vrot.slane %v4612, 2
    %4615 = vrot.lane.b32.xlu0 %v4614, 32
    %v4616 = vpop.permute.xlu0 %4615
    %v4618 = vrot.slane %v4612, 4
    %4619 = vrot.lane.b32.xlu0 %v4618, 64
    %v4620 = vpop.permute.xlu0 %4619
    %v4622 = vrot.slane %v4612, 6
    %4623 = vrot.lane.b32.xlu0 %v4622, 96
    %v4624 = vpop.permute.xlu0 %4623
    %v4626 = vsel %vm3741, %v4612, %v4616
    %v4627 = vsel %vm1536, %v4626, %v4620
    %vm4628 = vcmask 785408
    %v4629 = vsel %vm4628, %v4627, %v4624
    %v4630 = vld [vmem:[#allocation24] sm:$0xff]
    %v4631 = vld [vmem:[#allocation24 + $0x8] sm:$0xff]
    %v4632 = vld [vmem:[#allocation24 + $0x10] sm:$0xff]
    %v4633 = vld [vmem:[#allocation24 + $0x18] sm:$0xff]
    %v4634 = vld [vmem:[#allocation24 + $0x20] sm:$0xff]
    %v4635 = vld [vmem:[#allocation24 + $0x28] sm:$0xff]
    %v4636 = vld [vmem:[#allocation24 + $0x30] sm:$0xff]
    %v4637 = vld [vmem:[#allocation24 + $0x38] sm:$0xff]
    %v4638 = vld [vmem:[#allocation24 + $0x40] sm:$0xff]
    %v4639 = vld [vmem:[#allocation24 + $0x48] sm:$0xff]
    %v4640 = vld [vmem:[#allocation24 + $0x50] sm:$0xff]
    %v4641 = vld [vmem:[#allocation24 + $0x58] sm:$0xff]
    %v4642 = vld [vmem:[#allocation24 + $0x60] sm:$0xff]
    %v4643 = vld [vmem:[#allocation24 + $0x68] sm:$0xff]
    %v4644 = vld [vmem:[#allocation24 + $0x70] sm:$0xff]
    %v4645 = vld [vmem:[#allocation24 + $0x78] sm:$0xff]
    %v4646 = vld [vmem:[#allocation25] sm:$0x1]
    %v4648 = vlaneseq
    %v4649 = vshrl.u32 %v4648, 7
    %v4650 = vsub.s32 0, %v4649
    %v4651 = vrot.slane %v4646, %v4650
    %4653 = vmatprep.subr.mxu0 0.0
    %4654 = vmatpush1.msra.mxu0 %v4645
    %4655 = vmatprep.subr.mxu0 0.0
    %4656 = vmatpush1.msra.mxu0 %v4644
    %4657 = vmatprep.subr.mxu0 0.0
    %4658 = vmatpush1.msra.mxu0 %v4643
    %4659 = vmatprep.subr.mxu0 0.0
    %4660 = vmatpush1.msra.mxu0 %v4642
    %4661 = vmatprep.subr.mxu0 0.0
    %4662 = vmatpush1.msra.mxu0 %v4641
    %4663 = vmatprep.subr.mxu0 0.0
    %4664 = vmatpush1.msra.mxu0 %v4640
    %4665 = vmatprep.subr.mxu0 0.0
    %4666 = vmatpush1.msra.mxu0 %v4639
    %4667 = vmatprep.subr.mxu0 0.0
    %4668 = vmatpush1.msra.mxu0 %v4638
    %4669 = vmatprep.subr.mxu0 0.0
    %4670 = vmatpush1.msra.mxu0 %v4637
    %4671 = vmatprep.subr.mxu0 0.0
    %4672 = vmatpush1.msra.mxu0 %v4636
    %4673 = vmatprep.subr.mxu0 0.0
    %4674 = vmatpush1.msra.mxu0 %v4635
    %4675 = vmatprep.subr.mxu0 0.0
    %4676 = vmatpush1.msra.mxu0 %v4634
    %4677 = vmatprep.subr.mxu0 0.0
    %4678 = vmatpush1.msra.mxu0 %v4633
    %4679 = vmatprep.subr.mxu0 0.0
    %4680 = vmatpush1.msra.mxu0 %v4632
    %4681 = vmatprep.subr.mxu0 0.0
    %4682 = vmatpush1.msra.mxu0 %v4631
    %4683 = vmatprep.subr.mxu0 0.0
    %4684 = vmatpush1.msra.mxu0 %v4630
    %4685 = vmatprep.subr.mxu0 0.0
    %4686 = vmatpush2.msra.mxu0 0.0
    %4687 = vmatprep.subr.mxu0 0.0
    %4688 = vmatpush2.msra.mxu0 0.0
    %4689 = vmatprep.subr.mxu0 0.0
    %4690 = vmatpush2.msra.mxu0 0.0
    %4691 = vmatprep.subr.mxu0 0.0
    %4692 = vmatpush2.msra.mxu0 0.0
    %4693 = vmatprep.subr.mxu0 0.0
    %4694 = vmatpush2.msra.mxu0 0.0
    %4695 = vmatprep.subr.mxu0 0.0
    %4696 = vmatpush2.msra.mxu0 0.0
    %4697 = vmatprep.subr.mxu0 0.0
    %4698 = vmatpush2.msra.mxu0 0.0
    %4699 = vmatprep.subr.mxu0 0.0
    %4700 = vmatpush2.msra.mxu0 0.0
    %4701 = vmatprep.subr.mxu0 0.0
    %4702 = vmatpush2.msra.mxu0 0.0
    %4703 = vmatprep.subr.mxu0 0.0
    %4704 = vmatpush2.msra.mxu0 0.0
    %4705 = vmatprep.subr.mxu0 0.0
    %4706 = vmatpush2.msra.mxu0 0.0
    %4707 = vmatprep.subr.mxu0 0.0
    %4708 = vmatpush2.msra.mxu0 0.0
    %4709 = vmatprep.subr.mxu0 0.0
    %4710 = vmatpush2.msra.mxu0 0.0
    %4711 = vmatprep.subr.mxu0 0.0
    %4712 = vmatpush2.msra.mxu0 0.0
    %4713 = vmatprep.subr.mxu0 0.0
    %4714 = vmatpush2.msra.mxu0 0.0
    %4715 = vmatprep.subr.mxu0 0.0
    %4716 = vmatpush2.msra.mxu0 0.0
    %4717 = vmatprep.mubr.f32.mxu0 0.0
    %4718 = vmatmul.mubr.f32.gmra.mxu0 %v4629
    %v4719 = vpop.f32.mrf.mxu0
    %v4720 = vadd.f32 %v4651, %v4719
    %v4721 = vpop.f32.mrf.mxu0
    %4722 = vdwg.mxu0
    %4723 = vst [vmem:[%s17] sm:$0x3] %v4720
    // Predicated region
    $region134: #{_forward_impl.1} parent=1 // pred_check
      _
    $region135: #{_forward_impl.1} parent=1 // pred_check_branch
      %4725 = sbr.rel (0) target = $region137
    $region136: #{_forward_impl.1} parent=1 // pred_region
      _
    $region137: #{_forward_impl.1} parent=1 // pred_fallthru
      _
    // Predicated region
    $region138: #{_forward_impl.1} parent=1 // pred_check
      _
    $region139: #{_forward_impl.1} parent=1 // pred_check_branch
      %4727 = sbr.rel (0) target = $region141
    $region140: #{_forward_impl.1} parent=1 // pred_region
      _
    $region141: #{_forward_impl.1} parent=1 // pred_fallthru
      _
    %4728 = vsyncpa [#allocation3], 1
    %4729 = vsyncpa [#allocation5], 1
    %4730 = vsyncpa [#allocation8], 1
    %4731 = vsyncpa [#allocation11], 1
    %4732 = vsyncpa [#allocation14], 1
    %4733 = vsyncpa [#allocation17], 1
    %4734 = vsyncpa [#allocation20], 1
    %4735 = vsyncpa [#allocation23], 1
    %4736 = vsyncpa [#allocation26], 1

</llo_original>
